<compile_context>
chip_gen: v5e
topology: v5e:2x2
jax: 0.10.0
libtpu: 0.0.40
codegen_flags: <defaults>
</compile_context>

<pallas_src>
import jax
import jax.numpy as jnp
from jax import lax
from jax.experimental import pallas as pl
from jax.experimental.pallas import tpu as pltpu

EPS = 1e-5


def _fused_relu_conv1x1_bn_kernel(x_ref, w_ref, gb_ref, o_ref):
    # x_ref:  (Cin, R)    f32   R = N*H*W columns (lane axis)
    # w_ref:  (Cout, Cin) bf16 (or f32; cast in-VMEM)  1x1 conv weight
    # gb_ref: (Cout, 2)   f32   column 0 = gamma, column 1 = beta
    # o_ref:  (Cout, R)   out_dtype
    # ReLU on the VPU, cast to bf16 in-VMEM for the MXU (no extra HBM pass).
    x = jnp.maximum(x_ref[...], 0.0).astype(jnp.bfloat16)
    w = w_ref[...].astype(jnp.bfloat16)        # no-op if already bf16
    y = jnp.dot(w, x, preferred_element_type=jnp.float32)          # (Cout, R) f32

    # BatchNorm2d training-mode batch statistics: per-channel over all R
    # positions, biased variance.  Single pass over y: var = E[y^2] - mean^2
    # (f32 accumulation), clamped at 0 against cancellation; the centered
    # tensor is never materialized.
    r = y.shape[1]
    inv_r = 1.0 / r
    mean = jnp.sum(y, axis=1, keepdims=True) * inv_r                # (Cout, 1)
    mean_sq = jnp.sum(y * y, axis=1, keepdims=True) * inv_r         # (Cout, 1)
    var = jnp.maximum(mean_sq - mean * mean, 0.0)
    inv_std = lax.rsqrt(var + EPS)                                  # EUP

    # Fold BN normalize + affine into one per-channel FMA.
    gamma = gb_ref[:, 0:1]                                          # (Cout, 1)
    beta = gb_ref[:, 1:2]                                           # (Cout, 1)
    scale = gamma * inv_std
    bias = beta - mean * scale
    o_ref[...] = (y * scale + bias).astype(o_ref.dtype)


def prepare_params(w_oihw, gamma, beta):
    """One-time parameter prep (call OUTSIDE the per-step/jit path).

    OIHW (Cout, Cin, 1, 1) -> (Cout, Cin) bf16 weight, and gamma/beta stacked
    into a single (Cout, 2) f32 array.
    """
    cout, cin = w_oihw.shape[0], w_oihw.shape[1]
    w_mat = jnp.asarray(w_oihw).reshape(cout, cin).astype(jnp.bfloat16)
    gb = jnp.stack([jnp.asarray(gamma, jnp.float32),
                    jnp.asarray(beta, jnp.float32)], axis=1)        # (Cout, 2)
    return w_mat, gb


def fused_relu_conv1x1_bn(x_nchw, w_mat, gb, *, out_dtype=jnp.float32):
    """x_nchw: (N, Cin, H, W) f32; w_mat: (Cout, Cin) bf16/f32; gb: (Cout, 2) f32."""
    n, cin, h, w = x_nchw.shape
    cout = w_mat.shape[0]
    r = n * h * w

    # NCHW-native view: for N == 1 this is a pure reshape (no data movement).
    if n == 1:
        x_mat = x_nchw.reshape(cin, r)
    else:
        # TODO(synk): N>1 pays an HBM transpose in the wrapper (not counted in
        # the CostEstimate); the module's input is N=1 so this path is unused.
        x_mat = jnp.transpose(x_nchw, (1, 0, 2, 3)).reshape(cin, r)

    flops = 2 * r * cin * cout
    bytes_accessed = (x_mat.size * x_mat.dtype.itemsize
                      + w_mat.size * w_mat.dtype.itemsize
                      + gb.size * gb.dtype.itemsize
                      + cout * r * jnp.dtype(out_dtype).itemsize)

    # NOTE(synk): single whole-array block by design.  At R=784 per-grid-step
    # overhead (~0.35 us/step) exceeds any DMA/compute overlap, so an R-grid
    # is a regression here.  Under the 16 MiB vmem cap the working set is
    # ~4-6.5 KB per column (x f32 + in-VMEM bf16 copy + y f32 + out, with
    # double-buffered I/O), so the single-block path breaks around ~2.5-4K
    # columns; on v7x (64 MiB physical / 32 MiB scoped VMEM) even a raised
    # limit tops out around ~5-8K columns.  If R ever grows past that, switch
    # to a two-phase BN: tile R (multiple-of-128 lanes, reduction axis marked
    # "arbitrary"), accumulate per-channel sum/sum-sq in VMEM scratch, then
    # normalize+store in the last step.  On v7x, megacore-split along R with
    # per-core partials + cross-core combine — NOT along Cout, which would
    # make both cores re-read the full x over the shared HBM interface.
    out_mat = pl.pallas_call(
        _fused_relu_conv1x1_bn_kernel,
        out_shape=jax.ShapeDtypeStruct((cout, r), out_dtype),
        in_specs=[
            pl.BlockSpec((cin, r), lambda: (0, 0)),
            pl.BlockSpec((cout, cin), lambda: (0, 0)),
            pl.BlockSpec((cout, 2), lambda: (0, 0)),
        ],
        out_specs=pl.BlockSpec((cout, r), lambda: (0, 0)),
        cost_estimate=pl.CostEstimate(flops=flops, transcendentals=cout,
                                      bytes_accessed=bytes_accessed),
        compiler_params=pltpu.CompilerParams(vmem_limit_bytes=16 << 20),
    )(x_mat, w_mat, gb)

    if n == 1:
        return out_mat.reshape(1, cout, h, w)
    return jnp.transpose(out_mat.reshape(cout, n, h, w), (1, 0, 2, 3))


# TODO(synk): BatchNorm2d running_mean/running_var (momentum=0.1) in-place
# buffer updates are a training side effect with no functional output here;
# only the forward activation is produced (matches PyTorch train-mode forward).


def _reference(x_nchw, w_oihw, gamma, beta, matmul_dtype=jnp.float32):
    # Pure-JAX reference (same math, no Pallas). matmul_dtype=bf16 mirrors the
    # kernel's MXU input precision for a tight comparison.
    n, cin, h, w = x_nchw.shape
    cout = w_oihw.shape[0]
    xr = jnp.maximum(x_nchw, 0.0).astype(matmul_dtype)
    xr = jnp.transpose(xr, (0, 2, 3, 1)).reshape(-1, cin)
    wm = jnp.transpose(w_oihw.reshape(cout, cin), (1, 0)).astype(matmul_dtype)
    y = jnp.dot(xr, wm, preferred_element_type=jnp.float32)
    mean = jnp.mean(y, axis=0, keepdims=True)
    var = jnp.mean((y - mean) ** 2, axis=0, keepdims=True)
    y = (y - mean) / jnp.sqrt(var + EPS) * gamma.reshape(1, -1) + beta.reshape(1, -1)
    return jnp.transpose(y.reshape(n, h, w, cout), (0, 3, 1, 2))


if __name__ == "__main__":
    key = jax.random.PRNGKey(0)
    k_x, k_w = jax.random.split(key)

    N, CIN, H, W = 1, 512, 28, 28   # matches the module's expected input
    COUT = 128

    x = jax.random.normal(k_x, (N, CIN, H, W), dtype=jnp.float32)
    # Deterministic synthetic conv weight (torch OIHW layout: (Cout, Cin, 1, 1)).
    conv_w = jax.random.normal(k_w, (COUT, CIN, 1, 1), dtype=jnp.float32) * 0.02
    # BatchNorm affine params at their PyTorch init values.
    gamma = jnp.ones((COUT,), dtype=jnp.float32)
    beta = jnp.zeros((COUT,), dtype=jnp.float32)

    # One-time parameter prep (outside the per-forward path).
    w_mat, gb = prepare_params(conv_w, gamma, beta)

    fwd = jax.jit(fused_relu_conv1x1_bn, static_argnames=("out_dtype",))
    out = jax.block_until_ready(fwd(x, w_mat, gb))
    assert out.shape == (N, COUT, H, W)
    assert out.dtype == jnp.float32

    # Tight check vs a reference that matches the kernel's bf16 MXU inputs.
    ref_bf16 = _reference(x, conv_w, gamma, beta, matmul_dtype=jnp.bfloat16)
    assert jnp.allclose(out, ref_bf16, atol=2e-3, rtol=2e-3)

    # Looser check vs the full-f32 reference (difference = intentional bf16
    # quantization of the matmul inputs; outputs are BN-normalized ~N(0,1)).
    ref_f32 = _reference(x, conv_w, gamma, beta, matmul_dtype=jnp.float32)
    assert jnp.allclose(out, ref_f32, atol=3e-2, rtol=3e-2)

    # Optional bf16-output path (halves the output write when the downstream
    # consumer accepts bf16); loose check since the store itself is quantized.
    out_bf16 = jax.block_until_ready(fwd(x, w_mat, gb, out_dtype=jnp.bfloat16))
    assert out_bf16.dtype == jnp.bfloat16
    assert jnp.allclose(out_bf16.astype(jnp.float32), ref_f32, atol=5e-2, rtol=5e-2)

    print("KERNEL_OK")
</pallas_src>

<mosaic_0001>
module attributes {stable_mosaic.version = 11 : i64} {
  func.func @_fused_relu_conv1x1_bn_kernel(%arg0: memref<512x784xf32, #tpu.memory_space<vmem>>, %arg1: memref<128x512xbf16, #tpu.memory_space<vmem>>, %arg2: memref<128x2xf32, #tpu.memory_space<vmem>>, %arg3: memref<128x784xf32, #tpu.memory_space<vmem>>) attributes {dimension_semantics = [], scalar_prefetch = 0 : i64, scratch_operands = 0 : i64, tpu.core_type = #tpu.core_type<tc>} {
    %c0 = arith.constant 0 : index
    %c0_0 = arith.constant 0 : index
    %0 = vector.load %arg0[%c0, %c0_0] : memref<512x784xf32, #tpu.memory_space<vmem>>, vector<512x784xf32>
    %cst = arith.constant 0.000000e+00 : f32
    %1 = vector.broadcast %cst : f32 to vector<512x784xf32>
    %2 = arith.maximumf %0, %1 : vector<512x784xf32>
    %3 = arith.truncf %2 : vector<512x784xf32> to vector<512x784xbf16>
    %c0_1 = arith.constant 0 : index
    %c0_2 = arith.constant 0 : index
    %4 = vector.load %arg1[%c0_1, %c0_2] : memref<128x512xbf16, #tpu.memory_space<vmem>>, vector<128x512xbf16>
    %cst_3 = arith.constant dense<0.000000e+00> : vector<128x784xf32>
    %5 = tpu.matmul %4, %3, %cst_3 {dimension_numbers = #tpu.dot_dimension_numbers<[1], [0], [0], [1], [0, 0, 1, 1], [], []>} : vector<128x512xbf16>, vector<512x784xbf16>, vector<128x784xf32> -> vector<128x784xf32>
    %cst_4 = arith.constant dense<0.000000e+00> : vector<128xf32>
    %6 = vector.multi_reduction <add>, %5, %cst_4 [1] : vector<128x784xf32> to vector<128xf32>
    %7 = vector.shape_cast %6 : vector<128xf32> to vector<128x1xf32>
    %cst_5 = arith.constant 0.00127551018 : f32
    %8 = vector.broadcast %cst_5 : f32 to vector<128x1xf32>
    %9 = arith.mulf %7, %8 : vector<128x1xf32>
    %10 = arith.mulf %5, %5 : vector<128x784xf32>
    %cst_6 = arith.constant dense<0.000000e+00> : vector<128xf32>
    %11 = vector.multi_reduction <add>, %10, %cst_6 [1] : vector<128x784xf32> to vector<128xf32>
    %12 = vector.shape_cast %11 : vector<128xf32> to vector<128x1xf32>
    %cst_7 = arith.constant 0.00127551018 : f32
    %13 = vector.broadcast %cst_7 : f32 to vector<128x1xf32>
    %14 = arith.mulf %12, %13 : vector<128x1xf32>
    %15 = arith.mulf %9, %9 : vector<128x1xf32>
    %16 = arith.subf %14, %15 : vector<128x1xf32>
    %cst_8 = arith.constant 0.000000e+00 : f32
    %17 = vector.broadcast %cst_8 : f32 to vector<128x1xf32>
    %18 = arith.maximumf %16, %17 : vector<128x1xf32>
    %cst_9 = arith.constant 9.99999974E-6 : f32
    %19 = vector.broadcast %cst_9 : f32 to vector<128x1xf32>
    %20 = arith.addf %18, %19 : vector<128x1xf32>
    %21 = math.rsqrt %20 : vector<128x1xf32>
    %c0_10 = arith.constant 0 : index
    %c0_11 = arith.constant 0 : index
    %22 = vector.load %arg2[%c0_10, %c0_11] : memref<128x2xf32, #tpu.memory_space<vmem>>, vector<128x1xf32>
    %c0_12 = arith.constant 0 : index
    %c1 = arith.constant 1 : index
    %23 = vector.load %arg2[%c0_12, %c1] : memref<128x2xf32, #tpu.memory_space<vmem>>, vector<128x1xf32>
    %24 = arith.mulf %22, %21 : vector<128x1xf32>
    %25 = arith.mulf %9, %24 : vector<128x1xf32>
    %26 = arith.subf %23, %25 : vector<128x1xf32>
    %27 = vector.broadcast %24 : vector<128x1xf32> to vector<128x784xf32>
    %28 = arith.mulf %5, %27 : vector<128x784xf32>
    %29 = vector.broadcast %26 : vector<128x1xf32> to vector<128x784xf32>
    %30 = arith.addf %28, %29 : vector<128x784xf32>
    %c0_13 = arith.constant 0 : index
    %c0_14 = arith.constant 0 : index
    %31 = vector.load %arg3[%c0_13, %c0_14] : memref<128x784xf32, #tpu.memory_space<vmem>>, vector<128x784xf32>
    tpu.vector_store %arg3[%c0_13, %c0_14], %30 {strides = array<i32>} : memref<128x784xf32, #tpu.memory_space<vmem>>, vector<128x784xf32>,
    return
  }
}

</mosaic_0001>

<llo_original>
// kernel: fused_relu_conv1x1_bn.1
$region0: #{fused_relu_conv1x1_bn.1}
  #allocation0 [shape = 'u32[]', space=smem, size = 0x4, offset = 0x4, fixed_abs, tag = 'smem constant byte address 0x4 - core index']
  #allocation1 [shape = 'u32[72,128]{1,0:T(1,128)}', space=vmem, size = 0x9000, scoped, tag = 'internal scratch']
  %s0 = inlined_call_operand.vmem [shape: f32[512,784], index: 0, kind: input, shape index: {}]
  %s1 = inlined_call_operand.vmem [shape: bf16[128,512], index: 1, kind: input, shape index: {}]
  %s2 = inlined_call_operand.vmem [shape: f32[128,2], index: 2, kind: input, shape index: {}]
  %s3 = inlined_call_operand.vmem [shape: f32[128,784], index: 3, kind: output, shape index: {}]
  %s4 = sld [smem:[#allocation0]]
  $region22: #{fused_relu_conv1x1_bn.1} parent=0
    _
  %s6 = ssub.s32 1, %s4
  %s7 = scalar_select 0, %s6, %s4
  // Predicated region
  $region2: #{fused_relu_conv1x1_bn.1} parent=0 // pred_check
    _
  $region3: #{fused_relu_conv1x1_bn.1} parent=0 // pred_check_branch
    %9 = sbr.rel (0) target = $region5
  $region4: #{fused_relu_conv1x1_bn.1} parent=0 // pred_region
    _
  $region5: #{fused_relu_conv1x1_bn.1} parent=0 // pred_fallthru
    _
  // Predicated region
  $region6: #{fused_relu_conv1x1_bn.1} parent=0 // pred_check
    _
  $region7: #{fused_relu_conv1x1_bn.1} parent=0 // pred_check_branch
    %11 = sbr.rel (0) target = $region9
  $region8: #{fused_relu_conv1x1_bn.1} parent=0 // pred_region
    _
  $region9: #{fused_relu_conv1x1_bn.1} parent=0 // pred_fallthru
    _
  // Predicated region
  $region10: #{fused_relu_conv1x1_bn.1} parent=0 // pred_check
    _
  $region11: #{fused_relu_conv1x1_bn.1} parent=0 // pred_check_branch
    %13 = sbr.rel (0) target = $region13
  $region12: #{fused_relu_conv1x1_bn.1} parent=0 // pred_region
    _
  $region13: #{fused_relu_conv1x1_bn.1} parent=0 // pred_fallthru
    _
  %v14 = vld [vmem:[%s0] sm:$0xff]
  %v15 = vld [vmem:[%s0 + $0x8] sm:$0xff]
  %v16 = vld [vmem:[%s0 + $0x10] sm:$0xff]
  %v17 = vld [vmem:[%s0 + $0x18] sm:$0xff]
  %v18 = vld [vmem:[%s0 + $0x20] sm:$0xff]
  %v19 = vld [vmem:[%s0 + $0x28] sm:$0xff]
  %v20 = vld [vmem:[%s0 + $0x30] sm:$0xff]
  %v21 = vld [vmem:[%s0 + $0x38] sm:$0xff]
  %v22 = vld [vmem:[%s0 + $0x40] sm:$0xff]
  %v23 = vld [vmem:[%s0 + $0x48] sm:$0xff]
  %v24 = vld [vmem:[%s0 + $0x50] sm:$0xff]
  %v25 = vld [vmem:[%s0 + $0x58] sm:$0xff]
  %v26 = vld [vmem:[%s0 + $0x60] sm:$0xff]
  %v27 = vld [vmem:[%s0 + $0x68] sm:$0xff]
  %v28 = vld [vmem:[%s0 + $0x70] sm:$0xff]
  %v29 = vld [vmem:[%s0 + $0x78] sm:$0xff]
  %v30 = vld [vmem:[%s0 + $0x80] sm:$0xff]
  %v31 = vld [vmem:[%s0 + $0x88] sm:$0xff]
  %v32 = vld [vmem:[%s0 + $0x90] sm:$0xff]
  %v33 = vld [vmem:[%s0 + $0x98] sm:$0xff]
  %v34 = vld [vmem:[%s0 + $0xa0] sm:$0xff]
  %v35 = vld [vmem:[%s0 + $0xa8] sm:$0xff]
  %v36 = vld [vmem:[%s0 + $0xb0] sm:$0xff]
  %v37 = vld [vmem:[%s0 + $0xb8] sm:$0xff]
  %v38 = vld [vmem:[%s0 + $0xc0] sm:$0xff]
  %v39 = vld [vmem:[%s0 + $0xc8] sm:$0xff]
  %v40 = vld [vmem:[%s0 + $0xd0] sm:$0xff]
  %v41 = vld [vmem:[%s0 + $0xd8] sm:$0xff]
  %v42 = vld [vmem:[%s0 + $0xe0] sm:$0xff]
  %v43 = vld [vmem:[%s0 + $0xe8] sm:$0xff]
  %v44 = vld [vmem:[%s0 + $0xf0] sm:$0xff]
  %v45 = vld [vmem:[%s0 + $0xf8] sm:$0xff]
  %v46 = vld [vmem:[%s0 + $0x100] sm:$0xff]
  %v47 = vld [vmem:[%s0 + $0x108] sm:$0xff]
  %v48 = vld [vmem:[%s0 + $0x110] sm:$0xff]
  %v49 = vld [vmem:[%s0 + $0x118] sm:$0xff]
  %v50 = vld [vmem:[%s0 + $0x120] sm:$0xff]
  %v51 = vld [vmem:[%s0 + $0x128] sm:$0xff]
  %v52 = vld [vmem:[%s0 + $0x130] sm:$0xff]
  %v53 = vld [vmem:[%s0 + $0x138] sm:$0xff]
  %v54 = vld [vmem:[%s0 + $0x140] sm:$0xff]
  %v55 = vld [vmem:[%s0 + $0x148] sm:$0xff]
  %v56 = vld [vmem:[%s0 + $0x150] sm:$0xff]
  %v57 = vld [vmem:[%s0 + $0x158] sm:$0xff]
  %v58 = vld [vmem:[%s0 + $0x160] sm:$0xff]
  %v59 = vld [vmem:[%s0 + $0x168] sm:$0xff]
  %v60 = vld [vmem:[%s0 + $0x170] sm:$0xff]
  %v61 = vld [vmem:[%s0 + $0x178] sm:$0xff]
  %v62 = vld [vmem:[%s0 + $0x180] sm:$0xff]
  %v63 = vld [vmem:[%s0 + $0x188] sm:$0xff]
  %v64 = vld [vmem:[%s0 + $0x190] sm:$0xff]
  %v65 = vld [vmem:[%s0 + $0x198] sm:$0xff]
  %v66 = vld [vmem:[%s0 + $0x1a0] sm:$0xff]
  %v67 = vld [vmem:[%s0 + $0x1a8] sm:$0xff]
  %v68 = vld [vmem:[%s0 + $0x1b0] sm:$0xff]
  %v69 = vld [vmem:[%s0 + $0x1b8] sm:$0xff]
  %v70 = vld [vmem:[%s0 + $0x1c0] sm:$0xff]
  %v71 = vld [vmem:[%s0 + $0x1c8] sm:$0xff]
  %v72 = vld [vmem:[%s0 + $0x1d0] sm:$0xff]
  %v73 = vld [vmem:[%s0 + $0x1d8] sm:$0xff]
  %v74 = vld [vmem:[%s0 + $0x1e0] sm:$0xff]
  %v75 = vld [vmem:[%s0 + $0x1e8] sm:$0xff]
  %v76 = vld [vmem:[%s0 + $0x1f0] sm:$0xff]
  %v77 = vld [vmem:[%s0 + $0x1f8] sm:$0xff]
  %v78 = vld [vmem:[%s0 + $0x200] sm:$0xff]
  %v79 = vld [vmem:[%s0 + $0x208] sm:$0xff]
  %v80 = vld [vmem:[%s0 + $0x210] sm:$0xff]
  %v81 = vld [vmem:[%s0 + $0x218] sm:$0xff]
  %v82 = vld [vmem:[%s0 + $0x220] sm:$0xff]
  %v83 = vld [vmem:[%s0 + $0x228] sm:$0xff]
  %v84 = vld [vmem:[%s0 + $0x230] sm:$0xff]
  %v85 = vld [vmem:[%s0 + $0x238] sm:$0xff]
  %v86 = vld [vmem:[%s0 + $0x240] sm:$0xff]
  %v87 = vld [vmem:[%s0 + $0x248] sm:$0xff]
  %v88 = vld [vmem:[%s0 + $0x250] sm:$0xff]
  %v89 = vld [vmem:[%s0 + $0x258] sm:$0xff]
  %v90 = vld [vmem:[%s0 + $0x260] sm:$0xff]
  %v91 = vld [vmem:[%s0 + $0x268] sm:$0xff]
  %v92 = vld [vmem:[%s0 + $0x270] sm:$0xff]
  %v93 = vld [vmem:[%s0 + $0x278] sm:$0xff]
  %v94 = vld [vmem:[%s0 + $0x280] sm:$0xff]
  %v95 = vld [vmem:[%s0 + $0x288] sm:$0xff]
  %v96 = vld [vmem:[%s0 + $0x290] sm:$0xff]
  %v97 = vld [vmem:[%s0 + $0x298] sm:$0xff]
  %v98 = vld [vmem:[%s0 + $0x2a0] sm:$0xff]
  %v99 = vld [vmem:[%s0 + $0x2a8] sm:$0xff]
  %v100 = vld [vmem:[%s0 + $0x2b0] sm:$0xff]
  %v101 = vld [vmem:[%s0 + $0x2b8] sm:$0xff]
  %v102 = vld [vmem:[%s0 + $0x2c0] sm:$0xff]
  %v103 = vld [vmem:[%s0 + $0x2c8] sm:$0xff]
  %v104 = vld [vmem:[%s0 + $0x2d0] sm:$0xff]
  %v105 = vld [vmem:[%s0 + $0x2d8] sm:$0xff]
  %v106 = vld [vmem:[%s0 + $0x2e0] sm:$0xff]
  %v107 = vld [vmem:[%s0 + $0x2e8] sm:$0xff]
  %v108 = vld [vmem:[%s0 + $0x2f0] sm:$0xff]
  %v109 = vld [vmem:[%s0 + $0x2f8] sm:$0xff]
  %v110 = vld [vmem:[%s0 + $0x300] sm:$0xff]
  %v111 = vld [vmem:[%s0 + $0x308] sm:$0xff]
  %v112 = vld [vmem:[%s0 + $0x310] sm:$0xff]
  %v113 = vld [vmem:[%s0 + $0x318] sm:$0xff]
  %v114 = vld [vmem:[%s0 + $0x320] sm:$0xff]
  %v115 = vld [vmem:[%s0 + $0x328] sm:$0xff]
  %v116 = vld [vmem:[%s0 + $0x330] sm:$0xff]
  %v117 = vld [vmem:[%s0 + $0x338] sm:$0xff]
  %v118 = vld [vmem:[%s0 + $0x340] sm:$0xff]
  %v119 = vld [vmem:[%s0 + $0x348] sm:$0xff]
  %v120 = vld [vmem:[%s0 + $0x350] sm:$0xff]
  %v121 = vld [vmem:[%s0 + $0x358] sm:$0xff]
  %v122 = vld [vmem:[%s0 + $0x360] sm:$0xff]
  %v123 = vld [vmem:[%s0 + $0x368] sm:$0xff]
  %v124 = vld [vmem:[%s0 + $0x370] sm:$0xff]
  %v125 = vld [vmem:[%s0 + $0x378] sm:$0xff]
  %v126 = vld [vmem:[%s0 + $0x380] sm:$0xff]
  %v127 = vld [vmem:[%s0 + $0x388] sm:$0xff]
  %v128 = vld [vmem:[%s0 + $0x390] sm:$0xff]
  %v129 = vld [vmem:[%s0 + $0x398] sm:$0xff]
  %v130 = vld [vmem:[%s0 + $0x3a0] sm:$0xff]
  %v131 = vld [vmem:[%s0 + $0x3a8] sm:$0xff]
  %v132 = vld [vmem:[%s0 + $0x3b0] sm:$0xff]
  %v133 = vld [vmem:[%s0 + $0x3b8] sm:$0xff]
  %v134 = vld [vmem:[%s0 + $0x3c0] sm:$0xff]
  %v135 = vld [vmem:[%s0 + $0x3c8] sm:$0xff]
  %v136 = vld [vmem:[%s0 + $0x3d0] sm:$0xff]
  %v137 = vld [vmem:[%s0 + $0x3d8] sm:$0xff]
  %v138 = vld [vmem:[%s0 + $0x3e0] sm:$0xff]
  %v139 = vld [vmem:[%s0 + $0x3e8] sm:$0xff]
  %v140 = vld [vmem:[%s0 + $0x3f0] sm:$0xff]
  %v141 = vld [vmem:[%s0 + $0x3f8] sm:$0xff]
  %v142 = vld [vmem:[%s0 + $0x400] sm:$0xff]
  %v143 = vld [vmem:[%s0 + $0x408] sm:$0xff]
  %v144 = vld [vmem:[%s0 + $0x410] sm:$0xff]
  %v145 = vld [vmem:[%s0 + $0x418] sm:$0xff]
  %v146 = vld [vmem:[%s0 + $0x420] sm:$0xff]
  %v147 = vld [vmem:[%s0 + $0x428] sm:$0xff]
  %v148 = vld [vmem:[%s0 + $0x430] sm:$0xff]
  %v149 = vld [vmem:[%s0 + $0x438] sm:$0xff]
  %v150 = vld [vmem:[%s0 + $0x440] sm:$0xff]
  %v151 = vld [vmem:[%s0 + $0x448] sm:$0xff]
  %v152 = vld [vmem:[%s0 + $0x450] sm:$0xff]
  %v153 = vld [vmem:[%s0 + $0x458] sm:$0xff]
  %v154 = vld [vmem:[%s0 + $0x460] sm:$0xff]
  %v155 = vld [vmem:[%s0 + $0x468] sm:$0xff]
  %v156 = vld [vmem:[%s0 + $0x470] sm:$0xff]
  %v157 = vld [vmem:[%s0 + $0x478] sm:$0xff]
  %v158 = vld [vmem:[%s0 + $0x480] sm:$0xff]
  %v159 = vld [vmem:[%s0 + $0x488] sm:$0xff]
  %v160 = vld [vmem:[%s0 + $0x490] sm:$0xff]
  %v161 = vld [vmem:[%s0 + $0x498] sm:$0xff]
  %v162 = vld [vmem:[%s0 + $0x4a0] sm:$0xff]
  %v163 = vld [vmem:[%s0 + $0x4a8] sm:$0xff]
  %v164 = vld [vmem:[%s0 + $0x4b0] sm:$0xff]
  %v165 = vld [vmem:[%s0 + $0x4b8] sm:$0xff]
  %v166 = vld [vmem:[%s0 + $0x4c0] sm:$0xff]
  %v167 = vld [vmem:[%s0 + $0x4c8] sm:$0xff]
  %v168 = vld [vmem:[%s0 + $0x4d0] sm:$0xff]
  %v169 = vld [vmem:[%s0 + $0x4d8] sm:$0xff]
  %v170 = vld [vmem:[%s0 + $0x4e0] sm:$0xff]
  %v171 = vld [vmem:[%s0 + $0x4e8] sm:$0xff]
  %v172 = vld [vmem:[%s0 + $0x4f0] sm:$0xff]
  %v173 = vld [vmem:[%s0 + $0x4f8] sm:$0xff]
  %v174 = vld [vmem:[%s0 + $0x500] sm:$0xff]
  %v175 = vld [vmem:[%s0 + $0x508] sm:$0xff]
  %v176 = vld [vmem:[%s0 + $0x510] sm:$0xff]
  %v177 = vld [vmem:[%s0 + $0x518] sm:$0xff]
  %v178 = vld [vmem:[%s0 + $0x520] sm:$0xff]
  %v179 = vld [vmem:[%s0 + $0x528] sm:$0xff]
  %v180 = vld [vmem:[%s0 + $0x530] sm:$0xff]
  %v181 = vld [vmem:[%s0 + $0x538] sm:$0xff]
  %v182 = vld [vmem:[%s0 + $0x540] sm:$0xff]
  %v183 = vld [vmem:[%s0 + $0x548] sm:$0xff]
  %v184 = vld [vmem:[%s0 + $0x550] sm:$0xff]
  %v185 = vld [vmem:[%s0 + $0x558] sm:$0xff]
  %v186 = vld [vmem:[%s0 + $0x560] sm:$0xff]
  %v187 = vld [vmem:[%s0 + $0x568] sm:$0xff]
  %v188 = vld [vmem:[%s0 + $0x570] sm:$0xff]
  %v189 = vld [vmem:[%s0 + $0x578] sm:$0xff]
  %v190 = vld [vmem:[%s0 + $0x580] sm:$0xff]
  %v191 = vld [vmem:[%s0 + $0x588] sm:$0xff]
  %v192 = vld [vmem:[%s0 + $0x590] sm:$0xff]
  %v193 = vld [vmem:[%s0 + $0x598] sm:$0xff]
  %v194 = vld [vmem:[%s0 + $0x5a0] sm:$0xff]
  %v195 = vld [vmem:[%s0 + $0x5a8] sm:$0xff]
  %v196 = vld [vmem:[%s0 + $0x5b0] sm:$0xff]
  %v197 = vld [vmem:[%s0 + $0x5b8] sm:$0xff]
  %v198 = vld [vmem:[%s0 + $0x5c0] sm:$0xff]
  %v199 = vld [vmem:[%s0 + $0x5c8] sm:$0xff]
  %v200 = vld [vmem:[%s0 + $0x5d0] sm:$0xff]
  %v201 = vld [vmem:[%s0 + $0x5d8] sm:$0xff]
  %v202 = vld [vmem:[%s0 + $0x5e0] sm:$0xff]
  %v203 = vld [vmem:[%s0 + $0x5e8] sm:$0xff]
  %v204 = vld [vmem:[%s0 + $0x5f0] sm:$0xff]
  %v205 = vld [vmem:[%s0 + $0x5f8] sm:$0xff]
  %v206 = vld [vmem:[%s0 + $0x600] sm:$0xff]
  %v207 = vld [vmem:[%s0 + $0x608] sm:$0xff]
  %v208 = vld [vmem:[%s0 + $0x610] sm:$0xff]
  %v209 = vld [vmem:[%s0 + $0x618] sm:$0xff]
  %v210 = vld [vmem:[%s0 + $0x620] sm:$0xff]
  %v211 = vld [vmem:[%s0 + $0x628] sm:$0xff]
  %v212 = vld [vmem:[%s0 + $0x630] sm:$0xff]
  %v213 = vld [vmem:[%s0 + $0x638] sm:$0xff]
  %v214 = vld [vmem:[%s0 + $0x640] sm:$0xff]
  %v215 = vld [vmem:[%s0 + $0x648] sm:$0xff]
  %v216 = vld [vmem:[%s0 + $0x650] sm:$0xff]
  %v217 = vld [vmem:[%s0 + $0x658] sm:$0xff]
  %v218 = vld [vmem:[%s0 + $0x660] sm:$0xff]
  %v219 = vld [vmem:[%s0 + $0x668] sm:$0xff]
  %v220 = vld [vmem:[%s0 + $0x670] sm:$0xff]
  %v221 = vld [vmem:[%s0 + $0x678] sm:$0xff]
  %v222 = vld [vmem:[%s0 + $0x680] sm:$0xff]
  %v223 = vld [vmem:[%s0 + $0x688] sm:$0xff]
  %v224 = vld [vmem:[%s0 + $0x690] sm:$0xff]
  %v225 = vld [vmem:[%s0 + $0x698] sm:$0xff]
  %v226 = vld [vmem:[%s0 + $0x6a0] sm:$0xff]
  %v227 = vld [vmem:[%s0 + $0x6a8] sm:$0xff]
  %v228 = vld [vmem:[%s0 + $0x6b0] sm:$0xff]
  %v229 = vld [vmem:[%s0 + $0x6b8] sm:$0xff]
  %v230 = vld [vmem:[%s0 + $0x6c0] sm:$0xff]
  %v231 = vld [vmem:[%s0 + $0x6c8] sm:$0xff]
  %v232 = vld [vmem:[%s0 + $0x6d0] sm:$0xff]
  %v233 = vld [vmem:[%s0 + $0x6d8] sm:$0xff]
  %v234 = vld [vmem:[%s0 + $0x6e0] sm:$0xff]
  %v235 = vld [vmem:[%s0 + $0x6e8] sm:$0xff]
  %v236 = vld [vmem:[%s0 + $0x6f0] sm:$0xff]
  %v237 = vld [vmem:[%s0 + $0x6f8] sm:$0xff]
  %v238 = vld [vmem:[%s0 + $0x700] sm:$0xff]
  %v239 = vld [vmem:[%s0 + $0x708] sm:$0xff]
  %v240 = vld [vmem:[%s0 + $0x710] sm:$0xff]
  %v241 = vld [vmem:[%s0 + $0x718] sm:$0xff]
  %v242 = vld [vmem:[%s0 + $0x720] sm:$0xff]
  %v243 = vld [vmem:[%s0 + $0x728] sm:$0xff]
  %v244 = vld [vmem:[%s0 + $0x730] sm:$0xff]
  %v245 = vld [vmem:[%s0 + $0x738] sm:$0xff]
  %v246 = vld [vmem:[%s0 + $0x740] sm:$0xff]
  %v247 = vld [vmem:[%s0 + $0x748] sm:$0xff]
  %v248 = vld [vmem:[%s0 + $0x750] sm:$0xff]
  %v249 = vld [vmem:[%s0 + $0x758] sm:$0xff]
  %v250 = vld [vmem:[%s0 + $0x760] sm:$0xff]
  %v251 = vld [vmem:[%s0 + $0x768] sm:$0xff]
  %v252 = vld [vmem:[%s0 + $0x770] sm:$0xff]
  %v253 = vld [vmem:[%s0 + $0x778] sm:$0xff]
  %v254 = vld [vmem:[%s0 + $0x780] sm:$0xff]
  %v255 = vld [vmem:[%s0 + $0x788] sm:$0xff]
  %v256 = vld [vmem:[%s0 + $0x790] sm:$0xff]
  %v257 = vld [vmem:[%s0 + $0x798] sm:$0xff]
  %v258 = vld [vmem:[%s0 + $0x7a0] sm:$0xff]
  %v259 = vld [vmem:[%s0 + $0x7a8] sm:$0xff]
  %v260 = vld [vmem:[%s0 + $0x7b0] sm:$0xff]
  %v261 = vld [vmem:[%s0 + $0x7b8] sm:$0xff]
  %v262 = vld [vmem:[%s0 + $0x7c0] sm:$0xff]
  %v263 = vld [vmem:[%s0 + $0x7c8] sm:$0xff]
  %v264 = vld [vmem:[%s0 + $0x7d0] sm:$0xff]
  %v265 = vld [vmem:[%s0 + $0x7d8] sm:$0xff]
  %v266 = vld [vmem:[%s0 + $0x7e0] sm:$0xff]
  %v267 = vld [vmem:[%s0 + $0x7e8] sm:$0xff]
  %v268 = vld [vmem:[%s0 + $0x7f0] sm:$0xff]
  %v269 = vld [vmem:[%s0 + $0x7f8] sm:$0xff]
  %v270 = vld [vmem:[%s0 + $0x800] sm:$0xff]
  %v271 = vld [vmem:[%s0 + $0x808] sm:$0xff]
  %v272 = vld [vmem:[%s0 + $0x810] sm:$0xff]
  %v273 = vld [vmem:[%s0 + $0x818] sm:$0xff]
  %v274 = vld [vmem:[%s0 + $0x820] sm:$0xff]
  %v275 = vld [vmem:[%s0 + $0x828] sm:$0xff]
  %v276 = vld [vmem:[%s0 + $0x830] sm:$0xff]
  %v277 = vld [vmem:[%s0 + $0x838] sm:$0xff]
  %v278 = vld [vmem:[%s0 + $0x840] sm:$0xff]
  %v279 = vld [vmem:[%s0 + $0x848] sm:$0xff]
  %v280 = vld [vmem:[%s0 + $0x850] sm:$0xff]
  %v281 = vld [vmem:[%s0 + $0x858] sm:$0xff]
  %v282 = vld [vmem:[%s0 + $0x860] sm:$0xff]
  %v283 = vld [vmem:[%s0 + $0x868] sm:$0xff]
  %v284 = vld [vmem:[%s0 + $0x870] sm:$0xff]
  %v285 = vld [vmem:[%s0 + $0x878] sm:$0xff]
  %v286 = vld [vmem:[%s0 + $0x880] sm:$0xff]
  %v287 = vld [vmem:[%s0 + $0x888] sm:$0xff]
  %v288 = vld [vmem:[%s0 + $0x890] sm:$0xff]
  %v289 = vld [vmem:[%s0 + $0x898] sm:$0xff]
  %v290 = vld [vmem:[%s0 + $0x8a0] sm:$0xff]
  %v291 = vld [vmem:[%s0 + $0x8a8] sm:$0xff]
  %v292 = vld [vmem:[%s0 + $0x8b0] sm:$0xff]
  %v293 = vld [vmem:[%s0 + $0x8b8] sm:$0xff]
  %v294 = vld [vmem:[%s0 + $0x8c0] sm:$0xff]
  %v295 = vld [vmem:[%s0 + $0x8c8] sm:$0xff]
  %v296 = vld [vmem:[%s0 + $0x8d0] sm:$0xff]
  %v297 = vld [vmem:[%s0 + $0x8d8] sm:$0xff]
  %v298 = vld [vmem:[%s0 + $0x8e0] sm:$0xff]
  %v299 = vld [vmem:[%s0 + $0x8e8] sm:$0xff]
  %v300 = vld [vmem:[%s0 + $0x8f0] sm:$0xff]
  %v301 = vld [vmem:[%s0 + $0x8f8] sm:$0xff]
  %v302 = vld [vmem:[%s0 + $0x900] sm:$0xff]
  %v303 = vld [vmem:[%s0 + $0x908] sm:$0xff]
  %v304 = vld [vmem:[%s0 + $0x910] sm:$0xff]
  %v305 = vld [vmem:[%s0 + $0x918] sm:$0xff]
  %v306 = vld [vmem:[%s0 + $0x920] sm:$0xff]
  %v307 = vld [vmem:[%s0 + $0x928] sm:$0xff]
  %v308 = vld [vmem:[%s0 + $0x930] sm:$0xff]
  %v309 = vld [vmem:[%s0 + $0x938] sm:$0xff]
  %v310 = vld [vmem:[%s0 + $0x940] sm:$0xff]
  %v311 = vld [vmem:[%s0 + $0x948] sm:$0xff]
  %v312 = vld [vmem:[%s0 + $0x950] sm:$0xff]
  %v313 = vld [vmem:[%s0 + $0x958] sm:$0xff]
  %v314 = vld [vmem:[%s0 + $0x960] sm:$0xff]
  %v315 = vld [vmem:[%s0 + $0x968] sm:$0xff]
  %v316 = vld [vmem:[%s0 + $0x970] sm:$0xff]
  %v317 = vld [vmem:[%s0 + $0x978] sm:$0xff]
  %v318 = vld [vmem:[%s0 + $0x980] sm:$0xff]
  %v319 = vld [vmem:[%s0 + $0x988] sm:$0xff]
  %v320 = vld [vmem:[%s0 + $0x990] sm:$0xff]
  %v321 = vld [vmem:[%s0 + $0x998] sm:$0xff]
  %v322 = vld [vmem:[%s0 + $0x9a0] sm:$0xff]
  %v323 = vld [vmem:[%s0 + $0x9a8] sm:$0xff]
  %v324 = vld [vmem:[%s0 + $0x9b0] sm:$0xff]
  %v325 = vld [vmem:[%s0 + $0x9b8] sm:$0xff]
  %v326 = vld [vmem:[%s0 + $0x9c0] sm:$0xff]
  %v327 = vld [vmem:[%s0 + $0x9c8] sm:$0xff]
  %v328 = vld [vmem:[%s0 + $0x9d0] sm:$0xff]
  %v329 = vld [vmem:[%s0 + $0x9d8] sm:$0xff]
  %v330 = vld [vmem:[%s0 + $0x9e0] sm:$0xff]
  %v331 = vld [vmem:[%s0 + $0x9e8] sm:$0xff]
  %v332 = vld [vmem:[%s0 + $0x9f0] sm:$0xff]
  %v333 = vld [vmem:[%s0 + $0x9f8] sm:$0xff]
  %v334 = vld [vmem:[%s0 + $0xa00] sm:$0xff]
  %v335 = vld [vmem:[%s0 + $0xa08] sm:$0xff]
  %v336 = vld [vmem:[%s0 + $0xa10] sm:$0xff]
  %v337 = vld [vmem:[%s0 + $0xa18] sm:$0xff]
  %v338 = vld [vmem:[%s0 + $0xa20] sm:$0xff]
  %v339 = vld [vmem:[%s0 + $0xa28] sm:$0xff]
  %v340 = vld [vmem:[%s0 + $0xa30] sm:$0xff]
  %v341 = vld [vmem:[%s0 + $0xa38] sm:$0xff]
  %v342 = vld [vmem:[%s0 + $0xa40] sm:$0xff]
  %v343 = vld [vmem:[%s0 + $0xa48] sm:$0xff]
  %v344 = vld [vmem:[%s0 + $0xa50] sm:$0xff]
  %v345 = vld [vmem:[%s0 + $0xa58] sm:$0xff]
  %v346 = vld [vmem:[%s0 + $0xa60] sm:$0xff]
  %v347 = vld [vmem:[%s0 + $0xa68] sm:$0xff]
  %v348 = vld [vmem:[%s0 + $0xa70] sm:$0xff]
  %v349 = vld [vmem:[%s0 + $0xa78] sm:$0xff]
  %v350 = vld [vmem:[%s0 + $0xa80] sm:$0xff]
  %v351 = vld [vmem:[%s0 + $0xa88] sm:$0xff]
  %v352 = vld [vmem:[%s0 + $0xa90] sm:$0xff]
  %v353 = vld [vmem:[%s0 + $0xa98] sm:$0xff]
  %v354 = vld [vmem:[%s0 + $0xaa0] sm:$0xff]
  %v355 = vld [vmem:[%s0 + $0xaa8] sm:$0xff]
  %v356 = vld [vmem:[%s0 + $0xab0] sm:$0xff]
  %v357 = vld [vmem:[%s0 + $0xab8] sm:$0xff]
  %v358 = vld [vmem:[%s0 + $0xac0] sm:$0xff]
  %v359 = vld [vmem:[%s0 + $0xac8] sm:$0xff]
  %v360 = vld [vmem:[%s0 + $0xad0] sm:$0xff]
  %v361 = vld [vmem:[%s0 + $0xad8] sm:$0xff]
  %v362 = vld [vmem:[%s0 + $0xae0] sm:$0xff]
  %v363 = vld [vmem:[%s0 + $0xae8] sm:$0xff]
  %v364 = vld [vmem:[%s0 + $0xaf0] sm:$0xff]
  %v365 = vld [vmem:[%s0 + $0xaf8] sm:$0xff]
  %v366 = vld [vmem:[%s0 + $0xb00] sm:$0xff]
  %v367 = vld [vmem:[%s0 + $0xb08] sm:$0xff]
  %v368 = vld [vmem:[%s0 + $0xb10] sm:$0xff]
  %v369 = vld [vmem:[%s0 + $0xb18] sm:$0xff]
  %v370 = vld [vmem:[%s0 + $0xb20] sm:$0xff]
  %v371 = vld [vmem:[%s0 + $0xb28] sm:$0xff]
  %v372 = vld [vmem:[%s0 + $0xb30] sm:$0xff]
  %v373 = vld [vmem:[%s0 + $0xb38] sm:$0xff]
  %v374 = vld [vmem:[%s0 + $0xb40] sm:$0xff]
  %v375 = vld [vmem:[%s0 + $0xb48] sm:$0xff]
  %v376 = vld [vmem:[%s0 + $0xb50] sm:$0xff]
  %v377 = vld [vmem:[%s0 + $0xb58] sm:$0xff]
  %v378 = vld [vmem:[%s0 + $0xb60] sm:$0xff]
  %v379 = vld [vmem:[%s0 + $0xb68] sm:$0xff]
  %v380 = vld [vmem:[%s0 + $0xb70] sm:$0xff]
  %v381 = vld [vmem:[%s0 + $0xb78] sm:$0xff]
  %v382 = vld [vmem:[%s0 + $0xb80] sm:$0xff]
  %v383 = vld [vmem:[%s0 + $0xb88] sm:$0xff]
  %v384 = vld [vmem:[%s0 + $0xb90] sm:$0xff]
  %v385 = vld [vmem:[%s0 + $0xb98] sm:$0xff]
  %v386 = vld [vmem:[%s0 + $0xba0] sm:$0xff]
  %v387 = vld [vmem:[%s0 + $0xba8] sm:$0xff]
  %v388 = vld [vmem:[%s0 + $0xbb0] sm:$0xff]
  %v389 = vld [vmem:[%s0 + $0xbb8] sm:$0xff]
  %v390 = vld [vmem:[%s0 + $0xbc0] sm:$0xff]
  %v391 = vld [vmem:[%s0 + $0xbc8] sm:$0xff]
  %v392 = vld [vmem:[%s0 + $0xbd0] sm:$0xff]
  %v393 = vld [vmem:[%s0 + $0xbd8] sm:$0xff]
  %v394 = vld [vmem:[%s0 + $0xbe0] sm:$0xff]
  %v395 = vld [vmem:[%s0 + $0xbe8] sm:$0xff]
  %v396 = vld [vmem:[%s0 + $0xbf0] sm:$0xff]
  %v397 = vld [vmem:[%s0 + $0xbf8] sm:$0xff]
  %v398 = vld [vmem:[%s0 + $0xc00] sm:$0xff]
  %v399 = vld [vmem:[%s0 + $0xc08] sm:$0xff]
  %v400 = vld [vmem:[%s0 + $0xc10] sm:$0xff]
  %v401 = vld [vmem:[%s0 + $0xc18] sm:$0xff]
  %v402 = vld [vmem:[%s0 + $0xc20] sm:$0xff]
  %v403 = vld [vmem:[%s0 + $0xc28] sm:$0xff]
  %v404 = vld [vmem:[%s0 + $0xc30] sm:$0xff]
  %v405 = vld [vmem:[%s0 + $0xc38] sm:$0xff]
  %v406 = vld [vmem:[%s0 + $0xc40] sm:$0xff]
  %v407 = vld [vmem:[%s0 + $0xc48] sm:$0xff]
  %v408 = vld [vmem:[%s0 + $0xc50] sm:$0xff]
  %v409 = vld [vmem:[%s0 + $0xc58] sm:$0xff]
  %v410 = vld [vmem:[%s0 + $0xc60] sm:$0xff]
  %v411 = vld [vmem:[%s0 + $0xc68] sm:$0xff]
  %v412 = vld [vmem:[%s0 + $0xc70] sm:$0xff]
  %v413 = vld [vmem:[%s0 + $0xc78] sm:$0xff]
  %v414 = vld [vmem:[%s0 + $0xc80] sm:$0xff]
  %v415 = vld [vmem:[%s0 + $0xc88] sm:$0xff]
  %v416 = vld [vmem:[%s0 + $0xc90] sm:$0xff]
  %v417 = vld [vmem:[%s0 + $0xc98] sm:$0xff]
  %v418 = vld [vmem:[%s0 + $0xca0] sm:$0xff]
  %v419 = vld [vmem:[%s0 + $0xca8] sm:$0xff]
  %v420 = vld [vmem:[%s0 + $0xcb0] sm:$0xff]
  %v421 = vld [vmem:[%s0 + $0xcb8] sm:$0xff]
  %v422 = vld [vmem:[%s0 + $0xcc0] sm:$0xff]
  %v423 = vld [vmem:[%s0 + $0xcc8] sm:$0xff]
  %v424 = vld [vmem:[%s0 + $0xcd0] sm:$0xff]
  %v425 = vld [vmem:[%s0 + $0xcd8] sm:$0xff]
  %v426 = vld [vmem:[%s0 + $0xce0] sm:$0xff]
  %v427 = vld [vmem:[%s0 + $0xce8] sm:$0xff]
  %v428 = vld [vmem:[%s0 + $0xcf0] sm:$0xff]
  %v429 = vld [vmem:[%s0 + $0xcf8] sm:$0xff]
  %v430 = vld [vmem:[%s0 + $0xd00] sm:$0xff]
  %v431 = vld [vmem:[%s0 + $0xd08] sm:$0xff]
  %v432 = vld [vmem:[%s0 + $0xd10] sm:$0xff]
  %v433 = vld [vmem:[%s0 + $0xd18] sm:$0xff]
  %v434 = vld [vmem:[%s0 + $0xd20] sm:$0xff]
  %v435 = vld [vmem:[%s0 + $0xd28] sm:$0xff]
  %v436 = vld [vmem:[%s0 + $0xd30] sm:$0xff]
  %v437 = vld [vmem:[%s0 + $0xd38] sm:$0xff]
  %v438 = vld [vmem:[%s0 + $0xd40] sm:$0xff]
  %v439 = vld [vmem:[%s0 + $0xd48] sm:$0xff]
  %v440 = vld [vmem:[%s0 + $0xd50] sm:$0xff]
  %v441 = vld [vmem:[%s0 + $0xd58] sm:$0xff]
  %v442 = vld [vmem:[%s0 + $0xd60] sm:$0xff]
  %v443 = vld [vmem:[%s0 + $0xd68] sm:$0xff]
  %v444 = vld [vmem:[%s0 + $0xd70] sm:$0xff]
  %v445 = vld [vmem:[%s0 + $0xd78] sm:$0xff]
  %v446 = vld [vmem:[%s0 + $0xd80] sm:$0xff]
  %v447 = vld [vmem:[%s0 + $0xd88] sm:$0xff]
  %v448 = vld [vmem:[%s0 + $0xd90] sm:$0xff]
  %v449 = vld [vmem:[%s0 + $0xd98] sm:$0xff]
  %v450 = vld [vmem:[%s0 + $0xda0] sm:$0xff]
  %v451 = vld [vmem:[%s0 + $0xda8] sm:$0xff]
  %v452 = vld [vmem:[%s0 + $0xdb0] sm:$0xff]
  %v453 = vld [vmem:[%s0 + $0xdb8] sm:$0xff]
  %v454 = vld [vmem:[%s0 + $0xdc0] sm:$0xff]
  %v455 = vld [vmem:[%s0 + $0xdc8] sm:$0xff]
  %v456 = vld [vmem:[%s0 + $0xdd0] sm:$0xff]
  %v457 = vld [vmem:[%s0 + $0xdd8] sm:$0xff]
  %v458 = vld [vmem:[%s0 + $0xde0] sm:$0xff]
  %v459 = vld [vmem:[%s0 + $0xde8] sm:$0xff]
  %v460 = vld [vmem:[%s0 + $0xdf0] sm:$0xff]
  %v461 = vld [vmem:[%s0 + $0xdf8] sm:$0xff]
  %v462 = vmax.f32 %v14, 0.0
  %v463 = vmax.f32 %v15, 0.0
  %v464 = vmax.f32 %v16, 0.0
  %v465 = vmax.f32 %v17, 0.0
  %v466 = vmax.f32 %v18, 0.0
  %v467 = vmax.f32 %v19, 0.0
  %v468 = vmax.f32 %v20, 0.0
  %v469 = vmax.f32 %v21, 0.0
  %v470 = vmax.f32 %v22, 0.0
  %v471 = vmax.f32 %v23, 0.0
  %v472 = vmax.f32 %v24, 0.0
  %v473 = vmax.f32 %v25, 0.0
  %v474 = vmax.f32 %v26, 0.0
  %v475 = vmax.f32 %v27, 0.0
  %v476 = vmax.f32 %v28, 0.0
  %v477 = vmax.f32 %v29, 0.0
  %v478 = vmax.f32 %v30, 0.0
  %v479 = vmax.f32 %v31, 0.0
  %v480 = vmax.f32 %v32, 0.0
  %v481 = vmax.f32 %v33, 0.0
  %v482 = vmax.f32 %v34, 0.0
  %v483 = vmax.f32 %v35, 0.0
  %v484 = vmax.f32 %v36, 0.0
  %v485 = vmax.f32 %v37, 0.0
  %v486 = vmax.f32 %v38, 0.0
  %v487 = vmax.f32 %v39, 0.0
  %v488 = vmax.f32 %v40, 0.0
  %v489 = vmax.f32 %v41, 0.0
  %v490 = vmax.f32 %v42, 0.0
  %v491 = vmax.f32 %v43, 0.0
  %v492 = vmax.f32 %v44, 0.0
  %v493 = vmax.f32 %v45, 0.0
  %v494 = vmax.f32 %v46, 0.0
  %v495 = vmax.f32 %v47, 0.0
  %v496 = vmax.f32 %v48, 0.0
  %v497 = vmax.f32 %v49, 0.0
  %v498 = vmax.f32 %v50, 0.0
  %v499 = vmax.f32 %v51, 0.0
  %v500 = vmax.f32 %v52, 0.0
  %v501 = vmax.f32 %v53, 0.0
  %v502 = vmax.f32 %v54, 0.0
  %v503 = vmax.f32 %v55, 0.0
  %v504 = vmax.f32 %v56, 0.0
  %v505 = vmax.f32 %v57, 0.0
  %v506 = vmax.f32 %v58, 0.0
  %v507 = vmax.f32 %v59, 0.0
  %v508 = vmax.f32 %v60, 0.0
  %v509 = vmax.f32 %v61, 0.0
  %v510 = vmax.f32 %v62, 0.0
  %v511 = vmax.f32 %v63, 0.0
  %v512 = vmax.f32 %v64, 0.0
  %v513 = vmax.f32 %v65, 0.0
  %v514 = vmax.f32 %v66, 0.0
  %v515 = vmax.f32 %v67, 0.0
  %v516 = vmax.f32 %v68, 0.0
  %v517 = vmax.f32 %v69, 0.0
  %v518 = vmax.f32 %v70, 0.0
  %v519 = vmax.f32 %v71, 0.0
  %v520 = vmax.f32 %v72, 0.0
  %v521 = vmax.f32 %v73, 0.0
  %v522 = vmax.f32 %v74, 0.0
  %v523 = vmax.f32 %v75, 0.0
  %v524 = vmax.f32 %v76, 0.0
  %v525 = vmax.f32 %v77, 0.0
  %v526 = vmax.f32 %v78, 0.0
  %v527 = vmax.f32 %v79, 0.0
  %v528 = vmax.f32 %v80, 0.0
  %v529 = vmax.f32 %v81, 0.0
  %v530 = vmax.f32 %v82, 0.0
  %v531 = vmax.f32 %v83, 0.0
  %v532 = vmax.f32 %v84, 0.0
  %v533 = vmax.f32 %v85, 0.0
  %v534 = vmax.f32 %v86, 0.0
  %v535 = vmax.f32 %v87, 0.0
  %v536 = vmax.f32 %v88, 0.0
  %v537 = vmax.f32 %v89, 0.0
  %v538 = vmax.f32 %v90, 0.0
  %v539 = vmax.f32 %v91, 0.0
  %v540 = vmax.f32 %v92, 0.0
  %v541 = vmax.f32 %v93, 0.0
  %v542 = vmax.f32 %v94, 0.0
  %v543 = vmax.f32 %v95, 0.0
  %v544 = vmax.f32 %v96, 0.0
  %v545 = vmax.f32 %v97, 0.0
  %v546 = vmax.f32 %v98, 0.0
  %v547 = vmax.f32 %v99, 0.0
  %v548 = vmax.f32 %v100, 0.0
  %v549 = vmax.f32 %v101, 0.0
  %v550 = vmax.f32 %v102, 0.0
  %v551 = vmax.f32 %v103, 0.0
  %v552 = vmax.f32 %v104, 0.0
  %v553 = vmax.f32 %v105, 0.0
  %v554 = vmax.f32 %v106, 0.0
  %v555 = vmax.f32 %v107, 0.0
  %v556 = vmax.f32 %v108, 0.0
  %v557 = vmax.f32 %v109, 0.0
  %v558 = vmax.f32 %v110, 0.0
  %v559 = vmax.f32 %v111, 0.0
  %v560 = vmax.f32 %v112, 0.0
  %v561 = vmax.f32 %v113, 0.0
  %v562 = vmax.f32 %v114, 0.0
  %v563 = vmax.f32 %v115, 0.0
  %v564 = vmax.f32 %v116, 0.0
  %v565 = vmax.f32 %v117, 0.0
  %v566 = vmax.f32 %v118, 0.0
  %v567 = vmax.f32 %v119, 0.0
  %v568 = vmax.f32 %v120, 0.0
  %v569 = vmax.f32 %v121, 0.0
  %v570 = vmax.f32 %v122, 0.0
  %v571 = vmax.f32 %v123, 0.0
  %v572 = vmax.f32 %v124, 0.0
  %v573 = vmax.f32 %v125, 0.0
  %v574 = vmax.f32 %v126, 0.0
  %v575 = vmax.f32 %v127, 0.0
  %v576 = vmax.f32 %v128, 0.0
  %v577 = vmax.f32 %v129, 0.0
  %v578 = vmax.f32 %v130, 0.0
  %v579 = vmax.f32 %v131, 0.0
  %v580 = vmax.f32 %v132, 0.0
  %v581 = vmax.f32 %v133, 0.0
  %v582 = vmax.f32 %v134, 0.0
  %v583 = vmax.f32 %v135, 0.0
  %v584 = vmax.f32 %v136, 0.0
  %v585 = vmax.f32 %v137, 0.0
  %v586 = vmax.f32 %v138, 0.0
  %v587 = vmax.f32 %v139, 0.0
  %v588 = vmax.f32 %v140, 0.0
  %v589 = vmax.f32 %v141, 0.0
  %v590 = vmax.f32 %v142, 0.0
  %v591 = vmax.f32 %v143, 0.0
  %v592 = vmax.f32 %v144, 0.0
  %v593 = vmax.f32 %v145, 0.0
  %v594 = vmax.f32 %v146, 0.0
  %v595 = vmax.f32 %v147, 0.0
  %v596 = vmax.f32 %v148, 0.0
  %v597 = vmax.f32 %v149, 0.0
  %v598 = vmax.f32 %v150, 0.0
  %v599 = vmax.f32 %v151, 0.0
  %v600 = vmax.f32 %v152, 0.0
  %v601 = vmax.f32 %v153, 0.0
  %v602 = vmax.f32 %v154, 0.0
  %v603 = vmax.f32 %v155, 0.0
  %v604 = vmax.f32 %v156, 0.0
  %v605 = vmax.f32 %v157, 0.0
  %v606 = vmax.f32 %v158, 0.0
  %v607 = vmax.f32 %v159, 0.0
  %v608 = vmax.f32 %v160, 0.0
  %v609 = vmax.f32 %v161, 0.0
  %v610 = vmax.f32 %v162, 0.0
  %v611 = vmax.f32 %v163, 0.0
  %v612 = vmax.f32 %v164, 0.0
  %v613 = vmax.f32 %v165, 0.0
  %v614 = vmax.f32 %v166, 0.0
  %v615 = vmax.f32 %v167, 0.0
  %v616 = vmax.f32 %v168, 0.0
  %v617 = vmax.f32 %v169, 0.0
  %v618 = vmax.f32 %v170, 0.0
  %v619 = vmax.f32 %v171, 0.0
  %v620 = vmax.f32 %v172, 0.0
  %v621 = vmax.f32 %v173, 0.0
  %v622 = vmax.f32 %v174, 0.0
  %v623 = vmax.f32 %v175, 0.0
  %v624 = vmax.f32 %v176, 0.0
  %v625 = vmax.f32 %v177, 0.0
  %v626 = vmax.f32 %v178, 0.0
  %v627 = vmax.f32 %v179, 0.0
  %v628 = vmax.f32 %v180, 0.0
  %v629 = vmax.f32 %v181, 0.0
  %v630 = vmax.f32 %v182, 0.0
  %v631 = vmax.f32 %v183, 0.0
  %v632 = vmax.f32 %v184, 0.0
  %v633 = vmax.f32 %v185, 0.0
  %v634 = vmax.f32 %v186, 0.0
  %v635 = vmax.f32 %v187, 0.0
  %v636 = vmax.f32 %v188, 0.0
  %v637 = vmax.f32 %v189, 0.0
  %v638 = vmax.f32 %v190, 0.0
  %v639 = vmax.f32 %v191, 0.0
  %v640 = vmax.f32 %v192, 0.0
  %v641 = vmax.f32 %v193, 0.0
  %v642 = vmax.f32 %v194, 0.0
  %v643 = vmax.f32 %v195, 0.0
  %v644 = vmax.f32 %v196, 0.0
  %v645 = vmax.f32 %v197, 0.0
  %v646 = vmax.f32 %v198, 0.0
  %v647 = vmax.f32 %v199, 0.0
  %v648 = vmax.f32 %v200, 0.0
  %v649 = vmax.f32 %v201, 0.0
  %v650 = vmax.f32 %v202, 0.0
  %v651 = vmax.f32 %v203, 0.0
  %v652 = vmax.f32 %v204, 0.0
  %v653 = vmax.f32 %v205, 0.0
  %v654 = vmax.f32 %v206, 0.0
  %v655 = vmax.f32 %v207, 0.0
  %v656 = vmax.f32 %v208, 0.0
  %v657 = vmax.f32 %v209, 0.0
  %v658 = vmax.f32 %v210, 0.0
  %v659 = vmax.f32 %v211, 0.0
  %v660 = vmax.f32 %v212, 0.0
  %v661 = vmax.f32 %v213, 0.0
  %v662 = vmax.f32 %v214, 0.0
  %v663 = vmax.f32 %v215, 0.0
  %v664 = vmax.f32 %v216, 0.0
  %v665 = vmax.f32 %v217, 0.0
  %v666 = vmax.f32 %v218, 0.0
  %v667 = vmax.f32 %v219, 0.0
  %v668 = vmax.f32 %v220, 0.0
  %v669 = vmax.f32 %v221, 0.0
  %v670 = vmax.f32 %v222, 0.0
  %v671 = vmax.f32 %v223, 0.0
  %v672 = vmax.f32 %v224, 0.0
  %v673 = vmax.f32 %v225, 0.0
  %v674 = vmax.f32 %v226, 0.0
  %v675 = vmax.f32 %v227, 0.0
  %v676 = vmax.f32 %v228, 0.0
  %v677 = vmax.f32 %v229, 0.0
  %v678 = vmax.f32 %v230, 0.0
  %v679 = vmax.f32 %v231, 0.0
  %v680 = vmax.f32 %v232, 0.0
  %v681 = vmax.f32 %v233, 0.0
  %v682 = vmax.f32 %v234, 0.0
  %v683 = vmax.f32 %v235, 0.0
  %v684 = vmax.f32 %v236, 0.0
  %v685 = vmax.f32 %v237, 0.0
  %v686 = vmax.f32 %v238, 0.0
  %v687 = vmax.f32 %v239, 0.0
  %v688 = vmax.f32 %v240, 0.0
  %v689 = vmax.f32 %v241, 0.0
  %v690 = vmax.f32 %v242, 0.0
  %v691 = vmax.f32 %v243, 0.0
  %v692 = vmax.f32 %v244, 0.0
  %v693 = vmax.f32 %v245, 0.0
  %v694 = vmax.f32 %v246, 0.0
  %v695 = vmax.f32 %v247, 0.0
  %v696 = vmax.f32 %v248, 0.0
  %v697 = vmax.f32 %v249, 0.0
  %v698 = vmax.f32 %v250, 0.0
  %v699 = vmax.f32 %v251, 0.0
  %v700 = vmax.f32 %v252, 0.0
  %v701 = vmax.f32 %v253, 0.0
  %v702 = vmax.f32 %v254, 0.0
  %v703 = vmax.f32 %v255, 0.0
  %v704 = vmax.f32 %v256, 0.0
  %v705 = vmax.f32 %v257, 0.0
  %v706 = vmax.f32 %v258, 0.0
  %v707 = vmax.f32 %v259, 0.0
  %v708 = vmax.f32 %v260, 0.0
  %v709 = vmax.f32 %v261, 0.0
  %v710 = vmax.f32 %v262, 0.0
  %v711 = vmax.f32 %v263, 0.0
  %v712 = vmax.f32 %v264, 0.0
  %v713 = vmax.f32 %v265, 0.0
  %v714 = vmax.f32 %v266, 0.0
  %v715 = vmax.f32 %v267, 0.0
  %v716 = vmax.f32 %v268, 0.0
  %v717 = vmax.f32 %v269, 0.0
  %v718 = vmax.f32 %v270, 0.0
  %v719 = vmax.f32 %v271, 0.0
  %v720 = vmax.f32 %v272, 0.0
  %v721 = vmax.f32 %v273, 0.0
  %v722 = vmax.f32 %v274, 0.0
  %v723 = vmax.f32 %v275, 0.0
  %v724 = vmax.f32 %v276, 0.0
  %v725 = vmax.f32 %v277, 0.0
  %v726 = vmax.f32 %v278, 0.0
  %v727 = vmax.f32 %v279, 0.0
  %v728 = vmax.f32 %v280, 0.0
  %v729 = vmax.f32 %v281, 0.0
  %v730 = vmax.f32 %v282, 0.0
  %v731 = vmax.f32 %v283, 0.0
  %v732 = vmax.f32 %v284, 0.0
  %v733 = vmax.f32 %v285, 0.0
  %v734 = vmax.f32 %v286, 0.0
  %v735 = vmax.f32 %v287, 0.0
  %v736 = vmax.f32 %v288, 0.0
  %v737 = vmax.f32 %v289, 0.0
  %v738 = vmax.f32 %v290, 0.0
  %v739 = vmax.f32 %v291, 0.0
  %v740 = vmax.f32 %v292, 0.0
  %v741 = vmax.f32 %v293, 0.0
  %v742 = vmax.f32 %v294, 0.0
  %v743 = vmax.f32 %v295, 0.0
  %v744 = vmax.f32 %v296, 0.0
  %v745 = vmax.f32 %v297, 0.0
  %v746 = vmax.f32 %v298, 0.0
  %v747 = vmax.f32 %v299, 0.0
  %v748 = vmax.f32 %v300, 0.0
  %v749 = vmax.f32 %v301, 0.0
  %v750 = vmax.f32 %v302, 0.0
  %v751 = vmax.f32 %v303, 0.0
  %v752 = vmax.f32 %v304, 0.0
  %v753 = vmax.f32 %v305, 0.0
  %v754 = vmax.f32 %v306, 0.0
  %v755 = vmax.f32 %v307, 0.0
  %v756 = vmax.f32 %v308, 0.0
  %v757 = vmax.f32 %v309, 0.0
  %v758 = vmax.f32 %v310, 0.0
  %v759 = vmax.f32 %v311, 0.0
  %v760 = vmax.f32 %v312, 0.0
  %v761 = vmax.f32 %v313, 0.0
  %v762 = vmax.f32 %v314, 0.0
  %v763 = vmax.f32 %v315, 0.0
  %v764 = vmax.f32 %v316, 0.0
  %v765 = vmax.f32 %v317, 0.0
  %v766 = vmax.f32 %v318, 0.0
  %v767 = vmax.f32 %v319, 0.0
  %v768 = vmax.f32 %v320, 0.0
  %v769 = vmax.f32 %v321, 0.0
  %v770 = vmax.f32 %v322, 0.0
  %v771 = vmax.f32 %v323, 0.0
  %v772 = vmax.f32 %v324, 0.0
  %v773 = vmax.f32 %v325, 0.0
  %v774 = vmax.f32 %v326, 0.0
  %v775 = vmax.f32 %v327, 0.0
  %v776 = vmax.f32 %v328, 0.0
  %v777 = vmax.f32 %v329, 0.0
  %v778 = vmax.f32 %v330, 0.0
  %v779 = vmax.f32 %v331, 0.0
  %v780 = vmax.f32 %v332, 0.0
  %v781 = vmax.f32 %v333, 0.0
  %v782 = vmax.f32 %v334, 0.0
  %v783 = vmax.f32 %v335, 0.0
  %v784 = vmax.f32 %v336, 0.0
  %v785 = vmax.f32 %v337, 0.0
  %v786 = vmax.f32 %v338, 0.0
  %v787 = vmax.f32 %v339, 0.0
  %v788 = vmax.f32 %v340, 0.0
  %v789 = vmax.f32 %v341, 0.0
  %v790 = vmax.f32 %v342, 0.0
  %v791 = vmax.f32 %v343, 0.0
  %v792 = vmax.f32 %v344, 0.0
  %v793 = vmax.f32 %v345, 0.0
  %v794 = vmax.f32 %v346, 0.0
  %v795 = vmax.f32 %v347, 0.0
  %v796 = vmax.f32 %v348, 0.0
  %v797 = vmax.f32 %v349, 0.0
  %v798 = vmax.f32 %v350, 0.0
  %v799 = vmax.f32 %v351, 0.0
  %v800 = vmax.f32 %v352, 0.0
  %v801 = vmax.f32 %v353, 0.0
  %v802 = vmax.f32 %v354, 0.0
  %v803 = vmax.f32 %v355, 0.0
  %v804 = vmax.f32 %v356, 0.0
  %v805 = vmax.f32 %v357, 0.0
  %v806 = vmax.f32 %v358, 0.0
  %v807 = vmax.f32 %v359, 0.0
  %v808 = vmax.f32 %v360, 0.0
  %v809 = vmax.f32 %v361, 0.0
  %v810 = vmax.f32 %v362, 0.0
  %v811 = vmax.f32 %v363, 0.0
  %v812 = vmax.f32 %v364, 0.0
  %v813 = vmax.f32 %v365, 0.0
  %v814 = vmax.f32 %v366, 0.0
  %v815 = vmax.f32 %v367, 0.0
  %v816 = vmax.f32 %v368, 0.0
  %v817 = vmax.f32 %v369, 0.0
  %v818 = vmax.f32 %v370, 0.0
  %v819 = vmax.f32 %v371, 0.0
  %v820 = vmax.f32 %v372, 0.0
  %v821 = vmax.f32 %v373, 0.0
  %v822 = vmax.f32 %v374, 0.0
  %v823 = vmax.f32 %v375, 0.0
  %v824 = vmax.f32 %v376, 0.0
  %v825 = vmax.f32 %v377, 0.0
  %v826 = vmax.f32 %v378, 0.0
  %v827 = vmax.f32 %v379, 0.0
  %v828 = vmax.f32 %v380, 0.0
  %v829 = vmax.f32 %v381, 0.0
  %v830 = vmax.f32 %v382, 0.0
  %v831 = vmax.f32 %v383, 0.0
  %v832 = vmax.f32 %v384, 0.0
  %v833 = vmax.f32 %v385, 0.0
  %v834 = vmax.f32 %v386, 0.0
  %v835 = vmax.f32 %v387, 0.0
  %v836 = vmax.f32 %v388, 0.0
  %v837 = vmax.f32 %v389, 0.0
  %v838 = vmax.f32 %v390, 0.0
  %v839 = vmax.f32 %v391, 0.0
  %v840 = vmax.f32 %v392, 0.0
  %v841 = vmax.f32 %v393, 0.0
  %v842 = vmax.f32 %v394, 0.0
  %v843 = vmax.f32 %v395, 0.0
  %v844 = vmax.f32 %v396, 0.0
  %v845 = vmax.f32 %v397, 0.0
  %v846 = vmax.f32 %v398, 0.0
  %v847 = vmax.f32 %v399, 0.0
  %v848 = vmax.f32 %v400, 0.0
  %v849 = vmax.f32 %v401, 0.0
  %v850 = vmax.f32 %v402, 0.0
  %v851 = vmax.f32 %v403, 0.0
  %v852 = vmax.f32 %v404, 0.0
  %v853 = vmax.f32 %v405, 0.0
  %v854 = vmax.f32 %v406, 0.0
  %v855 = vmax.f32 %v407, 0.0
  %v856 = vmax.f32 %v408, 0.0
  %v857 = vmax.f32 %v409, 0.0
  %v858 = vmax.f32 %v410, 0.0
  %v859 = vmax.f32 %v411, 0.0
  %v860 = vmax.f32 %v412, 0.0
  %v861 = vmax.f32 %v413, 0.0
  %v862 = vmax.f32 %v414, 0.0
  %v863 = vmax.f32 %v415, 0.0
  %v864 = vmax.f32 %v416, 0.0
  %v865 = vmax.f32 %v417, 0.0
  %v866 = vmax.f32 %v418, 0.0
  %v867 = vmax.f32 %v419, 0.0
  %v868 = vmax.f32 %v420, 0.0
  %v869 = vmax.f32 %v421, 0.0
  %v870 = vmax.f32 %v422, 0.0
  %v871 = vmax.f32 %v423, 0.0
  %v872 = vmax.f32 %v424, 0.0
  %v873 = vmax.f32 %v425, 0.0
  %v874 = vmax.f32 %v426, 0.0
  %v875 = vmax.f32 %v427, 0.0
  %v876 = vmax.f32 %v428, 0.0
  %v877 = vmax.f32 %v429, 0.0
  %v878 = vmax.f32 %v430, 0.0
  %v879 = vmax.f32 %v431, 0.0
  %v880 = vmax.f32 %v432, 0.0
  %v881 = vmax.f32 %v433, 0.0
  %v882 = vmax.f32 %v434, 0.0
  %v883 = vmax.f32 %v435, 0.0
  %v884 = vmax.f32 %v436, 0.0
  %v885 = vmax.f32 %v437, 0.0
  %v886 = vmax.f32 %v438, 0.0
  %v887 = vmax.f32 %v439, 0.0
  %v888 = vmax.f32 %v440, 0.0
  %v889 = vmax.f32 %v441, 0.0
  %v890 = vmax.f32 %v442, 0.0
  %v891 = vmax.f32 %v443, 0.0
  %v892 = vmax.f32 %v444, 0.0
  %v893 = vmax.f32 %v445, 0.0
  %v894 = vmax.f32 %v446, 0.0
  %v895 = vmax.f32 %v447, 0.0
  %v896 = vmax.f32 %v448, 0.0
  %v897 = vmax.f32 %v449, 0.0
  %v898 = vmax.f32 %v450, 0.0
  %v899 = vmax.f32 %v451, 0.0
  %v900 = vmax.f32 %v452, 0.0
  %v901 = vmax.f32 %v453, 0.0
  %v902 = vmax.f32 %v454, 0.0
  %v903 = vmax.f32 %v455, 0.0
  %v904 = vmax.f32 %v456, 0.0
  %v905 = vmax.f32 %v457, 0.0
  %v906 = vmax.f32 %v458, 0.0
  %v907 = vmax.f32 %v459, 0.0
  %v908 = vmax.f32 %v460, 0.0
  %v909 = vmax.f32 %v461, 0.0
  %v910 = vpack.c.bf16 %v469, %v462
  %v911 = vpack.c.bf16 %v470, %v463
  %v912 = vpack.c.bf16 %v471, %v464
  %v913 = vpack.c.bf16 %v472, %v465
  %v914 = vpack.c.bf16 %v473, %v466
  %v915 = vpack.c.bf16 %v474, %v467
  %v916 = vpack.c.bf16 %v475, %v468
  %v917 = vpack.c.bf16 %v483, %v476
  %v918 = vpack.c.bf16 %v484, %v477
  %v919 = vpack.c.bf16 %v485, %v478
  %v920 = vpack.c.bf16 %v486, %v479
  %v921 = vpack.c.bf16 %v487, %v480
  %v922 = vpack.c.bf16 %v488, %v481
  %v923 = vpack.c.bf16 %v489, %v482
  %v924 = vpack.c.bf16 %v497, %v490
  %v925 = vpack.c.bf16 %v498, %v491
  %v926 = vpack.c.bf16 %v499, %v492
  %v927 = vpack.c.bf16 %v500, %v493
  %v928 = vpack.c.bf16 %v501, %v494
  %v929 = vpack.c.bf16 %v502, %v495
  %v930 = vpack.c.bf16 %v503, %v496
  %v931 = vpack.c.bf16 %v511, %v504
  %v932 = vpack.c.bf16 %v512, %v505
  %v933 = vpack.c.bf16 %v513, %v506
  %v934 = vpack.c.bf16 %v514, %v507
  %v935 = vpack.c.bf16 %v515, %v508
  %v936 = vpack.c.bf16 %v516, %v509
  %v937 = vpack.c.bf16 %v517, %v510
  %v938 = vpack.c.bf16 %v525, %v518
  %v939 = vpack.c.bf16 %v526, %v519
  %v940 = vpack.c.bf16 %v527, %v520
  %v941 = vpack.c.bf16 %v528, %v521
  %v942 = vpack.c.bf16 %v529, %v522
  %v943 = vpack.c.bf16 %v530, %v523
  %v944 = vpack.c.bf16 %v531, %v524
  %v945 = vpack.c.bf16 %v539, %v532
  %v946 = vpack.c.bf16 %v540, %v533
  %v947 = vpack.c.bf16 %v541, %v534
  %v948 = vpack.c.bf16 %v542, %v535
  %v949 = vpack.c.bf16 %v543, %v536
  %v950 = vpack.c.bf16 %v544, %v537
  %v951 = vpack.c.bf16 %v545, %v538
  %v952 = vpack.c.bf16 %v553, %v546
  %v953 = vpack.c.bf16 %v554, %v547
  %v954 = vpack.c.bf16 %v555, %v548
  %v955 = vpack.c.bf16 %v556, %v549
  %v956 = vpack.c.bf16 %v557, %v550
  %v957 = vpack.c.bf16 %v558, %v551
  %v958 = vpack.c.bf16 %v559, %v552
  %v959 = vpack.c.bf16 %v567, %v560
  %v960 = vpack.c.bf16 %v568, %v561
  %v961 = vpack.c.bf16 %v569, %v562
  %v962 = vpack.c.bf16 %v570, %v563
  %v963 = vpack.c.bf16 %v571, %v564
  %v964 = vpack.c.bf16 %v572, %v565
  %v965 = vpack.c.bf16 %v573, %v566
  %v966 = vpack.c.bf16 %v581, %v574
  %v967 = vpack.c.bf16 %v582, %v575
  %v968 = vpack.c.bf16 %v583, %v576
  %v969 = vpack.c.bf16 %v584, %v577
  %v970 = vpack.c.bf16 %v585, %v578
  %v971 = vpack.c.bf16 %v586, %v579
  %v972 = vpack.c.bf16 %v587, %v580
  %v973 = vpack.c.bf16 %v595, %v588
  %v974 = vpack.c.bf16 %v596, %v589
  %v975 = vpack.c.bf16 %v597, %v590
  %v976 = vpack.c.bf16 %v598, %v591
  %v977 = vpack.c.bf16 %v599, %v592
  %v978 = vpack.c.bf16 %v600, %v593
  %v979 = vpack.c.bf16 %v601, %v594
  %v980 = vpack.c.bf16 %v609, %v602
  %v981 = vpack.c.bf16 %v610, %v603
  %v982 = vpack.c.bf16 %v611, %v604
  %v983 = vpack.c.bf16 %v612, %v605
  %v984 = vpack.c.bf16 %v613, %v606
  %v985 = vpack.c.bf16 %v614, %v607
  %v986 = vpack.c.bf16 %v615, %v608
  %v987 = vpack.c.bf16 %v623, %v616
  %v988 = vpack.c.bf16 %v624, %v617
  %v989 = vpack.c.bf16 %v625, %v618
  %v990 = vpack.c.bf16 %v626, %v619
  %v991 = vpack.c.bf16 %v627, %v620
  %v992 = vpack.c.bf16 %v628, %v621
  %v993 = vpack.c.bf16 %v629, %v622
  %v994 = vpack.c.bf16 %v637, %v630
  %v995 = vpack.c.bf16 %v638, %v631
  %v996 = vpack.c.bf16 %v639, %v632
  %v997 = vpack.c.bf16 %v640, %v633
  %v998 = vpack.c.bf16 %v641, %v634
  %v999 = vpack.c.bf16 %v642, %v635
  %v1000 = vpack.c.bf16 %v643, %v636
  %v1001 = vpack.c.bf16 %v651, %v644
  %v1002 = vpack.c.bf16 %v652, %v645
  %v1003 = vpack.c.bf16 %v653, %v646
  %v1004 = vpack.c.bf16 %v654, %v647
  %v1005 = vpack.c.bf16 %v655, %v648
  %v1006 = vpack.c.bf16 %v656, %v649
  %v1007 = vpack.c.bf16 %v657, %v650
  %v1008 = vpack.c.bf16 %v665, %v658
  %v1009 = vpack.c.bf16 %v666, %v659
  %v1010 = vpack.c.bf16 %v667, %v660
  %v1011 = vpack.c.bf16 %v668, %v661
  %v1012 = vpack.c.bf16 %v669, %v662
  %v1013 = vpack.c.bf16 %v670, %v663
  %v1014 = vpack.c.bf16 %v671, %v664
  %v1015 = vpack.c.bf16 %v679, %v672
  %v1016 = vpack.c.bf16 %v680, %v673
  %v1017 = vpack.c.bf16 %v681, %v674
  %v1018 = vpack.c.bf16 %v682, %v675
  %v1019 = vpack.c.bf16 %v683, %v676
  %v1020 = vpack.c.bf16 %v684, %v677
  %v1021 = vpack.c.bf16 %v685, %v678
  %v1022 = vpack.c.bf16 %v693, %v686
  %v1023 = vpack.c.bf16 %v694, %v687
  %v1024 = vpack.c.bf16 %v695, %v688
  %v1025 = vpack.c.bf16 %v696, %v689
  %v1026 = vpack.c.bf16 %v697, %v690
  %v1027 = vpack.c.bf16 %v698, %v691
  %v1028 = vpack.c.bf16 %v699, %v692
  %v1029 = vpack.c.bf16 %v707, %v700
  %v1030 = vpack.c.bf16 %v708, %v701
  %v1031 = vpack.c.bf16 %v709, %v702
  %v1032 = vpack.c.bf16 %v710, %v703
  %v1033 = vpack.c.bf16 %v711, %v704
  %v1034 = vpack.c.bf16 %v712, %v705
  %v1035 = vpack.c.bf16 %v713, %v706
  %v1036 = vpack.c.bf16 %v721, %v714
  %v1037 = vpack.c.bf16 %v722, %v715
  %v1038 = vpack.c.bf16 %v723, %v716
  %v1039 = vpack.c.bf16 %v724, %v717
  %v1040 = vpack.c.bf16 %v725, %v718
  %v1041 = vpack.c.bf16 %v726, %v719
  %v1042 = vpack.c.bf16 %v727, %v720
  %v1043 = vpack.c.bf16 %v735, %v728
  %v1044 = vpack.c.bf16 %v736, %v729
  %v1045 = vpack.c.bf16 %v737, %v730
  %v1046 = vpack.c.bf16 %v738, %v731
  %v1047 = vpack.c.bf16 %v739, %v732
  %v1048 = vpack.c.bf16 %v740, %v733
  %v1049 = vpack.c.bf16 %v741, %v734
  %v1050 = vpack.c.bf16 %v749, %v742
  %v1051 = vpack.c.bf16 %v750, %v743
  %v1052 = vpack.c.bf16 %v751, %v744
  %v1053 = vpack.c.bf16 %v752, %v745
  %v1054 = vpack.c.bf16 %v753, %v746
  %v1055 = vpack.c.bf16 %v754, %v747
  %v1056 = vpack.c.bf16 %v755, %v748
  %v1057 = vpack.c.bf16 %v763, %v756
  %v1058 = vpack.c.bf16 %v764, %v757
  %v1059 = vpack.c.bf16 %v765, %v758
  %v1060 = vpack.c.bf16 %v766, %v759
  %v1061 = vpack.c.bf16 %v767, %v760
  %v1062 = vpack.c.bf16 %v768, %v761
  %v1063 = vpack.c.bf16 %v769, %v762
  %v1064 = vpack.c.bf16 %v777, %v770
  %v1065 = vpack.c.bf16 %v778, %v771
  %v1066 = vpack.c.bf16 %v779, %v772
  %v1067 = vpack.c.bf16 %v780, %v773
  %v1068 = vpack.c.bf16 %v781, %v774
  %v1069 = vpack.c.bf16 %v782, %v775
  %v1070 = vpack.c.bf16 %v783, %v776
  %v1071 = vpack.c.bf16 %v791, %v784
  %v1072 = vpack.c.bf16 %v792, %v785
  %v1073 = vpack.c.bf16 %v793, %v786
  %v1074 = vpack.c.bf16 %v794, %v787
  %v1075 = vpack.c.bf16 %v795, %v788
  %v1076 = vpack.c.bf16 %v796, %v789
  %v1077 = vpack.c.bf16 %v797, %v790
  %v1078 = vpack.c.bf16 %v805, %v798
  %v1079 = vpack.c.bf16 %v806, %v799
  %v1080 = vpack.c.bf16 %v807, %v800
  %v1081 = vpack.c.bf16 %v808, %v801
  %v1082 = vpack.c.bf16 %v809, %v802
  %v1083 = vpack.c.bf16 %v810, %v803
  %v1084 = vpack.c.bf16 %v811, %v804
  %v1085 = vpack.c.bf16 %v819, %v812
  %v1086 = vpack.c.bf16 %v820, %v813
  %v1087 = vpack.c.bf16 %v821, %v814
  %v1088 = vpack.c.bf16 %v822, %v815
  %v1089 = vpack.c.bf16 %v823, %v816
  %v1090 = vpack.c.bf16 %v824, %v817
  %v1091 = vpack.c.bf16 %v825, %v818
  %v1092 = vpack.c.bf16 %v833, %v826
  %v1093 = vpack.c.bf16 %v834, %v827
  %v1094 = vpack.c.bf16 %v835, %v828
  %v1095 = vpack.c.bf16 %v836, %v829
  %v1096 = vpack.c.bf16 %v837, %v830
  %v1097 = vpack.c.bf16 %v838, %v831
  %v1098 = vpack.c.bf16 %v839, %v832
  %v1099 = vpack.c.bf16 %v847, %v840
  %v1100 = vpack.c.bf16 %v848, %v841
  %v1101 = vpack.c.bf16 %v849, %v842
  %v1102 = vpack.c.bf16 %v850, %v843
  %v1103 = vpack.c.bf16 %v851, %v844
  %v1104 = vpack.c.bf16 %v852, %v845
  %v1105 = vpack.c.bf16 %v853, %v846
  %v1106 = vpack.c.bf16 %v861, %v854
  %v1107 = vpack.c.bf16 %v862, %v855
  %v1108 = vpack.c.bf16 %v863, %v856
  %v1109 = vpack.c.bf16 %v864, %v857
  %v1110 = vpack.c.bf16 %v865, %v858
  %v1111 = vpack.c.bf16 %v866, %v859
  %v1112 = vpack.c.bf16 %v867, %v860
  %v1113 = vpack.c.bf16 %v875, %v868
  %v1114 = vpack.c.bf16 %v876, %v869
  %v1115 = vpack.c.bf16 %v877, %v870
  %v1116 = vpack.c.bf16 %v878, %v871
  %v1117 = vpack.c.bf16 %v879, %v872
  %v1118 = vpack.c.bf16 %v880, %v873
  %v1119 = vpack.c.bf16 %v881, %v874
  %v1120 = vpack.c.bf16 %v889, %v882
  %v1121 = vpack.c.bf16 %v890, %v883
  %v1122 = vpack.c.bf16 %v891, %v884
  %v1123 = vpack.c.bf16 %v892, %v885
  %v1124 = vpack.c.bf16 %v893, %v886
  %v1125 = vpack.c.bf16 %v894, %v887
  %v1126 = vpack.c.bf16 %v895, %v888
  %v1127 = vpack.c.bf16 %v903, %v896
  %v1128 = vpack.c.bf16 %v904, %v897
  %v1129 = vpack.c.bf16 %v905, %v898
  %v1130 = vpack.c.bf16 %v906, %v899
  %v1131 = vpack.c.bf16 %v907, %v900
  %v1132 = vpack.c.bf16 %v908, %v901
  %v1133 = vpack.c.bf16 %v909, %v902
  %v1134 = vld [vmem:[%s1] sm:$0xff]
  %v1135 = vld [vmem:[%s1 + $0x8] sm:$0xff]
  %v1136 = vld [vmem:[%s1 + $0x10] sm:$0xff]
  %v1137 = vld [vmem:[%s1 + $0x18] sm:$0xff]
  %v1138 = vld [vmem:[%s1 + $0x20] sm:$0xff]
  %v1139 = vld [vmem:[%s1 + $0x28] sm:$0xff]
  %v1140 = vld [vmem:[%s1 + $0x30] sm:$0xff]
  %v1141 = vld [vmem:[%s1 + $0x38] sm:$0xff]
  %v1142 = vld [vmem:[%s1 + $0x40] sm:$0xff]
  %v1143 = vld [vmem:[%s1 + $0x48] sm:$0xff]
  %v1144 = vld [vmem:[%s1 + $0x50] sm:$0xff]
  %v1145 = vld [vmem:[%s1 + $0x58] sm:$0xff]
  %v1146 = vld [vmem:[%s1 + $0x60] sm:$0xff]
  %v1147 = vld [vmem:[%s1 + $0x68] sm:$0xff]
  %v1148 = vld [vmem:[%s1 + $0x70] sm:$0xff]
  %v1149 = vld [vmem:[%s1 + $0x78] sm:$0xff]
  %v1150 = vld [vmem:[%s1 + $0x80] sm:$0xff]
  %v1151 = vld [vmem:[%s1 + $0x88] sm:$0xff]
  %v1152 = vld [vmem:[%s1 + $0x90] sm:$0xff]
  %v1153 = vld [vmem:[%s1 + $0x98] sm:$0xff]
  %v1154 = vld [vmem:[%s1 + $0xa0] sm:$0xff]
  %v1155 = vld [vmem:[%s1 + $0xa8] sm:$0xff]
  %v1156 = vld [vmem:[%s1 + $0xb0] sm:$0xff]
  %v1157 = vld [vmem:[%s1 + $0xb8] sm:$0xff]
  %v1158 = vld [vmem:[%s1 + $0xc0] sm:$0xff]
  %v1159 = vld [vmem:[%s1 + $0xc8] sm:$0xff]
  %v1160 = vld [vmem:[%s1 + $0xd0] sm:$0xff]
  %v1161 = vld [vmem:[%s1 + $0xd8] sm:$0xff]
  %v1162 = vld [vmem:[%s1 + $0xe0] sm:$0xff]
  %v1163 = vld [vmem:[%s1 + $0xe8] sm:$0xff]
  %v1164 = vld [vmem:[%s1 + $0xf0] sm:$0xff]
  %v1165 = vld [vmem:[%s1 + $0xf8] sm:$0xff]
  %v1198 = vunpack.c.l.b16 %v1134
  %v1199 = vunpack.c.h.b16 %v1134
  %v1200 = vunpack.c.l.b16 %v1135
  %v1201 = vunpack.c.h.b16 %v1135
  %v1202 = vunpack.c.l.b16 %v1136
  %v1203 = vunpack.c.h.b16 %v1136
  %v1204 = vunpack.c.l.b16 %v1137
  %v1205 = vunpack.c.h.b16 %v1137
  %v1206 = vunpack.c.l.b16 %v1138
  %v1207 = vunpack.c.h.b16 %v1138
  %v1208 = vunpack.c.l.b16 %v1139
  %v1209 = vunpack.c.h.b16 %v1139
  %v1210 = vunpack.c.l.b16 %v1140
  %v1211 = vunpack.c.h.b16 %v1140
  %v1212 = vunpack.c.l.b16 %v1141
  %v1213 = vunpack.c.h.b16 %v1141
  %v1214 = vunpack.c.l.b16 %v1142
  %v1215 = vunpack.c.h.b16 %v1142
  %v1216 = vunpack.c.l.b16 %v1143
  %v1217 = vunpack.c.h.b16 %v1143
  %v1218 = vunpack.c.l.b16 %v1144
  %v1219 = vunpack.c.h.b16 %v1144
  %v1220 = vunpack.c.l.b16 %v1145
  %v1221 = vunpack.c.h.b16 %v1145
  %v1222 = vunpack.c.l.b16 %v1146
  %v1223 = vunpack.c.h.b16 %v1146
  %v1224 = vunpack.c.l.b16 %v1147
  %v1225 = vunpack.c.h.b16 %v1147
  %v1226 = vunpack.c.l.b16 %v1148
  %v1227 = vunpack.c.h.b16 %v1148
  %v1228 = vunpack.c.l.b16 %v1149
  %v1229 = vunpack.c.h.b16 %v1149
  %v1230 = vunpack.c.l.b16 %v1150
  %v1231 = vunpack.c.h.b16 %v1150
  %v1232 = vunpack.c.l.b16 %v1151
  %v1233 = vunpack.c.h.b16 %v1151
  %v1234 = vunpack.c.l.b16 %v1152
  %v1235 = vunpack.c.h.b16 %v1152
  %v1236 = vunpack.c.l.b16 %v1153
  %v1237 = vunpack.c.h.b16 %v1153
  %v1238 = vunpack.c.l.b16 %v1154
  %v1239 = vunpack.c.h.b16 %v1154
  %v1240 = vunpack.c.l.b16 %v1155
  %v1241 = vunpack.c.h.b16 %v1155
  %v1242 = vunpack.c.l.b16 %v1156
  %v1243 = vunpack.c.h.b16 %v1156
  %v1244 = vunpack.c.l.b16 %v1157
  %v1245 = vunpack.c.h.b16 %v1157
  %v1246 = vunpack.c.l.b16 %v1158
  %v1247 = vunpack.c.h.b16 %v1158
  %v1248 = vunpack.c.l.b16 %v1159
  %v1249 = vunpack.c.h.b16 %v1159
  %v1250 = vunpack.c.l.b16 %v1160
  %v1251 = vunpack.c.h.b16 %v1160
  %v1252 = vunpack.c.l.b16 %v1161
  %v1253 = vunpack.c.h.b16 %v1161
  %v1254 = vunpack.c.l.b16 %v1162
  %v1255 = vunpack.c.h.b16 %v1162
  %v1256 = vunpack.c.l.b16 %v1163
  %v1257 = vunpack.c.h.b16 %v1163
  %v1258 = vunpack.c.l.b16 %v1164
  %v1259 = vunpack.c.h.b16 %v1164
  %v1260 = vunpack.c.l.b16 %v1165
  %v1261 = vunpack.c.h.b16 %v1165
  %v1262 = vpack.c.b16 %v1202, %v1198
  %v1263 = vpack.c.b16 %v1203, %v1199
  %v1264 = vpack.c.b16 %v1204, %v1200
  %v1265 = vpack.c.b16 %v1205, %v1201
  %v1266 = vpack.c.b16 %v1210, %v1206
  %v1267 = vpack.c.b16 %v1211, %v1207
  %v1268 = vpack.c.b16 %v1212, %v1208
  %v1269 = vpack.c.b16 %v1213, %v1209
  %v1270 = vpack.c.b16 %v1218, %v1214
  %v1271 = vpack.c.b16 %v1219, %v1215
  %v1272 = vpack.c.b16 %v1220, %v1216
  %v1273 = vpack.c.b16 %v1221, %v1217
  %v1274 = vpack.c.b16 %v1226, %v1222
  %v1275 = vpack.c.b16 %v1227, %v1223
  %v1276 = vpack.c.b16 %v1228, %v1224
  %v1277 = vpack.c.b16 %v1229, %v1225
  %v1278 = vpack.c.b16 %v1234, %v1230
  %v1279 = vpack.c.b16 %v1235, %v1231
  %v1280 = vpack.c.b16 %v1236, %v1232
  %v1281 = vpack.c.b16 %v1237, %v1233
  %v1282 = vpack.c.b16 %v1242, %v1238
  %v1283 = vpack.c.b16 %v1243, %v1239
  %v1284 = vpack.c.b16 %v1244, %v1240
  %v1285 = vpack.c.b16 %v1245, %v1241
  %v1286 = vpack.c.b16 %v1250, %v1246
  %v1287 = vpack.c.b16 %v1251, %v1247
  %v1288 = vpack.c.b16 %v1252, %v1248
  %v1289 = vpack.c.b16 %v1253, %v1249
  %v1290 = vpack.c.b16 %v1258, %v1254
  %v1291 = vpack.c.b16 %v1259, %v1255
  %v1292 = vpack.c.b16 %v1260, %v1256
  %v1293 = vpack.c.b16 %v1261, %v1257
  %1326 = vmatpush.bf16.msra.mxu0 %v959
  %1327 = vmatpush.bf16.msra.mxu0 %v952
  %1328 = vmatpush.bf16.msra.mxu0 %v945
  %1329 = vmatpush.bf16.msra.mxu0 %v938
  %1330 = vmatpush.bf16.msra.mxu0 %v931
  %1331 = vmatpush.bf16.msra.mxu0 %v924
  %1332 = vmatpush.bf16.msra.mxu0 %v917
  %1333 = vmatpush.bf16.msra.mxu0 %v910
  %1334 = vmatmul.bf16.gmra.mxu0 %v1262
  %v1335 = vpop.f32.mrf.mxu0
  %v1336 = vadd.f32 0.0, %v1335
  %v1337 = vpop.f32.mrf.mxu0
  %v1338 = vadd.f32 0.0, %v1337
  %1339 = vmatmul.bf16.gmra.mxu0 %v1266
  %v1340 = vpop.f32.mrf.mxu0
  %v1341 = vadd.f32 0.0, %v1340
  %v1342 = vpop.f32.mrf.mxu0
  %v1343 = vadd.f32 0.0, %v1342
  %1344 = vmatmul.bf16.gmra.mxu0 %v1270
  %v1345 = vpop.f32.mrf.mxu0
  %v1346 = vadd.f32 0.0, %v1345
  %v1347 = vpop.f32.mrf.mxu0
  %v1348 = vadd.f32 0.0, %v1347
  %1349 = vmatmul.bf16.gmra.mxu0 %v1274
  %v1350 = vpop.f32.mrf.mxu0
  %v1351 = vadd.f32 0.0, %v1350
  %v1352 = vpop.f32.mrf.mxu0
  %v1353 = vadd.f32 0.0, %v1352
  %1354 = vmatmul.bf16.gmra.mxu0 %v1278
  %v1355 = vpop.f32.mrf.mxu0
  %v1356 = vadd.f32 0.0, %v1355
  %v1357 = vpop.f32.mrf.mxu0
  %v1358 = vadd.f32 0.0, %v1357
  %1359 = vmatmul.bf16.gmra.mxu0 %v1282
  %v1360 = vpop.f32.mrf.mxu0
  %v1361 = vadd.f32 0.0, %v1360
  %v1362 = vpop.f32.mrf.mxu0
  %v1363 = vadd.f32 0.0, %v1362
  %1364 = vmatmul.bf16.gmra.mxu0 %v1286
  %v1365 = vpop.f32.mrf.mxu0
  %v1366 = vadd.f32 0.0, %v1365
  %v1367 = vpop.f32.mrf.mxu0
  %v1368 = vadd.f32 0.0, %v1367
  %1369 = vmatmul.bf16.gmra.mxu0 %v1290
  %v1370 = vpop.f32.mrf.mxu0
  %v1371 = vadd.f32 0.0, %v1370
  %v1372 = vpop.f32.mrf.mxu0
  %v1373 = vadd.f32 0.0, %v1372
  %1374 = vdwg.mxu0
  %1375 = vmatpush.bf16.msra.mxu0 %v1015
  %1376 = vmatpush.bf16.msra.mxu0 %v1008
  %1377 = vmatpush.bf16.msra.mxu0 %v1001
  %1378 = vmatpush.bf16.msra.mxu0 %v994
  %1379 = vmatpush.bf16.msra.mxu0 %v987
  %1380 = vmatpush.bf16.msra.mxu0 %v980
  %1381 = vmatpush.bf16.msra.mxu0 %v973
  %1382 = vmatpush.bf16.msra.mxu0 %v966
  %1383 = vmatmul.bf16.gmra.mxu0 %v1263
  %v1384 = vpop.f32.mrf.mxu0
  %v1385 = vadd.f32 %v1336, %v1384
  %v1386 = vpop.f32.mrf.mxu0
  %v1387 = vadd.f32 %v1338, %v1386
  %1388 = vmatmul.bf16.gmra.mxu0 %v1267
  %v1389 = vpop.f32.mrf.mxu0
  %v1390 = vadd.f32 %v1341, %v1389
  %v1391 = vpop.f32.mrf.mxu0
  %v1392 = vadd.f32 %v1343, %v1391
  %1393 = vmatmul.bf16.gmra.mxu0 %v1271
  %v1394 = vpop.f32.mrf.mxu0
  %v1395 = vadd.f32 %v1346, %v1394
  %v1396 = vpop.f32.mrf.mxu0
  %v1397 = vadd.f32 %v1348, %v1396
  %1398 = vmatmul.bf16.gmra.mxu0 %v1275
  %v1399 = vpop.f32.mrf.mxu0
  %v1400 = vadd.f32 %v1351, %v1399
  %v1401 = vpop.f32.mrf.mxu0
  %v1402 = vadd.f32 %v1353, %v1401
  %1403 = vmatmul.bf16.gmra.mxu0 %v1279
  %v1404 = vpop.f32.mrf.mxu0
  %v1405 = vadd.f32 %v1356, %v1404
  %v1406 = vpop.f32.mrf.mxu0
  %v1407 = vadd.f32 %v1358, %v1406
  %1408 = vmatmul.bf16.gmra.mxu0 %v1283
  %v1409 = vpop.f32.mrf.mxu0
  %v1410 = vadd.f32 %v1361, %v1409
  %v1411 = vpop.f32.mrf.mxu0
  %v1412 = vadd.f32 %v1363, %v1411
  %1413 = vmatmul.bf16.gmra.mxu0 %v1287
  %v1414 = vpop.f32.mrf.mxu0
  %v1415 = vadd.f32 %v1366, %v1414
  %v1416 = vpop.f32.mrf.mxu0
  %v1417 = vadd.f32 %v1368, %v1416
  %1418 = vmatmul.bf16.gmra.mxu0 %v1291
  %v1419 = vpop.f32.mrf.mxu0
  %v1420 = vadd.f32 %v1371, %v1419
  %v1421 = vpop.f32.mrf.mxu0
  %v1422 = vadd.f32 %v1373, %v1421
  %1423 = vdwg.mxu0
  %1424 = vmatpush.bf16.msra.mxu0 %v1071
  %1425 = vmatpush.bf16.msra.mxu0 %v1064
  %1426 = vmatpush.bf16.msra.mxu0 %v1057
  %1427 = vmatpush.bf16.msra.mxu0 %v1050
  %1428 = vmatpush.bf16.msra.mxu0 %v1043
  %1429 = vmatpush.bf16.msra.mxu0 %v1036
  %1430 = vmatpush.bf16.msra.mxu0 %v1029
  %1431 = vmatpush.bf16.msra.mxu0 %v1022
  %1432 = vmatmul.bf16.gmra.mxu0 %v1264
  %v1433 = vpop.f32.mrf.mxu0
  %v1434 = vadd.f32 %v1385, %v1433
  %v1435 = vpop.f32.mrf.mxu0
  %v1436 = vadd.f32 %v1387, %v1435
  %1437 = vmatmul.bf16.gmra.mxu0 %v1268
  %v1438 = vpop.f32.mrf.mxu0
  %v1439 = vadd.f32 %v1390, %v1438
  %v1440 = vpop.f32.mrf.mxu0
  %v1441 = vadd.f32 %v1392, %v1440
  %1442 = vmatmul.bf16.gmra.mxu0 %v1272
  %v1443 = vpop.f32.mrf.mxu0
  %v1444 = vadd.f32 %v1395, %v1443
  %v1445 = vpop.f32.mrf.mxu0
  %v1446 = vadd.f32 %v1397, %v1445
  %1447 = vmatmul.bf16.gmra.mxu0 %v1276
  %v1448 = vpop.f32.mrf.mxu0
  %v1449 = vadd.f32 %v1400, %v1448
  %v1450 = vpop.f32.mrf.mxu0
  %v1451 = vadd.f32 %v1402, %v1450
  %1452 = vmatmul.bf16.gmra.mxu0 %v1280
  %v1453 = vpop.f32.mrf.mxu0
  %v1454 = vadd.f32 %v1405, %v1453
  %v1455 = vpop.f32.mrf.mxu0
  %v1456 = vadd.f32 %v1407, %v1455
  %1457 = vmatmul.bf16.gmra.mxu0 %v1284
  %v1458 = vpop.f32.mrf.mxu0
  %v1459 = vadd.f32 %v1410, %v1458
  %v1460 = vpop.f32.mrf.mxu0
  %v1461 = vadd.f32 %v1412, %v1460
  %1462 = vmatmul.bf16.gmra.mxu0 %v1288
  %v1463 = vpop.f32.mrf.mxu0
  %v1464 = vadd.f32 %v1415, %v1463
  %v1465 = vpop.f32.mrf.mxu0
  %v1466 = vadd.f32 %v1417, %v1465
  %1467 = vmatmul.bf16.gmra.mxu0 %v1292
  %v1468 = vpop.f32.mrf.mxu0
  %v1469 = vadd.f32 %v1420, %v1468
  %v1470 = vpop.f32.mrf.mxu0
  %v1471 = vadd.f32 %v1422, %v1470
  %1472 = vdwg.mxu0
  %1473 = vmatpush.bf16.msra.mxu0 %v1127
  %1474 = vmatpush.bf16.msra.mxu0 %v1120
  %1475 = vmatpush.bf16.msra.mxu0 %v1113
  %1476 = vmatpush.bf16.msra.mxu0 %v1106
  %1477 = vmatpush.bf16.msra.mxu0 %v1099
  %1478 = vmatpush.bf16.msra.mxu0 %v1092
  %1479 = vmatpush.bf16.msra.mxu0 %v1085
  %1480 = vmatpush.bf16.msra.mxu0 %v1078
  %1481 = vmatmul.bf16.gmra.mxu0 %v1265
  %v1482 = vpop.f32.mrf.mxu0
  %v1483 = vadd.f32 %v1434, %v1482
  %v1484 = vpop.f32.mrf.mxu0
  %v1485 = vadd.f32 %v1436, %v1484
  %1486 = vmatmul.bf16.gmra.mxu0 %v1269
  %v1487 = vpop.f32.mrf.mxu0
  %v1488 = vadd.f32 %v1439, %v1487
  %v1489 = vpop.f32.mrf.mxu0
  %v1490 = vadd.f32 %v1441, %v1489
  %1491 = vmatmul.bf16.gmra.mxu0 %v1273
  %v1492 = vpop.f32.mrf.mxu0
  %v1493 = vadd.f32 %v1444, %v1492
  %v1494 = vpop.f32.mrf.mxu0
  %v1495 = vadd.f32 %v1446, %v1494
  %1496 = vmatmul.bf16.gmra.mxu0 %v1277
  %v1497 = vpop.f32.mrf.mxu0
  %v1498 = vadd.f32 %v1449, %v1497
  %v1499 = vpop.f32.mrf.mxu0
  %v1500 = vadd.f32 %v1451, %v1499
  %1501 = vmatmul.bf16.gmra.mxu0 %v1281
  %v1502 = vpop.f32.mrf.mxu0
  %v1503 = vadd.f32 %v1454, %v1502
  %v1504 = vpop.f32.mrf.mxu0
  %v1505 = vadd.f32 %v1456, %v1504
  %1506 = vmatmul.bf16.gmra.mxu0 %v1285
  %v1507 = vpop.f32.mrf.mxu0
  %v1508 = vadd.f32 %v1459, %v1507
  %v1509 = vpop.f32.mrf.mxu0
  %v1510 = vadd.f32 %v1461, %v1509
  %1511 = vmatmul.bf16.gmra.mxu0 %v1289
  %v1512 = vpop.f32.mrf.mxu0
  %v1513 = vadd.f32 %v1464, %v1512
  %v1514 = vpop.f32.mrf.mxu0
  %v1515 = vadd.f32 %v1466, %v1514
  %1516 = vmatmul.bf16.gmra.mxu0 %v1293
  %v1517 = vpop.f32.mrf.mxu0
  %v1518 = vadd.f32 %v1469, %v1517
  %v1519 = vpop.f32.mrf.mxu0
  %v1520 = vadd.f32 %v1471, %v1519
  %1521 = vdwg.mxu0
  %1522 = vmatpush.bf16.msra.mxu0 %v960
  %1523 = vmatpush.bf16.msra.mxu0 %v953
  %1524 = vmatpush.bf16.msra.mxu0 %v946
  %1525 = vmatpush.bf16.msra.mxu0 %v939
  %1526 = vmatpush.bf16.msra.mxu0 %v932
  %1527 = vmatpush.bf16.msra.mxu0 %v925
  %1528 = vmatpush.bf16.msra.mxu0 %v918
  %1529 = vmatpush.bf16.msra.mxu0 %v911
  %1530 = vmatmul.bf16.gmra.mxu0 %v1262
  %v1531 = vpop.f32.mrf.mxu0
  %v1532 = vadd.f32 0.0, %v1531
  %v1533 = vpop.f32.mrf.mxu0
  %v1534 = vadd.f32 0.0, %v1533
  %1535 = vmatmul.bf16.gmra.mxu0 %v1266
  %v1536 = vpop.f32.mrf.mxu0
  %v1537 = vadd.f32 0.0, %v1536
  %v1538 = vpop.f32.mrf.mxu0
  %v1539 = vadd.f32 0.0, %v1538
  %1540 = vmatmul.bf16.gmra.mxu0 %v1270
  %v1541 = vpop.f32.mrf.mxu0
  %v1542 = vadd.f32 0.0, %v1541
  %v1543 = vpop.f32.mrf.mxu0
  %v1544 = vadd.f32 0.0, %v1543
  %1545 = vmatmul.bf16.gmra.mxu0 %v1274
  %v1546 = vpop.f32.mrf.mxu0
  %v1547 = vadd.f32 0.0, %v1546
  %v1548 = vpop.f32.mrf.mxu0
  %v1549 = vadd.f32 0.0, %v1548
  %1550 = vmatmul.bf16.gmra.mxu0 %v1278
  %v1551 = vpop.f32.mrf.mxu0
  %v1552 = vadd.f32 0.0, %v1551
  %v1553 = vpop.f32.mrf.mxu0
  %v1554 = vadd.f32 0.0, %v1553
  %1555 = vmatmul.bf16.gmra.mxu0 %v1282
  %v1556 = vpop.f32.mrf.mxu0
  %v1557 = vadd.f32 0.0, %v1556
  %v1558 = vpop.f32.mrf.mxu0
  %v1559 = vadd.f32 0.0, %v1558
  %1560 = vmatmul.bf16.gmra.mxu0 %v1286
  %v1561 = vpop.f32.mrf.mxu0
  %v1562 = vadd.f32 0.0, %v1561
  %v1563 = vpop.f32.mrf.mxu0
  %v1564 = vadd.f32 0.0, %v1563
  %1565 = vmatmul.bf16.gmra.mxu0 %v1290
  %v1566 = vpop.f32.mrf.mxu0
  %v1567 = vadd.f32 0.0, %v1566
  %v1568 = vpop.f32.mrf.mxu0
  %v1569 = vadd.f32 0.0, %v1568
  %1570 = vdwg.mxu0
  %1571 = vmatpush.bf16.msra.mxu0 %v1016
  %1572 = vmatpush.bf16.msra.mxu0 %v1009
  %1573 = vmatpush.bf16.msra.mxu0 %v1002
  %1574 = vmatpush.bf16.msra.mxu0 %v995
  %1575 = vmatpush.bf16.msra.mxu0 %v988
  %1576 = vmatpush.bf16.msra.mxu0 %v981
  %1577 = vmatpush.bf16.msra.mxu0 %v974
  %1578 = vmatpush.bf16.msra.mxu0 %v967
  %1579 = vmatmul.bf16.gmra.mxu0 %v1263
  %v1580 = vpop.f32.mrf.mxu0
  %v1581 = vadd.f32 %v1532, %v1580
  %v1582 = vpop.f32.mrf.mxu0
  %v1583 = vadd.f32 %v1534, %v1582
  %1584 = vmatmul.bf16.gmra.mxu0 %v1267
  %v1585 = vpop.f32.mrf.mxu0
  %v1586 = vadd.f32 %v1537, %v1585
  %v1587 = vpop.f32.mrf.mxu0
  %v1588 = vadd.f32 %v1539, %v1587
  %1589 = vmatmul.bf16.gmra.mxu0 %v1271
  %v1590 = vpop.f32.mrf.mxu0
  %v1591 = vadd.f32 %v1542, %v1590
  %v1592 = vpop.f32.mrf.mxu0
  %v1593 = vadd.f32 %v1544, %v1592
  %1594 = vmatmul.bf16.gmra.mxu0 %v1275
  %v1595 = vpop.f32.mrf.mxu0
  %v1596 = vadd.f32 %v1547, %v1595
  %v1597 = vpop.f32.mrf.mxu0
  %v1598 = vadd.f32 %v1549, %v1597
  %1599 = vmatmul.bf16.gmra.mxu0 %v1279
  %v1600 = vpop.f32.mrf.mxu0
  %v1601 = vadd.f32 %v1552, %v1600
  %v1602 = vpop.f32.mrf.mxu0
  %v1603 = vadd.f32 %v1554, %v1602
  %1604 = vmatmul.bf16.gmra.mxu0 %v1283
  %v1605 = vpop.f32.mrf.mxu0
  %v1606 = vadd.f32 %v1557, %v1605
  %v1607 = vpop.f32.mrf.mxu0
  %v1608 = vadd.f32 %v1559, %v1607
  %1609 = vmatmul.bf16.gmra.mxu0 %v1287
  %v1610 = vpop.f32.mrf.mxu0
  %v1611 = vadd.f32 %v1562, %v1610
  %v1612 = vpop.f32.mrf.mxu0
  %v1613 = vadd.f32 %v1564, %v1612
  %1614 = vmatmul.bf16.gmra.mxu0 %v1291
  %v1615 = vpop.f32.mrf.mxu0
  %v1616 = vadd.f32 %v1567, %v1615
  %v1617 = vpop.f32.mrf.mxu0
  %v1618 = vadd.f32 %v1569, %v1617
  %1619 = vdwg.mxu0
  %1620 = vmatpush.bf16.msra.mxu0 %v1072
  %1621 = vmatpush.bf16.msra.mxu0 %v1065
  %1622 = vmatpush.bf16.msra.mxu0 %v1058
  %1623 = vmatpush.bf16.msra.mxu0 %v1051
  %1624 = vmatpush.bf16.msra.mxu0 %v1044
  %1625 = vmatpush.bf16.msra.mxu0 %v1037
  %1626 = vmatpush.bf16.msra.mxu0 %v1030
  %1627 = vmatpush.bf16.msra.mxu0 %v1023
  %1628 = vmatmul.bf16.gmra.mxu0 %v1264
  %v1629 = vpop.f32.mrf.mxu0
  %v1630 = vadd.f32 %v1581, %v1629
  %v1631 = vpop.f32.mrf.mxu0
  %v1632 = vadd.f32 %v1583, %v1631
  %1633 = vmatmul.bf16.gmra.mxu0 %v1268
  %v1634 = vpop.f32.mrf.mxu0
  %v1635 = vadd.f32 %v1586, %v1634
  %v1636 = vpop.f32.mrf.mxu0
  %v1637 = vadd.f32 %v1588, %v1636
  %1638 = vmatmul.bf16.gmra.mxu0 %v1272
  %v1639 = vpop.f32.mrf.mxu0
  %v1640 = vadd.f32 %v1591, %v1639
  %v1641 = vpop.f32.mrf.mxu0
  %v1642 = vadd.f32 %v1593, %v1641
  %1643 = vmatmul.bf16.gmra.mxu0 %v1276
  %v1644 = vpop.f32.mrf.mxu0
  %v1645 = vadd.f32 %v1596, %v1644
  %v1646 = vpop.f32.mrf.mxu0
  %v1647 = vadd.f32 %v1598, %v1646
  %1648 = vmatmul.bf16.gmra.mxu0 %v1280
  %v1649 = vpop.f32.mrf.mxu0
  %v1650 = vadd.f32 %v1601, %v1649
  %v1651 = vpop.f32.mrf.mxu0
  %v1652 = vadd.f32 %v1603, %v1651
  %1653 = vmatmul.bf16.gmra.mxu0 %v1284
  %v1654 = vpop.f32.mrf.mxu0
  %v1655 = vadd.f32 %v1606, %v1654
  %v1656 = vpop.f32.mrf.mxu0
  %v1657 = vadd.f32 %v1608, %v1656
  %1658 = vmatmul.bf16.gmra.mxu0 %v1288
  %v1659 = vpop.f32.mrf.mxu0
  %v1660 = vadd.f32 %v1611, %v1659
  %v1661 = vpop.f32.mrf.mxu0
  %v1662 = vadd.f32 %v1613, %v1661
  %1663 = vmatmul.bf16.gmra.mxu0 %v1292
  %v1664 = vpop.f32.mrf.mxu0
  %v1665 = vadd.f32 %v1616, %v1664
  %v1666 = vpop.f32.mrf.mxu0
  %v1667 = vadd.f32 %v1618, %v1666
  %1668 = vdwg.mxu0
  %1669 = vmatpush.bf16.msra.mxu0 %v1128
  %1670 = vmatpush.bf16.msra.mxu0 %v1121
  %1671 = vmatpush.bf16.msra.mxu0 %v1114
  %1672 = vmatpush.bf16.msra.mxu0 %v1107
  %1673 = vmatpush.bf16.msra.mxu0 %v1100
  %1674 = vmatpush.bf16.msra.mxu0 %v1093
  %1675 = vmatpush.bf16.msra.mxu0 %v1086
  %1676 = vmatpush.bf16.msra.mxu0 %v1079
  %1677 = vmatmul.bf16.gmra.mxu0 %v1265
  %v1678 = vpop.f32.mrf.mxu0
  %v1679 = vadd.f32 %v1630, %v1678
  %v1680 = vpop.f32.mrf.mxu0
  %v1681 = vadd.f32 %v1632, %v1680
  %1682 = vmatmul.bf16.gmra.mxu0 %v1269
  %v1683 = vpop.f32.mrf.mxu0
  %v1684 = vadd.f32 %v1635, %v1683
  %v1685 = vpop.f32.mrf.mxu0
  %v1686 = vadd.f32 %v1637, %v1685
  %1687 = vmatmul.bf16.gmra.mxu0 %v1273
  %v1688 = vpop.f32.mrf.mxu0
  %v1689 = vadd.f32 %v1640, %v1688
  %v1690 = vpop.f32.mrf.mxu0
  %v1691 = vadd.f32 %v1642, %v1690
  %1692 = vmatmul.bf16.gmra.mxu0 %v1277
  %v1693 = vpop.f32.mrf.mxu0
  %v1694 = vadd.f32 %v1645, %v1693
  %v1695 = vpop.f32.mrf.mxu0
  %v1696 = vadd.f32 %v1647, %v1695
  %1697 = vmatmul.bf16.gmra.mxu0 %v1281
  %v1698 = vpop.f32.mrf.mxu0
  %v1699 = vadd.f32 %v1650, %v1698
  %v1700 = vpop.f32.mrf.mxu0
  %v1701 = vadd.f32 %v1652, %v1700
  %1702 = vmatmul.bf16.gmra.mxu0 %v1285
  %v1703 = vpop.f32.mrf.mxu0
  %v1704 = vadd.f32 %v1655, %v1703
  %v1705 = vpop.f32.mrf.mxu0
  %v1706 = vadd.f32 %v1657, %v1705
  %1707 = vmatmul.bf16.gmra.mxu0 %v1289
  %v1708 = vpop.f32.mrf.mxu0
  %v1709 = vadd.f32 %v1660, %v1708
  %v1710 = vpop.f32.mrf.mxu0
  %v1711 = vadd.f32 %v1662, %v1710
  %1712 = vmatmul.bf16.gmra.mxu0 %v1293
  %v1713 = vpop.f32.mrf.mxu0
  %v1714 = vadd.f32 %v1665, %v1713
  %v1715 = vpop.f32.mrf.mxu0
  %v1716 = vadd.f32 %v1667, %v1715
  %1717 = vdwg.mxu0
  %1718 = vmatpush.bf16.msra.mxu0 %v961
  %1719 = vmatpush.bf16.msra.mxu0 %v954
  %1720 = vmatpush.bf16.msra.mxu0 %v947
  %1721 = vmatpush.bf16.msra.mxu0 %v940
  %1722 = vmatpush.bf16.msra.mxu0 %v933
  %1723 = vmatpush.bf16.msra.mxu0 %v926
  %1724 = vmatpush.bf16.msra.mxu0 %v919
  %1725 = vmatpush.bf16.msra.mxu0 %v912
  %1726 = vmatmul.bf16.gmra.mxu0 %v1262
  %v1727 = vpop.f32.mrf.mxu0
  %v1728 = vadd.f32 0.0, %v1727
  %v1729 = vpop.f32.mrf.mxu0
  %v1730 = vadd.f32 0.0, %v1729
  %1731 = vmatmul.bf16.gmra.mxu0 %v1266
  %v1732 = vpop.f32.mrf.mxu0
  %v1733 = vadd.f32 0.0, %v1732
  %v1734 = vpop.f32.mrf.mxu0
  %v1735 = vadd.f32 0.0, %v1734
  %1736 = vmatmul.bf16.gmra.mxu0 %v1270
  %v1737 = vpop.f32.mrf.mxu0
  %v1738 = vadd.f32 0.0, %v1737
  %v1739 = vpop.f32.mrf.mxu0
  %v1740 = vadd.f32 0.0, %v1739
  %1741 = vmatmul.bf16.gmra.mxu0 %v1274
  %v1742 = vpop.f32.mrf.mxu0
  %v1743 = vadd.f32 0.0, %v1742
  %v1744 = vpop.f32.mrf.mxu0
  %v1745 = vadd.f32 0.0, %v1744
  %1746 = vmatmul.bf16.gmra.mxu0 %v1278
  %v1747 = vpop.f32.mrf.mxu0
  %v1748 = vadd.f32 0.0, %v1747
  %v1749 = vpop.f32.mrf.mxu0
  %v1750 = vadd.f32 0.0, %v1749
  %1751 = vmatmul.bf16.gmra.mxu0 %v1282
  %v1752 = vpop.f32.mrf.mxu0
  %v1753 = vadd.f32 0.0, %v1752
  %v1754 = vpop.f32.mrf.mxu0
  %v1755 = vadd.f32 0.0, %v1754
  %1756 = vmatmul.bf16.gmra.mxu0 %v1286
  %v1757 = vpop.f32.mrf.mxu0
  %v1758 = vadd.f32 0.0, %v1757
  %v1759 = vpop.f32.mrf.mxu0
  %v1760 = vadd.f32 0.0, %v1759
  %1761 = vmatmul.bf16.gmra.mxu0 %v1290
  %v1762 = vpop.f32.mrf.mxu0
  %v1763 = vadd.f32 0.0, %v1762
  %v1764 = vpop.f32.mrf.mxu0
  %v1765 = vadd.f32 0.0, %v1764
  %1766 = vdwg.mxu0
  %1767 = vmatpush.bf16.msra.mxu0 %v1017
  %1768 = vmatpush.bf16.msra.mxu0 %v1010
  %1769 = vmatpush.bf16.msra.mxu0 %v1003
  %1770 = vmatpush.bf16.msra.mxu0 %v996
  %1771 = vmatpush.bf16.msra.mxu0 %v989
  %1772 = vmatpush.bf16.msra.mxu0 %v982
  %1773 = vmatpush.bf16.msra.mxu0 %v975
  %1774 = vmatpush.bf16.msra.mxu0 %v968
  %1775 = vmatmul.bf16.gmra.mxu0 %v1263
  %v1776 = vpop.f32.mrf.mxu0
  %v1777 = vadd.f32 %v1728, %v1776
  %v1778 = vpop.f32.mrf.mxu0
  %v1779 = vadd.f32 %v1730, %v1778
  %1780 = vmatmul.bf16.gmra.mxu0 %v1267
  %v1781 = vpop.f32.mrf.mxu0
  %v1782 = vadd.f32 %v1733, %v1781
  %v1783 = vpop.f32.mrf.mxu0
  %v1784 = vadd.f32 %v1735, %v1783
  %1785 = vmatmul.bf16.gmra.mxu0 %v1271
  %v1786 = vpop.f32.mrf.mxu0
  %v1787 = vadd.f32 %v1738, %v1786
  %v1788 = vpop.f32.mrf.mxu0
  %v1789 = vadd.f32 %v1740, %v1788
  %1790 = vmatmul.bf16.gmra.mxu0 %v1275
  %v1791 = vpop.f32.mrf.mxu0
  %v1792 = vadd.f32 %v1743, %v1791
  %v1793 = vpop.f32.mrf.mxu0
  %v1794 = vadd.f32 %v1745, %v1793
  %1795 = vmatmul.bf16.gmra.mxu0 %v1279
  %v1796 = vpop.f32.mrf.mxu0
  %v1797 = vadd.f32 %v1748, %v1796
  %v1798 = vpop.f32.mrf.mxu0
  %v1799 = vadd.f32 %v1750, %v1798
  %1800 = vmatmul.bf16.gmra.mxu0 %v1283
  %v1801 = vpop.f32.mrf.mxu0
  %v1802 = vadd.f32 %v1753, %v1801
  %v1803 = vpop.f32.mrf.mxu0
  %v1804 = vadd.f32 %v1755, %v1803
  %1805 = vmatmul.bf16.gmra.mxu0 %v1287
  %v1806 = vpop.f32.mrf.mxu0
  %v1807 = vadd.f32 %v1758, %v1806
  %v1808 = vpop.f32.mrf.mxu0
  %v1809 = vadd.f32 %v1760, %v1808
  %1810 = vmatmul.bf16.gmra.mxu0 %v1291
  %v1811 = vpop.f32.mrf.mxu0
  %v1812 = vadd.f32 %v1763, %v1811
  %v1813 = vpop.f32.mrf.mxu0
  %v1814 = vadd.f32 %v1765, %v1813
  %1815 = vdwg.mxu0
  %1816 = vmatpush.bf16.msra.mxu0 %v1073
  %1817 = vmatpush.bf16.msra.mxu0 %v1066
  %1818 = vmatpush.bf16.msra.mxu0 %v1059
  %1819 = vmatpush.bf16.msra.mxu0 %v1052
  %1820 = vmatpush.bf16.msra.mxu0 %v1045
  %1821 = vmatpush.bf16.msra.mxu0 %v1038
  %1822 = vmatpush.bf16.msra.mxu0 %v1031
  %1823 = vmatpush.bf16.msra.mxu0 %v1024
  %1824 = vmatmul.bf16.gmra.mxu0 %v1264
  %v1825 = vpop.f32.mrf.mxu0
  %v1826 = vadd.f32 %v1777, %v1825
  %v1827 = vpop.f32.mrf.mxu0
  %v1828 = vadd.f32 %v1779, %v1827
  %1829 = vmatmul.bf16.gmra.mxu0 %v1268
  %v1830 = vpop.f32.mrf.mxu0
  %v1831 = vadd.f32 %v1782, %v1830
  %v1832 = vpop.f32.mrf.mxu0
  %v1833 = vadd.f32 %v1784, %v1832
  %1834 = vmatmul.bf16.gmra.mxu0 %v1272
  %v1835 = vpop.f32.mrf.mxu0
  %v1836 = vadd.f32 %v1787, %v1835
  %v1837 = vpop.f32.mrf.mxu0
  %v1838 = vadd.f32 %v1789, %v1837
  %1839 = vmatmul.bf16.gmra.mxu0 %v1276
  %v1840 = vpop.f32.mrf.mxu0
  %v1841 = vadd.f32 %v1792, %v1840
  %v1842 = vpop.f32.mrf.mxu0
  %v1843 = vadd.f32 %v1794, %v1842
  %1844 = vmatmul.bf16.gmra.mxu0 %v1280
  %v1845 = vpop.f32.mrf.mxu0
  %v1846 = vadd.f32 %v1797, %v1845
  %v1847 = vpop.f32.mrf.mxu0
  %v1848 = vadd.f32 %v1799, %v1847
  %1849 = vmatmul.bf16.gmra.mxu0 %v1284
  %v1850 = vpop.f32.mrf.mxu0
  %v1851 = vadd.f32 %v1802, %v1850
  %v1852 = vpop.f32.mrf.mxu0
  %v1853 = vadd.f32 %v1804, %v1852
  %1854 = vmatmul.bf16.gmra.mxu0 %v1288
  %v1855 = vpop.f32.mrf.mxu0
  %v1856 = vadd.f32 %v1807, %v1855
  %v1857 = vpop.f32.mrf.mxu0
  %v1858 = vadd.f32 %v1809, %v1857
  %1859 = vmatmul.bf16.gmra.mxu0 %v1292
  %v1860 = vpop.f32.mrf.mxu0
  %v1861 = vadd.f32 %v1812, %v1860
  %v1862 = vpop.f32.mrf.mxu0
  %v1863 = vadd.f32 %v1814, %v1862
  %1864 = vdwg.mxu0
  %1865 = vmatpush.bf16.msra.mxu0 %v1129
  %1866 = vmatpush.bf16.msra.mxu0 %v1122
  %1867 = vmatpush.bf16.msra.mxu0 %v1115
  %1868 = vmatpush.bf16.msra.mxu0 %v1108
  %1869 = vmatpush.bf16.msra.mxu0 %v1101
  %1870 = vmatpush.bf16.msra.mxu0 %v1094
  %1871 = vmatpush.bf16.msra.mxu0 %v1087
  %1872 = vmatpush.bf16.msra.mxu0 %v1080
  %1873 = vmatmul.bf16.gmra.mxu0 %v1265
  %v1874 = vpop.f32.mrf.mxu0
  %v1875 = vadd.f32 %v1826, %v1874
  %v1876 = vpop.f32.mrf.mxu0
  %v1877 = vadd.f32 %v1828, %v1876
  %1878 = vmatmul.bf16.gmra.mxu0 %v1269
  %v1879 = vpop.f32.mrf.mxu0
  %v1880 = vadd.f32 %v1831, %v1879
  %v1881 = vpop.f32.mrf.mxu0
  %v1882 = vadd.f32 %v1833, %v1881
  %1883 = vmatmul.bf16.gmra.mxu0 %v1273
  %v1884 = vpop.f32.mrf.mxu0
  %v1885 = vadd.f32 %v1836, %v1884
  %v1886 = vpop.f32.mrf.mxu0
  %v1887 = vadd.f32 %v1838, %v1886
  %1888 = vmatmul.bf16.gmra.mxu0 %v1277
  %v1889 = vpop.f32.mrf.mxu0
  %v1890 = vadd.f32 %v1841, %v1889
  %v1891 = vpop.f32.mrf.mxu0
  %v1892 = vadd.f32 %v1843, %v1891
  %1893 = vmatmul.bf16.gmra.mxu0 %v1281
  %v1894 = vpop.f32.mrf.mxu0
  %v1895 = vadd.f32 %v1846, %v1894
  %v1896 = vpop.f32.mrf.mxu0
  %v1897 = vadd.f32 %v1848, %v1896
  %1898 = vmatmul.bf16.gmra.mxu0 %v1285
  %v1899 = vpop.f32.mrf.mxu0
  %v1900 = vadd.f32 %v1851, %v1899
  %v1901 = vpop.f32.mrf.mxu0
  %v1902 = vadd.f32 %v1853, %v1901
  %1903 = vmatmul.bf16.gmra.mxu0 %v1289
  %v1904 = vpop.f32.mrf.mxu0
  %v1905 = vadd.f32 %v1856, %v1904
  %v1906 = vpop.f32.mrf.mxu0
  %v1907 = vadd.f32 %v1858, %v1906
  %1908 = vmatmul.bf16.gmra.mxu0 %v1293
  %v1909 = vpop.f32.mrf.mxu0
  %v1910 = vadd.f32 %v1861, %v1909
  %v1911 = vpop.f32.mrf.mxu0
  %v1912 = vadd.f32 %v1863, %v1911
  %1913 = vdwg.mxu0
  %1914 = vmatpush.bf16.msra.mxu0 %v962
  %1915 = vmatpush.bf16.msra.mxu0 %v955
  %1916 = vmatpush.bf16.msra.mxu0 %v948
  %1917 = vmatpush.bf16.msra.mxu0 %v941
  %1918 = vmatpush.bf16.msra.mxu0 %v934
  %1919 = vmatpush.bf16.msra.mxu0 %v927
  %1920 = vmatpush.bf16.msra.mxu0 %v920
  %1921 = vmatpush.bf16.msra.mxu0 %v913
  %1922 = vmatmul.bf16.gmra.mxu0 %v1262
  %v1923 = vpop.f32.mrf.mxu0
  %v1924 = vadd.f32 0.0, %v1923
  %v1925 = vpop.f32.mrf.mxu0
  %v1926 = vadd.f32 0.0, %v1925
  %1927 = vmatmul.bf16.gmra.mxu0 %v1266
  %v1928 = vpop.f32.mrf.mxu0
  %v1929 = vadd.f32 0.0, %v1928
  %v1930 = vpop.f32.mrf.mxu0
  %v1931 = vadd.f32 0.0, %v1930
  %1932 = vmatmul.bf16.gmra.mxu0 %v1270
  %v1933 = vpop.f32.mrf.mxu0
  %v1934 = vadd.f32 0.0, %v1933
  %v1935 = vpop.f32.mrf.mxu0
  %v1936 = vadd.f32 0.0, %v1935
  %1937 = vmatmul.bf16.gmra.mxu0 %v1274
  %v1938 = vpop.f32.mrf.mxu0
  %v1939 = vadd.f32 0.0, %v1938
  %v1940 = vpop.f32.mrf.mxu0
  %v1941 = vadd.f32 0.0, %v1940
  %1942 = vmatmul.bf16.gmra.mxu0 %v1278
  %v1943 = vpop.f32.mrf.mxu0
  %v1944 = vadd.f32 0.0, %v1943
  %v1945 = vpop.f32.mrf.mxu0
  %v1946 = vadd.f32 0.0, %v1945
  %1947 = vmatmul.bf16.gmra.mxu0 %v1282
  %v1948 = vpop.f32.mrf.mxu0
  %v1949 = vadd.f32 0.0, %v1948
  %v1950 = vpop.f32.mrf.mxu0
  %v1951 = vadd.f32 0.0, %v1950
  %1952 = vmatmul.bf16.gmra.mxu0 %v1286
  %v1953 = vpop.f32.mrf.mxu0
  %v1954 = vadd.f32 0.0, %v1953
  %v1955 = vpop.f32.mrf.mxu0
  %v1956 = vadd.f32 0.0, %v1955
  %1957 = vmatmul.bf16.gmra.mxu0 %v1290
  %v1958 = vpop.f32.mrf.mxu0
  %v1959 = vadd.f32 0.0, %v1958
  %v1960 = vpop.f32.mrf.mxu0
  %v1961 = vadd.f32 0.0, %v1960
  %1962 = vdwg.mxu0
  %1963 = vmatpush.bf16.msra.mxu0 %v1018
  %1964 = vmatpush.bf16.msra.mxu0 %v1011
  %1965 = vmatpush.bf16.msra.mxu0 %v1004
  %1966 = vmatpush.bf16.msra.mxu0 %v997
  %1967 = vmatpush.bf16.msra.mxu0 %v990
  %1968 = vmatpush.bf16.msra.mxu0 %v983
  %1969 = vmatpush.bf16.msra.mxu0 %v976
  %1970 = vmatpush.bf16.msra.mxu0 %v969
  %1971 = vmatmul.bf16.gmra.mxu0 %v1263
  %v1972 = vpop.f32.mrf.mxu0
  %v1973 = vadd.f32 %v1924, %v1972
  %v1974 = vpop.f32.mrf.mxu0
  %v1975 = vadd.f32 %v1926, %v1974
  %1976 = vmatmul.bf16.gmra.mxu0 %v1267
  %v1977 = vpop.f32.mrf.mxu0
  %v1978 = vadd.f32 %v1929, %v1977
  %v1979 = vpop.f32.mrf.mxu0
  %v1980 = vadd.f32 %v1931, %v1979
  %1981 = vmatmul.bf16.gmra.mxu0 %v1271
  %v1982 = vpop.f32.mrf.mxu0
  %v1983 = vadd.f32 %v1934, %v1982
  %v1984 = vpop.f32.mrf.mxu0
  %v1985 = vadd.f32 %v1936, %v1984
  %1986 = vmatmul.bf16.gmra.mxu0 %v1275
  %v1987 = vpop.f32.mrf.mxu0
  %v1988 = vadd.f32 %v1939, %v1987
  %v1989 = vpop.f32.mrf.mxu0
  %v1990 = vadd.f32 %v1941, %v1989
  %1991 = vmatmul.bf16.gmra.mxu0 %v1279
  %v1992 = vpop.f32.mrf.mxu0
  %v1993 = vadd.f32 %v1944, %v1992
  %v1994 = vpop.f32.mrf.mxu0
  %v1995 = vadd.f32 %v1946, %v1994
  %1996 = vmatmul.bf16.gmra.mxu0 %v1283
  %v1997 = vpop.f32.mrf.mxu0
  %v1998 = vadd.f32 %v1949, %v1997
  %v1999 = vpop.f32.mrf.mxu0
  %v2000 = vadd.f32 %v1951, %v1999
  %2001 = vmatmul.bf16.gmra.mxu0 %v1287
  %v2002 = vpop.f32.mrf.mxu0
  %v2003 = vadd.f32 %v1954, %v2002
  %v2004 = vpop.f32.mrf.mxu0
  %v2005 = vadd.f32 %v1956, %v2004
  %2006 = vmatmul.bf16.gmra.mxu0 %v1291
  %v2007 = vpop.f32.mrf.mxu0
  %v2008 = vadd.f32 %v1959, %v2007
  %v2009 = vpop.f32.mrf.mxu0
  %v2010 = vadd.f32 %v1961, %v2009
  %2011 = vdwg.mxu0
  %2012 = vmatpush.bf16.msra.mxu0 %v1074
  %2013 = vmatpush.bf16.msra.mxu0 %v1067
  %2014 = vmatpush.bf16.msra.mxu0 %v1060
  %2015 = vmatpush.bf16.msra.mxu0 %v1053
  %2016 = vmatpush.bf16.msra.mxu0 %v1046
  %2017 = vmatpush.bf16.msra.mxu0 %v1039
  %2018 = vmatpush.bf16.msra.mxu0 %v1032
  %2019 = vmatpush.bf16.msra.mxu0 %v1025
  %2020 = vmatmul.bf16.gmra.mxu0 %v1264
  %v2021 = vpop.f32.mrf.mxu0
  %v2022 = vadd.f32 %v1973, %v2021
  %v2023 = vpop.f32.mrf.mxu0
  %v2024 = vadd.f32 %v1975, %v2023
  %2025 = vmatmul.bf16.gmra.mxu0 %v1268
  %v2026 = vpop.f32.mrf.mxu0
  %v2027 = vadd.f32 %v1978, %v2026
  %v2028 = vpop.f32.mrf.mxu0
  %v2029 = vadd.f32 %v1980, %v2028
  %2030 = vmatmul.bf16.gmra.mxu0 %v1272
  %v2031 = vpop.f32.mrf.mxu0
  %v2032 = vadd.f32 %v1983, %v2031
  %v2033 = vpop.f32.mrf.mxu0
  %v2034 = vadd.f32 %v1985, %v2033
  %2035 = vmatmul.bf16.gmra.mxu0 %v1276
  %v2036 = vpop.f32.mrf.mxu0
  %v2037 = vadd.f32 %v1988, %v2036
  %v2038 = vpop.f32.mrf.mxu0
  %v2039 = vadd.f32 %v1990, %v2038
  %2040 = vmatmul.bf16.gmra.mxu0 %v1280
  %v2041 = vpop.f32.mrf.mxu0
  %v2042 = vadd.f32 %v1993, %v2041
  %v2043 = vpop.f32.mrf.mxu0
  %v2044 = vadd.f32 %v1995, %v2043
  %2045 = vmatmul.bf16.gmra.mxu0 %v1284
  %v2046 = vpop.f32.mrf.mxu0
  %v2047 = vadd.f32 %v1998, %v2046
  %v2048 = vpop.f32.mrf.mxu0
  %v2049 = vadd.f32 %v2000, %v2048
  %2050 = vmatmul.bf16.gmra.mxu0 %v1288
  %v2051 = vpop.f32.mrf.mxu0
  %v2052 = vadd.f32 %v2003, %v2051
  %v2053 = vpop.f32.mrf.mxu0
  %v2054 = vadd.f32 %v2005, %v2053
  %2055 = vmatmul.bf16.gmra.mxu0 %v1292
  %v2056 = vpop.f32.mrf.mxu0
  %v2057 = vadd.f32 %v2008, %v2056
  %v2058 = vpop.f32.mrf.mxu0
  %v2059 = vadd.f32 %v2010, %v2058
  %2060 = vdwg.mxu0
  %2061 = vmatpush.bf16.msra.mxu0 %v1130
  %2062 = vmatpush.bf16.msra.mxu0 %v1123
  %2063 = vmatpush.bf16.msra.mxu0 %v1116
  %2064 = vmatpush.bf16.msra.mxu0 %v1109
  %2065 = vmatpush.bf16.msra.mxu0 %v1102
  %2066 = vmatpush.bf16.msra.mxu0 %v1095
  %2067 = vmatpush.bf16.msra.mxu0 %v1088
  %2068 = vmatpush.bf16.msra.mxu0 %v1081
  %2069 = vmatmul.bf16.gmra.mxu0 %v1265
  %v2070 = vpop.f32.mrf.mxu0
  %v2071 = vadd.f32 %v2022, %v2070
  %v2072 = vpop.f32.mrf.mxu0
  %v2073 = vadd.f32 %v2024, %v2072
  %2074 = vmatmul.bf16.gmra.mxu0 %v1269
  %v2075 = vpop.f32.mrf.mxu0
  %v2076 = vadd.f32 %v2027, %v2075
  %v2077 = vpop.f32.mrf.mxu0
  %v2078 = vadd.f32 %v2029, %v2077
  %2079 = vmatmul.bf16.gmra.mxu0 %v1273
  %v2080 = vpop.f32.mrf.mxu0
  %v2081 = vadd.f32 %v2032, %v2080
  %v2082 = vpop.f32.mrf.mxu0
  %v2083 = vadd.f32 %v2034, %v2082
  %2084 = vmatmul.bf16.gmra.mxu0 %v1277
  %v2085 = vpop.f32.mrf.mxu0
  %v2086 = vadd.f32 %v2037, %v2085
  %v2087 = vpop.f32.mrf.mxu0
  %v2088 = vadd.f32 %v2039, %v2087
  %2089 = vmatmul.bf16.gmra.mxu0 %v1281
  %v2090 = vpop.f32.mrf.mxu0
  %v2091 = vadd.f32 %v2042, %v2090
  %v2092 = vpop.f32.mrf.mxu0
  %v2093 = vadd.f32 %v2044, %v2092
  %2094 = vmatmul.bf16.gmra.mxu0 %v1285
  %v2095 = vpop.f32.mrf.mxu0
  %v2096 = vadd.f32 %v2047, %v2095
  %v2097 = vpop.f32.mrf.mxu0
  %v2098 = vadd.f32 %v2049, %v2097
  %2099 = vmatmul.bf16.gmra.mxu0 %v1289
  %v2100 = vpop.f32.mrf.mxu0
  %v2101 = vadd.f32 %v2052, %v2100
  %v2102 = vpop.f32.mrf.mxu0
  %v2103 = vadd.f32 %v2054, %v2102
  %2104 = vmatmul.bf16.gmra.mxu0 %v1293
  %v2105 = vpop.f32.mrf.mxu0
  %v2106 = vadd.f32 %v2057, %v2105
  %v2107 = vpop.f32.mrf.mxu0
  %v2108 = vadd.f32 %v2059, %v2107
  %2109 = vdwg.mxu0
  %2110 = vmatpush.bf16.msra.mxu0 %v963
  %2111 = vmatpush.bf16.msra.mxu0 %v956
  %2112 = vmatpush.bf16.msra.mxu0 %v949
  %2113 = vmatpush.bf16.msra.mxu0 %v942
  %2114 = vmatpush.bf16.msra.mxu0 %v935
  %2115 = vmatpush.bf16.msra.mxu0 %v928
  %2116 = vmatpush.bf16.msra.mxu0 %v921
  %2117 = vmatpush.bf16.msra.mxu0 %v914
  %2118 = vmatmul.bf16.gmra.mxu0 %v1262
  %v2119 = vpop.f32.mrf.mxu0
  %v2120 = vadd.f32 0.0, %v2119
  %v2121 = vpop.f32.mrf.mxu0
  %v2122 = vadd.f32 0.0, %v2121
  %2123 = vmatmul.bf16.gmra.mxu0 %v1266
  %v2124 = vpop.f32.mrf.mxu0
  %v2125 = vadd.f32 0.0, %v2124
  %v2126 = vpop.f32.mrf.mxu0
  %v2127 = vadd.f32 0.0, %v2126
  %2128 = vmatmul.bf16.gmra.mxu0 %v1270
  %v2129 = vpop.f32.mrf.mxu0
  %v2130 = vadd.f32 0.0, %v2129
  %v2131 = vpop.f32.mrf.mxu0
  %v2132 = vadd.f32 0.0, %v2131
  %2133 = vmatmul.bf16.gmra.mxu0 %v1274
  %v2134 = vpop.f32.mrf.mxu0
  %v2135 = vadd.f32 0.0, %v2134
  %v2136 = vpop.f32.mrf.mxu0
  %v2137 = vadd.f32 0.0, %v2136
  %2138 = vmatmul.bf16.gmra.mxu0 %v1278
  %v2139 = vpop.f32.mrf.mxu0
  %v2140 = vadd.f32 0.0, %v2139
  %v2141 = vpop.f32.mrf.mxu0
  %v2142 = vadd.f32 0.0, %v2141
  %2143 = vmatmul.bf16.gmra.mxu0 %v1282
  %v2144 = vpop.f32.mrf.mxu0
  %v2145 = vadd.f32 0.0, %v2144
  %v2146 = vpop.f32.mrf.mxu0
  %v2147 = vadd.f32 0.0, %v2146
  %2148 = vmatmul.bf16.gmra.mxu0 %v1286
  %v2149 = vpop.f32.mrf.mxu0
  %v2150 = vadd.f32 0.0, %v2149
  %v2151 = vpop.f32.mrf.mxu0
  %v2152 = vadd.f32 0.0, %v2151
  %2153 = vmatmul.bf16.gmra.mxu0 %v1290
  %v2154 = vpop.f32.mrf.mxu0
  %v2155 = vadd.f32 0.0, %v2154
  %v2156 = vpop.f32.mrf.mxu0
  %v2157 = vadd.f32 0.0, %v2156
  %2158 = vdwg.mxu0
  %2159 = vmatpush.bf16.msra.mxu0 %v1019
  %2160 = vmatpush.bf16.msra.mxu0 %v1012
  %2161 = vmatpush.bf16.msra.mxu0 %v1005
  %2162 = vmatpush.bf16.msra.mxu0 %v998
  %2163 = vmatpush.bf16.msra.mxu0 %v991
  %2164 = vmatpush.bf16.msra.mxu0 %v984
  %2165 = vmatpush.bf16.msra.mxu0 %v977
  %2166 = vmatpush.bf16.msra.mxu0 %v970
  %2167 = vmatmul.bf16.gmra.mxu0 %v1263
  %v2168 = vpop.f32.mrf.mxu0
  %v2169 = vadd.f32 %v2120, %v2168
  %v2170 = vpop.f32.mrf.mxu0
  %v2171 = vadd.f32 %v2122, %v2170
  %2172 = vmatmul.bf16.gmra.mxu0 %v1267
  %v2173 = vpop.f32.mrf.mxu0
  %v2174 = vadd.f32 %v2125, %v2173
  %v2175 = vpop.f32.mrf.mxu0
  %v2176 = vadd.f32 %v2127, %v2175
  %2177 = vmatmul.bf16.gmra.mxu0 %v1271
  %v2178 = vpop.f32.mrf.mxu0
  %v2179 = vadd.f32 %v2130, %v2178
  %v2180 = vpop.f32.mrf.mxu0
  %v2181 = vadd.f32 %v2132, %v2180
  %2182 = vmatmul.bf16.gmra.mxu0 %v1275
  %v2183 = vpop.f32.mrf.mxu0
  %v2184 = vadd.f32 %v2135, %v2183
  %v2185 = vpop.f32.mrf.mxu0
  %v2186 = vadd.f32 %v2137, %v2185
  %2187 = vmatmul.bf16.gmra.mxu0 %v1279
  %v2188 = vpop.f32.mrf.mxu0
  %v2189 = vadd.f32 %v2140, %v2188
  %v2190 = vpop.f32.mrf.mxu0
  %v2191 = vadd.f32 %v2142, %v2190
  %2192 = vmatmul.bf16.gmra.mxu0 %v1283
  %v2193 = vpop.f32.mrf.mxu0
  %v2194 = vadd.f32 %v2145, %v2193
  %v2195 = vpop.f32.mrf.mxu0
  %v2196 = vadd.f32 %v2147, %v2195
  %2197 = vmatmul.bf16.gmra.mxu0 %v1287
  %v2198 = vpop.f32.mrf.mxu0
  %v2199 = vadd.f32 %v2150, %v2198
  %v2200 = vpop.f32.mrf.mxu0
  %v2201 = vadd.f32 %v2152, %v2200
  %2202 = vmatmul.bf16.gmra.mxu0 %v1291
  %v2203 = vpop.f32.mrf.mxu0
  %v2204 = vadd.f32 %v2155, %v2203
  %v2205 = vpop.f32.mrf.mxu0
  %v2206 = vadd.f32 %v2157, %v2205
  %2207 = vdwg.mxu0
  %2208 = vmatpush.bf16.msra.mxu0 %v1075
  %2209 = vmatpush.bf16.msra.mxu0 %v1068
  %2210 = vmatpush.bf16.msra.mxu0 %v1061
  %2211 = vmatpush.bf16.msra.mxu0 %v1054
  %2212 = vmatpush.bf16.msra.mxu0 %v1047
  %2213 = vmatpush.bf16.msra.mxu0 %v1040
  %2214 = vmatpush.bf16.msra.mxu0 %v1033
  %2215 = vmatpush.bf16.msra.mxu0 %v1026
  %2216 = vmatmul.bf16.gmra.mxu0 %v1264
  %v2217 = vpop.f32.mrf.mxu0
  %v2218 = vadd.f32 %v2169, %v2217
  %v2219 = vpop.f32.mrf.mxu0
  %v2220 = vadd.f32 %v2171, %v2219
  %2221 = vmatmul.bf16.gmra.mxu0 %v1268
  %v2222 = vpop.f32.mrf.mxu0
  %v2223 = vadd.f32 %v2174, %v2222
  %v2224 = vpop.f32.mrf.mxu0
  %v2225 = vadd.f32 %v2176, %v2224
  %2226 = vmatmul.bf16.gmra.mxu0 %v1272
  %v2227 = vpop.f32.mrf.mxu0
  %v2228 = vadd.f32 %v2179, %v2227
  %v2229 = vpop.f32.mrf.mxu0
  %v2230 = vadd.f32 %v2181, %v2229
  %2231 = vmatmul.bf16.gmra.mxu0 %v1276
  %v2232 = vpop.f32.mrf.mxu0
  %v2233 = vadd.f32 %v2184, %v2232
  %v2234 = vpop.f32.mrf.mxu0
  %v2235 = vadd.f32 %v2186, %v2234
  %2236 = vmatmul.bf16.gmra.mxu0 %v1280
  %v2237 = vpop.f32.mrf.mxu0
  %v2238 = vadd.f32 %v2189, %v2237
  %v2239 = vpop.f32.mrf.mxu0
  %v2240 = vadd.f32 %v2191, %v2239
  %2241 = vmatmul.bf16.gmra.mxu0 %v1284
  %v2242 = vpop.f32.mrf.mxu0
  %v2243 = vadd.f32 %v2194, %v2242
  %v2244 = vpop.f32.mrf.mxu0
  %v2245 = vadd.f32 %v2196, %v2244
  %2246 = vmatmul.bf16.gmra.mxu0 %v1288
  %v2247 = vpop.f32.mrf.mxu0
  %v2248 = vadd.f32 %v2199, %v2247
  %v2249 = vpop.f32.mrf.mxu0
  %v2250 = vadd.f32 %v2201, %v2249
  %2251 = vmatmul.bf16.gmra.mxu0 %v1292
  %v2252 = vpop.f32.mrf.mxu0
  %v2253 = vadd.f32 %v2204, %v2252
  %v2254 = vpop.f32.mrf.mxu0
  %v2255 = vadd.f32 %v2206, %v2254
  %2256 = vdwg.mxu0
  %2257 = vmatpush.bf16.msra.mxu0 %v1131
  %2258 = vmatpush.bf16.msra.mxu0 %v1124
  %2259 = vmatpush.bf16.msra.mxu0 %v1117
  %2260 = vmatpush.bf16.msra.mxu0 %v1110
  %2261 = vmatpush.bf16.msra.mxu0 %v1103
  %2262 = vmatpush.bf16.msra.mxu0 %v1096
  %2263 = vmatpush.bf16.msra.mxu0 %v1089
  %2264 = vmatpush.bf16.msra.mxu0 %v1082
  %2265 = vmatmul.bf16.gmra.mxu0 %v1265
  %v2266 = vpop.f32.mrf.mxu0
  %v2267 = vadd.f32 %v2218, %v2266
  %v2268 = vpop.f32.mrf.mxu0
  %v2269 = vadd.f32 %v2220, %v2268
  %2270 = vmatmul.bf16.gmra.mxu0 %v1269
  %v2271 = vpop.f32.mrf.mxu0
  %v2272 = vadd.f32 %v2223, %v2271
  %v2273 = vpop.f32.mrf.mxu0
  %v2274 = vadd.f32 %v2225, %v2273
  %2275 = vmatmul.bf16.gmra.mxu0 %v1273
  %v2276 = vpop.f32.mrf.mxu0
  %v2277 = vadd.f32 %v2228, %v2276
  %v2278 = vpop.f32.mrf.mxu0
  %v2279 = vadd.f32 %v2230, %v2278
  %2280 = vmatmul.bf16.gmra.mxu0 %v1277
  %v2281 = vpop.f32.mrf.mxu0
  %v2282 = vadd.f32 %v2233, %v2281
  %v2283 = vpop.f32.mrf.mxu0
  %v2284 = vadd.f32 %v2235, %v2283
  %2285 = vmatmul.bf16.gmra.mxu0 %v1281
  %v2286 = vpop.f32.mrf.mxu0
  %v2287 = vadd.f32 %v2238, %v2286
  %v2288 = vpop.f32.mrf.mxu0
  %v2289 = vadd.f32 %v2240, %v2288
  %2290 = vmatmul.bf16.gmra.mxu0 %v1285
  %v2291 = vpop.f32.mrf.mxu0
  %v2292 = vadd.f32 %v2243, %v2291
  %v2293 = vpop.f32.mrf.mxu0
  %v2294 = vadd.f32 %v2245, %v2293
  %2295 = vmatmul.bf16.gmra.mxu0 %v1289
  %v2296 = vpop.f32.mrf.mxu0
  %v2297 = vadd.f32 %v2248, %v2296
  %v2298 = vpop.f32.mrf.mxu0
  %v2299 = vadd.f32 %v2250, %v2298
  %2300 = vmatmul.bf16.gmra.mxu0 %v1293
  %v2301 = vpop.f32.mrf.mxu0
  %v2302 = vadd.f32 %v2253, %v2301
  %v2303 = vpop.f32.mrf.mxu0
  %v2304 = vadd.f32 %v2255, %v2303
  %2305 = vdwg.mxu0
  %2306 = vmatpush.bf16.msra.mxu0 %v964
  %2307 = vmatpush.bf16.msra.mxu0 %v957
  %2308 = vmatpush.bf16.msra.mxu0 %v950
  %2309 = vmatpush.bf16.msra.mxu0 %v943
  %2310 = vmatpush.bf16.msra.mxu0 %v936
  %2311 = vmatpush.bf16.msra.mxu0 %v929
  %2312 = vmatpush.bf16.msra.mxu0 %v922
  %2313 = vmatpush.bf16.msra.mxu0 %v915
  %2314 = vmatmul.bf16.gmra.mxu0 %v1262
  %v2315 = vpop.f32.mrf.mxu0
  %v2316 = vadd.f32 0.0, %v2315
  %v2317 = vpop.f32.mrf.mxu0
  %v2318 = vadd.f32 0.0, %v2317
  %2319 = vmatmul.bf16.gmra.mxu0 %v1266
  %v2320 = vpop.f32.mrf.mxu0
  %v2321 = vadd.f32 0.0, %v2320
  %v2322 = vpop.f32.mrf.mxu0
  %v2323 = vadd.f32 0.0, %v2322
  %2324 = vmatmul.bf16.gmra.mxu0 %v1270
  %v2325 = vpop.f32.mrf.mxu0
  %v2326 = vadd.f32 0.0, %v2325
  %v2327 = vpop.f32.mrf.mxu0
  %v2328 = vadd.f32 0.0, %v2327
  %2329 = vmatmul.bf16.gmra.mxu0 %v1274
  %v2330 = vpop.f32.mrf.mxu0
  %v2331 = vadd.f32 0.0, %v2330
  %v2332 = vpop.f32.mrf.mxu0
  %v2333 = vadd.f32 0.0, %v2332
  %2334 = vmatmul.bf16.gmra.mxu0 %v1278
  %v2335 = vpop.f32.mrf.mxu0
  %v2336 = vadd.f32 0.0, %v2335
  %v2337 = vpop.f32.mrf.mxu0
  %v2338 = vadd.f32 0.0, %v2337
  %2339 = vmatmul.bf16.gmra.mxu0 %v1282
  %v2340 = vpop.f32.mrf.mxu0
  %v2341 = vadd.f32 0.0, %v2340
  %v2342 = vpop.f32.mrf.mxu0
  %v2343 = vadd.f32 0.0, %v2342
  %2344 = vmatmul.bf16.gmra.mxu0 %v1286
  %v2345 = vpop.f32.mrf.mxu0
  %v2346 = vadd.f32 0.0, %v2345
  %v2347 = vpop.f32.mrf.mxu0
  %v2348 = vadd.f32 0.0, %v2347
  %2349 = vmatmul.bf16.gmra.mxu0 %v1290
  %v2350 = vpop.f32.mrf.mxu0
  %v2351 = vadd.f32 0.0, %v2350
  %v2352 = vpop.f32.mrf.mxu0
  %v2353 = vadd.f32 0.0, %v2352
  %2354 = vdwg.mxu0
  %2355 = vmatpush.bf16.msra.mxu0 %v1020
  %2356 = vmatpush.bf16.msra.mxu0 %v1013
  %2357 = vmatpush.bf16.msra.mxu0 %v1006
  %2358 = vmatpush.bf16.msra.mxu0 %v999
  %2359 = vmatpush.bf16.msra.mxu0 %v992
  %2360 = vmatpush.bf16.msra.mxu0 %v985
  %2361 = vmatpush.bf16.msra.mxu0 %v978
  %2362 = vmatpush.bf16.msra.mxu0 %v971
  %2363 = vmatmul.bf16.gmra.mxu0 %v1263
  %v2364 = vpop.f32.mrf.mxu0
  %v2365 = vadd.f32 %v2316, %v2364
  %v2366 = vpop.f32.mrf.mxu0
  %v2367 = vadd.f32 %v2318, %v2366
  %2368 = vmatmul.bf16.gmra.mxu0 %v1267
  %v2369 = vpop.f32.mrf.mxu0
  %v2370 = vadd.f32 %v2321, %v2369
  %v2371 = vpop.f32.mrf.mxu0
  %v2372 = vadd.f32 %v2323, %v2371
  %2373 = vmatmul.bf16.gmra.mxu0 %v1271
  %v2374 = vpop.f32.mrf.mxu0
  %v2375 = vadd.f32 %v2326, %v2374
  %v2376 = vpop.f32.mrf.mxu0
  %v2377 = vadd.f32 %v2328, %v2376
  %2378 = vmatmul.bf16.gmra.mxu0 %v1275
  %v2379 = vpop.f32.mrf.mxu0
  %v2380 = vadd.f32 %v2331, %v2379
  %v2381 = vpop.f32.mrf.mxu0
  %v2382 = vadd.f32 %v2333, %v2381
  %2383 = vmatmul.bf16.gmra.mxu0 %v1279
  %v2384 = vpop.f32.mrf.mxu0
  %v2385 = vadd.f32 %v2336, %v2384
  %v2386 = vpop.f32.mrf.mxu0
  %v2387 = vadd.f32 %v2338, %v2386
  %2388 = vmatmul.bf16.gmra.mxu0 %v1283
  %v2389 = vpop.f32.mrf.mxu0
  %v2390 = vadd.f32 %v2341, %v2389
  %v2391 = vpop.f32.mrf.mxu0
  %v2392 = vadd.f32 %v2343, %v2391
  %2393 = vmatmul.bf16.gmra.mxu0 %v1287
  %v2394 = vpop.f32.mrf.mxu0
  %v2395 = vadd.f32 %v2346, %v2394
  %v2396 = vpop.f32.mrf.mxu0
  %v2397 = vadd.f32 %v2348, %v2396
  %2398 = vmatmul.bf16.gmra.mxu0 %v1291
  %v2399 = vpop.f32.mrf.mxu0
  %v2400 = vadd.f32 %v2351, %v2399
  %v2401 = vpop.f32.mrf.mxu0
  %v2402 = vadd.f32 %v2353, %v2401
  %2403 = vdwg.mxu0
  %2404 = vmatpush.bf16.msra.mxu0 %v1076
  %2405 = vmatpush.bf16.msra.mxu0 %v1069
  %2406 = vmatpush.bf16.msra.mxu0 %v1062
  %2407 = vmatpush.bf16.msra.mxu0 %v1055
  %2408 = vmatpush.bf16.msra.mxu0 %v1048
  %2409 = vmatpush.bf16.msra.mxu0 %v1041
  %2410 = vmatpush.bf16.msra.mxu0 %v1034
  %2411 = vmatpush.bf16.msra.mxu0 %v1027
  %2412 = vmatmul.bf16.gmra.mxu0 %v1264
  %v2413 = vpop.f32.mrf.mxu0
  %v2414 = vadd.f32 %v2365, %v2413
  %v2415 = vpop.f32.mrf.mxu0
  %v2416 = vadd.f32 %v2367, %v2415
  %2417 = vmatmul.bf16.gmra.mxu0 %v1268
  %v2418 = vpop.f32.mrf.mxu0
  %v2419 = vadd.f32 %v2370, %v2418
  %v2420 = vpop.f32.mrf.mxu0
  %v2421 = vadd.f32 %v2372, %v2420
  %2422 = vmatmul.bf16.gmra.mxu0 %v1272
  %v2423 = vpop.f32.mrf.mxu0
  %v2424 = vadd.f32 %v2375, %v2423
  %v2425 = vpop.f32.mrf.mxu0
  %v2426 = vadd.f32 %v2377, %v2425
  %2427 = vmatmul.bf16.gmra.mxu0 %v1276
  %v2428 = vpop.f32.mrf.mxu0
  %v2429 = vadd.f32 %v2380, %v2428
  %v2430 = vpop.f32.mrf.mxu0
  %v2431 = vadd.f32 %v2382, %v2430
  %2432 = vmatmul.bf16.gmra.mxu0 %v1280
  %v2433 = vpop.f32.mrf.mxu0
  %v2434 = vadd.f32 %v2385, %v2433
  %v2435 = vpop.f32.mrf.mxu0
  %v2436 = vadd.f32 %v2387, %v2435
  %2437 = vmatmul.bf16.gmra.mxu0 %v1284
  %v2438 = vpop.f32.mrf.mxu0
  %v2439 = vadd.f32 %v2390, %v2438
  %v2440 = vpop.f32.mrf.mxu0
  %v2441 = vadd.f32 %v2392, %v2440
  %2442 = vmatmul.bf16.gmra.mxu0 %v1288
  %v2443 = vpop.f32.mrf.mxu0
  %v2444 = vadd.f32 %v2395, %v2443
  %v2445 = vpop.f32.mrf.mxu0
  %v2446 = vadd.f32 %v2397, %v2445
  %2447 = vmatmul.bf16.gmra.mxu0 %v1292
  %v2448 = vpop.f32.mrf.mxu0
  %v2449 = vadd.f32 %v2400, %v2448
  %v2450 = vpop.f32.mrf.mxu0
  %v2451 = vadd.f32 %v2402, %v2450
  %2452 = vdwg.mxu0
  %2453 = vmatpush.bf16.msra.mxu0 %v1132
  %2454 = vmatpush.bf16.msra.mxu0 %v1125
  %2455 = vmatpush.bf16.msra.mxu0 %v1118
  %2456 = vmatpush.bf16.msra.mxu0 %v1111
  %2457 = vmatpush.bf16.msra.mxu0 %v1104
  %2458 = vmatpush.bf16.msra.mxu0 %v1097
  %2459 = vmatpush.bf16.msra.mxu0 %v1090
  %2460 = vmatpush.bf16.msra.mxu0 %v1083
  %2461 = vmatmul.bf16.gmra.mxu0 %v1265
  %v2462 = vpop.f32.mrf.mxu0
  %v2463 = vadd.f32 %v2414, %v2462
  %v2464 = vpop.f32.mrf.mxu0
  %v2465 = vadd.f32 %v2416, %v2464
  %2466 = vmatmul.bf16.gmra.mxu0 %v1269
  %v2467 = vpop.f32.mrf.mxu0
  %v2468 = vadd.f32 %v2419, %v2467
  %v2469 = vpop.f32.mrf.mxu0
  %v2470 = vadd.f32 %v2421, %v2469
  %2471 = vmatmul.bf16.gmra.mxu0 %v1273
  %v2472 = vpop.f32.mrf.mxu0
  %v2473 = vadd.f32 %v2424, %v2472
  %v2474 = vpop.f32.mrf.mxu0
  %v2475 = vadd.f32 %v2426, %v2474
  %2476 = vmatmul.bf16.gmra.mxu0 %v1277
  %v2477 = vpop.f32.mrf.mxu0
  %v2478 = vadd.f32 %v2429, %v2477
  %v2479 = vpop.f32.mrf.mxu0
  %v2480 = vadd.f32 %v2431, %v2479
  %2481 = vmatmul.bf16.gmra.mxu0 %v1281
  %v2482 = vpop.f32.mrf.mxu0
  %v2483 = vadd.f32 %v2434, %v2482
  %v2484 = vpop.f32.mrf.mxu0
  %v2485 = vadd.f32 %v2436, %v2484
  %2486 = vmatmul.bf16.gmra.mxu0 %v1285
  %v2487 = vpop.f32.mrf.mxu0
  %v2488 = vadd.f32 %v2439, %v2487
  %v2489 = vpop.f32.mrf.mxu0
  %v2490 = vadd.f32 %v2441, %v2489
  %2491 = vmatmul.bf16.gmra.mxu0 %v1289
  %v2492 = vpop.f32.mrf.mxu0
  %v2493 = vadd.f32 %v2444, %v2492
  %v2494 = vpop.f32.mrf.mxu0
  %v2495 = vadd.f32 %v2446, %v2494
  %2496 = vmatmul.bf16.gmra.mxu0 %v1293
  %v2497 = vpop.f32.mrf.mxu0
  %v2498 = vadd.f32 %v2449, %v2497
  %v2499 = vpop.f32.mrf.mxu0
  %v2500 = vadd.f32 %v2451, %v2499
  %2501 = vdwg.mxu0
  %2502 = vmatpush.bf16.msra.mxu0 %v965
  %2503 = vmatpush.bf16.msra.mxu0 %v958
  %2504 = vmatpush.bf16.msra.mxu0 %v951
  %2505 = vmatpush.bf16.msra.mxu0 %v944
  %2506 = vmatpush.bf16.msra.mxu0 %v937
  %2507 = vmatpush.bf16.msra.mxu0 %v930
  %2508 = vmatpush.bf16.msra.mxu0 %v923
  %2509 = vmatpush.bf16.msra.mxu0 %v916
  %2510 = vmatmul.bf16.gmra.mxu0 %v1262
  %v2511 = vpop.f32.mrf.mxu0
  %v2512 = vadd.f32 0.0, %v2511
  %v2513 = vpop.f32.mrf.mxu0
  %v2514 = vadd.f32 0.0, %v2513
  %2515 = vmatmul.bf16.gmra.mxu0 %v1266
  %v2516 = vpop.f32.mrf.mxu0
  %v2517 = vadd.f32 0.0, %v2516
  %v2518 = vpop.f32.mrf.mxu0
  %v2519 = vadd.f32 0.0, %v2518
  %2520 = vmatmul.bf16.gmra.mxu0 %v1270
  %v2521 = vpop.f32.mrf.mxu0
  %v2522 = vadd.f32 0.0, %v2521
  %v2523 = vpop.f32.mrf.mxu0
  %v2524 = vadd.f32 0.0, %v2523
  %2525 = vmatmul.bf16.gmra.mxu0 %v1274
  %v2526 = vpop.f32.mrf.mxu0
  %v2527 = vadd.f32 0.0, %v2526
  %v2528 = vpop.f32.mrf.mxu0
  %v2529 = vadd.f32 0.0, %v2528
  %2530 = vmatmul.bf16.gmra.mxu0 %v1278
  %v2531 = vpop.f32.mrf.mxu0
  %v2532 = vadd.f32 0.0, %v2531
  %v2533 = vpop.f32.mrf.mxu0
  %v2534 = vadd.f32 0.0, %v2533
  %2535 = vmatmul.bf16.gmra.mxu0 %v1282
  %v2536 = vpop.f32.mrf.mxu0
  %v2537 = vadd.f32 0.0, %v2536
  %v2538 = vpop.f32.mrf.mxu0
  %v2539 = vadd.f32 0.0, %v2538
  %2540 = vmatmul.bf16.gmra.mxu0 %v1286
  %v2541 = vpop.f32.mrf.mxu0
  %v2542 = vadd.f32 0.0, %v2541
  %v2543 = vpop.f32.mrf.mxu0
  %v2544 = vadd.f32 0.0, %v2543
  %2545 = vmatmul.bf16.gmra.mxu0 %v1290
  %v2546 = vpop.f32.mrf.mxu0
  %v2547 = vadd.f32 0.0, %v2546
  %v2548 = vpop.f32.mrf.mxu0
  %v2549 = vadd.f32 0.0, %v2548
  %2550 = vdwg.mxu0
  %2551 = vmatpush.bf16.msra.mxu0 %v1021
  %2552 = vmatpush.bf16.msra.mxu0 %v1014
  %2553 = vmatpush.bf16.msra.mxu0 %v1007
  %2554 = vmatpush.bf16.msra.mxu0 %v1000
  %2555 = vmatpush.bf16.msra.mxu0 %v993
  %2556 = vmatpush.bf16.msra.mxu0 %v986
  %2557 = vmatpush.bf16.msra.mxu0 %v979
  %2558 = vmatpush.bf16.msra.mxu0 %v972
  %2559 = vmatmul.bf16.gmra.mxu0 %v1263
  %v2560 = vpop.f32.mrf.mxu0
  %v2561 = vadd.f32 %v2512, %v2560
  %v2562 = vpop.f32.mrf.mxu0
  %v2563 = vadd.f32 %v2514, %v2562
  %2564 = vmatmul.bf16.gmra.mxu0 %v1267
  %v2565 = vpop.f32.mrf.mxu0
  %v2566 = vadd.f32 %v2517, %v2565
  %v2567 = vpop.f32.mrf.mxu0
  %v2568 = vadd.f32 %v2519, %v2567
  %2569 = vmatmul.bf16.gmra.mxu0 %v1271
  %v2570 = vpop.f32.mrf.mxu0
  %v2571 = vadd.f32 %v2522, %v2570
  %v2572 = vpop.f32.mrf.mxu0
  %v2573 = vadd.f32 %v2524, %v2572
  %2574 = vmatmul.bf16.gmra.mxu0 %v1275
  %v2575 = vpop.f32.mrf.mxu0
  %v2576 = vadd.f32 %v2527, %v2575
  %v2577 = vpop.f32.mrf.mxu0
  %v2578 = vadd.f32 %v2529, %v2577
  %2579 = vmatmul.bf16.gmra.mxu0 %v1279
  %v2580 = vpop.f32.mrf.mxu0
  %v2581 = vadd.f32 %v2532, %v2580
  %v2582 = vpop.f32.mrf.mxu0
  %v2583 = vadd.f32 %v2534, %v2582
  %2584 = vmatmul.bf16.gmra.mxu0 %v1283
  %v2585 = vpop.f32.mrf.mxu0
  %v2586 = vadd.f32 %v2537, %v2585
  %v2587 = vpop.f32.mrf.mxu0
  %v2588 = vadd.f32 %v2539, %v2587
  %2589 = vmatmul.bf16.gmra.mxu0 %v1287
  %v2590 = vpop.f32.mrf.mxu0
  %v2591 = vadd.f32 %v2542, %v2590
  %v2592 = vpop.f32.mrf.mxu0
  %v2593 = vadd.f32 %v2544, %v2592
  %2594 = vmatmul.bf16.gmra.mxu0 %v1291
  %v2595 = vpop.f32.mrf.mxu0
  %v2596 = vadd.f32 %v2547, %v2595
  %v2597 = vpop.f32.mrf.mxu0
  %v2598 = vadd.f32 %v2549, %v2597
  %2599 = vdwg.mxu0
  %2600 = vmatpush.bf16.msra.mxu0 %v1077
  %2601 = vmatpush.bf16.msra.mxu0 %v1070
  %2602 = vmatpush.bf16.msra.mxu0 %v1063
  %2603 = vmatpush.bf16.msra.mxu0 %v1056
  %2604 = vmatpush.bf16.msra.mxu0 %v1049
  %2605 = vmatpush.bf16.msra.mxu0 %v1042
  %2606 = vmatpush.bf16.msra.mxu0 %v1035
  %2607 = vmatpush.bf16.msra.mxu0 %v1028
  %2608 = vmatmul.bf16.gmra.mxu0 %v1264
  %v2609 = vpop.f32.mrf.mxu0
  %v2610 = vadd.f32 %v2561, %v2609
  %v2611 = vpop.f32.mrf.mxu0
  %v2612 = vadd.f32 %v2563, %v2611
  %2613 = vmatmul.bf16.gmra.mxu0 %v1268
  %v2614 = vpop.f32.mrf.mxu0
  %v2615 = vadd.f32 %v2566, %v2614
  %v2616 = vpop.f32.mrf.mxu0
  %v2617 = vadd.f32 %v2568, %v2616
  %2618 = vmatmul.bf16.gmra.mxu0 %v1272
  %v2619 = vpop.f32.mrf.mxu0
  %v2620 = vadd.f32 %v2571, %v2619
  %v2621 = vpop.f32.mrf.mxu0
  %v2622 = vadd.f32 %v2573, %v2621
  %2623 = vmatmul.bf16.gmra.mxu0 %v1276
  %v2624 = vpop.f32.mrf.mxu0
  %v2625 = vadd.f32 %v2576, %v2624
  %v2626 = vpop.f32.mrf.mxu0
  %v2627 = vadd.f32 %v2578, %v2626
  %2628 = vmatmul.bf16.gmra.mxu0 %v1280
  %v2629 = vpop.f32.mrf.mxu0
  %v2630 = vadd.f32 %v2581, %v2629
  %v2631 = vpop.f32.mrf.mxu0
  %v2632 = vadd.f32 %v2583, %v2631
  %2633 = vmatmul.bf16.gmra.mxu0 %v1284
  %v2634 = vpop.f32.mrf.mxu0
  %v2635 = vadd.f32 %v2586, %v2634
  %v2636 = vpop.f32.mrf.mxu0
  %v2637 = vadd.f32 %v2588, %v2636
  %2638 = vmatmul.bf16.gmra.mxu0 %v1288
  %v2639 = vpop.f32.mrf.mxu0
  %v2640 = vadd.f32 %v2591, %v2639
  %v2641 = vpop.f32.mrf.mxu0
  %v2642 = vadd.f32 %v2593, %v2641
  %2643 = vmatmul.bf16.gmra.mxu0 %v1292
  %v2644 = vpop.f32.mrf.mxu0
  %v2645 = vadd.f32 %v2596, %v2644
  %v2646 = vpop.f32.mrf.mxu0
  %v2647 = vadd.f32 %v2598, %v2646
  %2648 = vdwg.mxu0
  %2649 = vmatpush.bf16.msra.mxu0 %v1133
  %2650 = vmatpush.bf16.msra.mxu0 %v1126
  %2651 = vmatpush.bf16.msra.mxu0 %v1119
  %2652 = vmatpush.bf16.msra.mxu0 %v1112
  %2653 = vmatpush.bf16.msra.mxu0 %v1105
  %2654 = vmatpush.bf16.msra.mxu0 %v1098
  %2655 = vmatpush.bf16.msra.mxu0 %v1091
  %2656 = vmatpush.bf16.msra.mxu0 %v1084
  %2657 = vmatmul.bf16.gmra.mxu0 %v1265
  %v2658 = vpop.f32.mrf.mxu0
  %v2659 = vadd.f32 %v2610, %v2658
  %v2660 = vpop.f32.mrf.mxu0
  %v2661 = vadd.f32 %v2612, %v2660
  %2662 = vmatmul.bf16.gmra.mxu0 %v1269
  %v2663 = vpop.f32.mrf.mxu0
  %v2664 = vadd.f32 %v2615, %v2663
  %v2665 = vpop.f32.mrf.mxu0
  %v2666 = vadd.f32 %v2617, %v2665
  %2667 = vmatmul.bf16.gmra.mxu0 %v1273
  %v2668 = vpop.f32.mrf.mxu0
  %v2669 = vadd.f32 %v2620, %v2668
  %v2670 = vpop.f32.mrf.mxu0
  %v2671 = vadd.f32 %v2622, %v2670
  %2672 = vmatmul.bf16.gmra.mxu0 %v1277
  %v2673 = vpop.f32.mrf.mxu0
  %v2674 = vadd.f32 %v2625, %v2673
  %v2675 = vpop.f32.mrf.mxu0
  %v2676 = vadd.f32 %v2627, %v2675
  %2677 = vmatmul.bf16.gmra.mxu0 %v1281
  %v2678 = vpop.f32.mrf.mxu0
  %v2679 = vadd.f32 %v2630, %v2678
  %v2680 = vpop.f32.mrf.mxu0
  %v2681 = vadd.f32 %v2632, %v2680
  %2682 = vmatmul.bf16.gmra.mxu0 %v1285
  %v2683 = vpop.f32.mrf.mxu0
  %v2684 = vadd.f32 %v2635, %v2683
  %v2685 = vpop.f32.mrf.mxu0
  %v2686 = vadd.f32 %v2637, %v2685
  %2687 = vmatmul.bf16.gmra.mxu0 %v1289
  %v2688 = vpop.f32.mrf.mxu0
  %v2689 = vadd.f32 %v2640, %v2688
  %v2690 = vpop.f32.mrf.mxu0
  %v2691 = vadd.f32 %v2642, %v2690
  %2692 = vmatmul.bf16.gmra.mxu0 %v1293
  %v2693 = vpop.f32.mrf.mxu0
  %v2694 = vadd.f32 %v2645, %v2693
  %v2695 = vpop.f32.mrf.mxu0
  %v2696 = vadd.f32 %v2647, %v2695
  %2697 = vdwg.mxu0
  %v2698 = vadd.f32 %v1483, %v1679
  %v2699 = vadd.f32 %v2698, %v1875
  %v2700 = vadd.f32 %v2699, %v2071
  %v2701 = vadd.f32 %v2700, %v2267
  %v2702 = vadd.f32 %v2701, %v2463
  %vm2703 = vcmask 130048
  %v2704 = vsel %vm2703, %v2659, 0.0
  %v2705 = vadd.f32 %v2702, %v2704
  %2706 = vadd.xlane.f32.xlu0 %v2705
  %v2707 = vpop.xlane.xlu0 %2706
  %v2708 = vadd.f32 %v1485, %v1681
  %v2709 = vadd.f32 %v2708, %v1877
  %v2710 = vadd.f32 %v2709, %v2073
  %v2711 = vadd.f32 %v2710, %v2269
  %v2712 = vadd.f32 %v2711, %v2465
  %v2713 = vsel %vm2703, %v2661, 0.0
  %v2714 = vadd.f32 %v2712, %v2713
  %2715 = vadd.xlane.f32.xlu0 %v2714
  %v2716 = vpop.xlane.xlu0 %2715
  %v2717 = vadd.f32 %v1488, %v1684
  %v2718 = vadd.f32 %v2717, %v1880
  %v2719 = vadd.f32 %v2718, %v2076
  %v2720 = vadd.f32 %v2719, %v2272
  %v2721 = vadd.f32 %v2720, %v2468
  %v2722 = vsel %vm2703, %v2664, 0.0
  %v2723 = vadd.f32 %v2721, %v2722
  %2724 = vadd.xlane.f32.xlu0 %v2723
  %v2725 = vpop.xlane.xlu0 %2724
  %v2726 = vadd.f32 %v1490, %v1686
  %v2727 = vadd.f32 %v2726, %v1882
  %v2728 = vadd.f32 %v2727, %v2078
  %v2729 = vadd.f32 %v2728, %v2274
  %v2730 = vadd.f32 %v2729, %v2470
  %v2731 = vsel %vm2703, %v2666, 0.0
  %v2732 = vadd.f32 %v2730, %v2731
  %2733 = vadd.xlane.f32.xlu0 %v2732
  %v2734 = vpop.xlane.xlu0 %2733
  %v2735 = vadd.f32 %v1493, %v1689
  %v2736 = vadd.f32 %v2735, %v1885
  %v2737 = vadd.f32 %v2736, %v2081
  %v2738 = vadd.f32 %v2737, %v2277
  %v2739 = vadd.f32 %v2738, %v2473
  %v2740 = vsel %vm2703, %v2669, 0.0
  %v2741 = vadd.f32 %v2739, %v2740
  %2742 = vadd.xlane.f32.xlu0 %v2741
  %v2743 = vpop.xlane.xlu0 %2742
  %v2744 = vadd.f32 %v1495, %v1691
  %v2745 = vadd.f32 %v2744, %v1887
  %v2746 = vadd.f32 %v2745, %v2083
  %v2747 = vadd.f32 %v2746, %v2279
  %v2748 = vadd.f32 %v2747, %v2475
  %v2749 = vsel %vm2703, %v2671, 0.0
  %v2750 = vadd.f32 %v2748, %v2749
  %2751 = vadd.xlane.f32.xlu0 %v2750
  %v2752 = vpop.xlane.xlu0 %2751
  %v2753 = vadd.f32 %v1498, %v1694
  %v2754 = vadd.f32 %v2753, %v1890
  %v2755 = vadd.f32 %v2754, %v2086
  %v2756 = vadd.f32 %v2755, %v2282
  %v2757 = vadd.f32 %v2756, %v2478
  %v2758 = vsel %vm2703, %v2674, 0.0
  %v2759 = vadd.f32 %v2757, %v2758
  %2760 = vadd.xlane.f32.xlu0 %v2759
  %v2761 = vpop.xlane.xlu0 %2760
  %v2762 = vadd.f32 %v1500, %v1696
  %v2763 = vadd.f32 %v2762, %v1892
  %v2764 = vadd.f32 %v2763, %v2088
  %v2765 = vadd.f32 %v2764, %v2284
  %v2766 = vadd.f32 %v2765, %v2480
  %v2767 = vsel %vm2703, %v2676, 0.0
  %v2768 = vadd.f32 %v2766, %v2767
  %2769 = vadd.xlane.f32.xlu0 %v2768
  %v2770 = vpop.xlane.xlu0 %2769
  %v2771 = vadd.f32 %v1503, %v1699
  %v2772 = vadd.f32 %v2771, %v1895
  %v2773 = vadd.f32 %v2772, %v2091
  %v2774 = vadd.f32 %v2773, %v2287
  %v2775 = vadd.f32 %v2774, %v2483
  %v2776 = vsel %vm2703, %v2679, 0.0
  %v2777 = vadd.f32 %v2775, %v2776
  %2778 = vadd.xlane.f32.xlu0 %v2777
  %v2779 = vpop.xlane.xlu0 %2778
  %v2780 = vadd.f32 %v1505, %v1701
  %v2781 = vadd.f32 %v2780, %v1897
  %v2782 = vadd.f32 %v2781, %v2093
  %v2783 = vadd.f32 %v2782, %v2289
  %v2784 = vadd.f32 %v2783, %v2485
  %v2785 = vsel %vm2703, %v2681, 0.0
  %v2786 = vadd.f32 %v2784, %v2785
  %2787 = vadd.xlane.f32.xlu0 %v2786
  %v2788 = vpop.xlane.xlu0 %2787
  %v2789 = vadd.f32 %v1508, %v1704
  %v2790 = vadd.f32 %v2789, %v1900
  %v2791 = vadd.f32 %v2790, %v2096
  %v2792 = vadd.f32 %v2791, %v2292
  %v2793 = vadd.f32 %v2792, %v2488
  %v2794 = vsel %vm2703, %v2684, 0.0
  %v2795 = vadd.f32 %v2793, %v2794
  %2796 = vadd.xlane.f32.xlu0 %v2795
  %v2797 = vpop.xlane.xlu0 %2796
  %v2798 = vadd.f32 %v1510, %v1706
  %v2799 = vadd.f32 %v2798, %v1902
  %v2800 = vadd.f32 %v2799, %v2098
  %v2801 = vadd.f32 %v2800, %v2294
  %v2802 = vadd.f32 %v2801, %v2490
  %v2803 = vsel %vm2703, %v2686, 0.0
  %v2804 = vadd.f32 %v2802, %v2803
  %2805 = vadd.xlane.f32.xlu0 %v2804
  %v2806 = vpop.xlane.xlu0 %2805
  %v2807 = vadd.f32 %v1513, %v1709
  %v2808 = vadd.f32 %v2807, %v1905
  %v2809 = vadd.f32 %v2808, %v2101
  %v2810 = vadd.f32 %v2809, %v2297
  %v2811 = vadd.f32 %v2810, %v2493
  %v2812 = vsel %vm2703, %v2689, 0.0
  %v2813 = vadd.f32 %v2811, %v2812
  %2814 = vadd.xlane.f32.xlu0 %v2813
  %v2815 = vpop.xlane.xlu0 %2814
  %v2816 = vadd.f32 %v1515, %v1711
  %v2817 = vadd.f32 %v2816, %v1907
  %v2818 = vadd.f32 %v2817, %v2103
  %v2819 = vadd.f32 %v2818, %v2299
  %v2820 = vadd.f32 %v2819, %v2495
  %v2821 = vsel %vm2703, %v2691, 0.0
  %v2822 = vadd.f32 %v2820, %v2821
  %2823 = vadd.xlane.f32.xlu0 %v2822
  %v2824 = vpop.xlane.xlu0 %2823
  %v2825 = vadd.f32 %v1518, %v1714
  %v2826 = vadd.f32 %v2825, %v1910
  %v2827 = vadd.f32 %v2826, %v2106
  %v2828 = vadd.f32 %v2827, %v2302
  %v2829 = vadd.f32 %v2828, %v2498
  %v2830 = vsel %vm2703, %v2694, 0.0
  %v2831 = vadd.f32 %v2829, %v2830
  %2832 = vadd.xlane.f32.xlu0 %v2831
  %v2833 = vpop.xlane.xlu0 %2832
  %v2834 = vadd.f32 %v1520, %v1716
  %v2835 = vadd.f32 %v2834, %v1912
  %v2836 = vadd.f32 %v2835, %v2108
  %v2837 = vadd.f32 %v2836, %v2304
  %v2838 = vadd.f32 %v2837, %v2500
  %v2839 = vsel %vm2703, %v2696, 0.0
  %v2840 = vadd.f32 %v2838, %v2839
  %2841 = vadd.xlane.f32.xlu0 %v2840
  %v2842 = vpop.xlane.xlu0 %2841
  %v2843 = vmul.f32 %v2707, 0.0012755102
  %v2844 = vmul.f32 %v2716, 0.0012755102
  %v2845 = vmul.f32 %v2725, 0.0012755102
  %v2846 = vmul.f32 %v2734, 0.0012755102
  %v2847 = vmul.f32 %v2743, 0.0012755102
  %v2848 = vmul.f32 %v2752, 0.0012755102
  %v2849 = vmul.f32 %v2761, 0.0012755102
  %v2850 = vmul.f32 %v2770, 0.0012755102
  %v2851 = vmul.f32 %v2779, 0.0012755102
  %v2852 = vmul.f32 %v2788, 0.0012755102
  %v2853 = vmul.f32 %v2797, 0.0012755102
  %v2854 = vmul.f32 %v2806, 0.0012755102
  %v2855 = vmul.f32 %v2815, 0.0012755102
  %v2856 = vmul.f32 %v2824, 0.0012755102
  %v2857 = vmul.f32 %v2833, 0.0012755102
  %v2858 = vmul.f32 %v2842, 0.0012755102
  %v2859 = vmul.f32 %v1483, %v1483
  %v2860 = vmul.f32 %v1679, %v1679
  %v2861 = vmul.f32 %v1875, %v1875
  %v2862 = vmul.f32 %v2071, %v2071
  %v2863 = vmul.f32 %v2267, %v2267
  %v2864 = vmul.f32 %v2463, %v2463
  %v2865 = vmul.f32 %v2659, %v2659
  %v2866 = vmul.f32 %v1485, %v1485
  %v2867 = vmul.f32 %v1681, %v1681
  %v2868 = vmul.f32 %v1877, %v1877
  %v2869 = vmul.f32 %v2073, %v2073
  %v2870 = vmul.f32 %v2269, %v2269
  %v2871 = vmul.f32 %v2465, %v2465
  %v2872 = vmul.f32 %v2661, %v2661
  %v2873 = vmul.f32 %v1488, %v1488
  %v2874 = vmul.f32 %v1684, %v1684
  %v2875 = vmul.f32 %v1880, %v1880
  %v2876 = vmul.f32 %v2076, %v2076
  %v2877 = vmul.f32 %v2272, %v2272
  %v2878 = vmul.f32 %v2468, %v2468
  %v2879 = vmul.f32 %v2664, %v2664
  %v2880 = vmul.f32 %v1490, %v1490
  %v2881 = vmul.f32 %v1686, %v1686
  %v2882 = vmul.f32 %v1882, %v1882
  %v2883 = vmul.f32 %v2078, %v2078
  %v2884 = vmul.f32 %v2274, %v2274
  %v2885 = vmul.f32 %v2470, %v2470
  %v2886 = vmul.f32 %v2666, %v2666
  %v2887 = vmul.f32 %v1493, %v1493
  %v2888 = vmul.f32 %v1689, %v1689
  %v2889 = vmul.f32 %v1885, %v1885
  %v2890 = vmul.f32 %v2081, %v2081
  %v2891 = vmul.f32 %v2277, %v2277
  %v2892 = vmul.f32 %v2473, %v2473
  %v2893 = vmul.f32 %v2669, %v2669
  %v2894 = vmul.f32 %v1495, %v1495
  %v2895 = vmul.f32 %v1691, %v1691
  %v2896 = vmul.f32 %v1887, %v1887
  %v2897 = vmul.f32 %v2083, %v2083
  %v2898 = vmul.f32 %v2279, %v2279
  %v2899 = vmul.f32 %v2475, %v2475
  %v2900 = vmul.f32 %v2671, %v2671
  %v2901 = vmul.f32 %v1498, %v1498
  %v2902 = vmul.f32 %v1694, %v1694
  %v2903 = vmul.f32 %v1890, %v1890
  %v2904 = vmul.f32 %v2086, %v2086
  %v2905 = vmul.f32 %v2282, %v2282
  %v2906 = vmul.f32 %v2478, %v2478
  %v2907 = vmul.f32 %v2674, %v2674
  %v2908 = vmul.f32 %v1500, %v1500
  %v2909 = vmul.f32 %v1696, %v1696
  %v2910 = vmul.f32 %v1892, %v1892
  %v2911 = vmul.f32 %v2088, %v2088
  %v2912 = vmul.f32 %v2284, %v2284
  %v2913 = vmul.f32 %v2480, %v2480
  %v2914 = vmul.f32 %v2676, %v2676
  %v2915 = vmul.f32 %v1503, %v1503
  %v2916 = vmul.f32 %v1699, %v1699
  %v2917 = vmul.f32 %v1895, %v1895
  %v2918 = vmul.f32 %v2091, %v2091
  %v2919 = vmul.f32 %v2287, %v2287
  %v2920 = vmul.f32 %v2483, %v2483
  %v2921 = vmul.f32 %v2679, %v2679
  %v2922 = vmul.f32 %v1505, %v1505
  %v2923 = vmul.f32 %v1701, %v1701
  %v2924 = vmul.f32 %v1897, %v1897
  %v2925 = vmul.f32 %v2093, %v2093
  %v2926 = vmul.f32 %v2289, %v2289
  %v2927 = vmul.f32 %v2485, %v2485
  %v2928 = vmul.f32 %v2681, %v2681
  %v2929 = vmul.f32 %v1508, %v1508
  %v2930 = vmul.f32 %v1704, %v1704
  %v2931 = vmul.f32 %v1900, %v1900
  %v2932 = vmul.f32 %v2096, %v2096
  %v2933 = vmul.f32 %v2292, %v2292
  %v2934 = vmul.f32 %v2488, %v2488
  %v2935 = vmul.f32 %v2684, %v2684
  %v2936 = vmul.f32 %v1510, %v1510
  %v2937 = vmul.f32 %v1706, %v1706
  %v2938 = vmul.f32 %v1902, %v1902
  %v2939 = vmul.f32 %v2098, %v2098
  %v2940 = vmul.f32 %v2294, %v2294
  %v2941 = vmul.f32 %v2490, %v2490
  %v2942 = vmul.f32 %v2686, %v2686
  %v2943 = vmul.f32 %v1513, %v1513
  %v2944 = vmul.f32 %v1709, %v1709
  %v2945 = vmul.f32 %v1905, %v1905
  %v2946 = vmul.f32 %v2101, %v2101
  %v2947 = vmul.f32 %v2297, %v2297
  %v2948 = vmul.f32 %v2493, %v2493
  %v2949 = vmul.f32 %v2689, %v2689
  %v2950 = vmul.f32 %v1515, %v1515
  %v2951 = vmul.f32 %v1711, %v1711
  %v2952 = vmul.f32 %v1907, %v1907
  %v2953 = vmul.f32 %v2103, %v2103
  %v2954 = vmul.f32 %v2299, %v2299
  %v2955 = vmul.f32 %v2495, %v2495
  %v2956 = vmul.f32 %v2691, %v2691
  %v2957 = vmul.f32 %v1518, %v1518
  %v2958 = vmul.f32 %v1714, %v1714
  %v2959 = vmul.f32 %v1910, %v1910
  %v2960 = vmul.f32 %v2106, %v2106
  %v2961 = vmul.f32 %v2302, %v2302
  %v2962 = vmul.f32 %v2498, %v2498
  %v2963 = vmul.f32 %v2694, %v2694
  %v2964 = vmul.f32 %v1520, %v1520
  %v2965 = vmul.f32 %v1716, %v1716
  %v2966 = vmul.f32 %v1912, %v1912
  %v2967 = vmul.f32 %v2108, %v2108
  %v2968 = vmul.f32 %v2304, %v2304
  %v2969 = vmul.f32 %v2500, %v2500
  %v2970 = vmul.f32 %v2696, %v2696
  %v2971 = vadd.f32 %v2859, %v2860
  %v2972 = vadd.f32 %v2971, %v2861
  %v2973 = vadd.f32 %v2972, %v2862
  %v2974 = vadd.f32 %v2973, %v2863
  %v2975 = vadd.f32 %v2974, %v2864
  %v2976 = vsel %vm2703, %v2865, 0.0
  %v2977 = vadd.f32 %v2975, %v2976
  %2978 = vadd.xlane.f32.xlu0 %v2977
  %v2979 = vpop.xlane.xlu0 %2978
  %v2980 = vadd.f32 %v2866, %v2867
  %v2981 = vadd.f32 %v2980, %v2868
  %v2982 = vadd.f32 %v2981, %v2869
  %v2983 = vadd.f32 %v2982, %v2870
  %v2984 = vadd.f32 %v2983, %v2871
  %v2985 = vsel %vm2703, %v2872, 0.0
  %v2986 = vadd.f32 %v2984, %v2985
  %2987 = vadd.xlane.f32.xlu0 %v2986
  %v2988 = vpop.xlane.xlu0 %2987
  %v2989 = vadd.f32 %v2873, %v2874
  %v2990 = vadd.f32 %v2989, %v2875
  %v2991 = vadd.f32 %v2990, %v2876
  %v2992 = vadd.f32 %v2991, %v2877
  %v2993 = vadd.f32 %v2992, %v2878
  %v2994 = vsel %vm2703, %v2879, 0.0
  %v2995 = vadd.f32 %v2993, %v2994
  %2996 = vadd.xlane.f32.xlu0 %v2995
  %v2997 = vpop.xlane.xlu0 %2996
  %v2998 = vadd.f32 %v2880, %v2881
  %v2999 = vadd.f32 %v2998, %v2882
  %v3000 = vadd.f32 %v2999, %v2883
  %v3001 = vadd.f32 %v3000, %v2884
  %v3002 = vadd.f32 %v3001, %v2885
  %v3003 = vsel %vm2703, %v2886, 0.0
  %v3004 = vadd.f32 %v3002, %v3003
  %3005 = vadd.xlane.f32.xlu0 %v3004
  %v3006 = vpop.xlane.xlu0 %3005
  %v3007 = vadd.f32 %v2887, %v2888
  %v3008 = vadd.f32 %v3007, %v2889
  %v3009 = vadd.f32 %v3008, %v2890
  %v3010 = vadd.f32 %v3009, %v2891
  %v3011 = vadd.f32 %v3010, %v2892
  %v3012 = vsel %vm2703, %v2893, 0.0
  %v3013 = vadd.f32 %v3011, %v3012
  %3014 = vadd.xlane.f32.xlu0 %v3013
  %v3015 = vpop.xlane.xlu0 %3014
  %v3016 = vadd.f32 %v2894, %v2895
  %v3017 = vadd.f32 %v3016, %v2896
  %v3018 = vadd.f32 %v3017, %v2897
  %v3019 = vadd.f32 %v3018, %v2898
  %v3020 = vadd.f32 %v3019, %v2899
  %v3021 = vsel %vm2703, %v2900, 0.0
  %v3022 = vadd.f32 %v3020, %v3021
  %3023 = vadd.xlane.f32.xlu0 %v3022
  %v3024 = vpop.xlane.xlu0 %3023
  %v3025 = vadd.f32 %v2901, %v2902
  %v3026 = vadd.f32 %v3025, %v2903
  %v3027 = vadd.f32 %v3026, %v2904
  %v3028 = vadd.f32 %v3027, %v2905
  %v3029 = vadd.f32 %v3028, %v2906
  %v3030 = vsel %vm2703, %v2907, 0.0
  %v3031 = vadd.f32 %v3029, %v3030
  %3032 = vadd.xlane.f32.xlu0 %v3031
  %v3033 = vpop.xlane.xlu0 %3032
  %v3034 = vadd.f32 %v2908, %v2909
  %v3035 = vadd.f32 %v3034, %v2910
  %v3036 = vadd.f32 %v3035, %v2911
  %v3037 = vadd.f32 %v3036, %v2912
  %v3038 = vadd.f32 %v3037, %v2913
  %v3039 = vsel %vm2703, %v2914, 0.0
  %v3040 = vadd.f32 %v3038, %v3039
  %3041 = vadd.xlane.f32.xlu0 %v3040
  %v3042 = vpop.xlane.xlu0 %3041
  %v3043 = vadd.f32 %v2915, %v2916
  %v3044 = vadd.f32 %v3043, %v2917
  %v3045 = vadd.f32 %v3044, %v2918
  %v3046 = vadd.f32 %v3045, %v2919
  %v3047 = vadd.f32 %v3046, %v2920
  %v3048 = vsel %vm2703, %v2921, 0.0
  %v3049 = vadd.f32 %v3047, %v3048
  %3050 = vadd.xlane.f32.xlu0 %v3049
  %v3051 = vpop.xlane.xlu0 %3050
  %v3052 = vadd.f32 %v2922, %v2923
  %v3053 = vadd.f32 %v3052, %v2924
  %v3054 = vadd.f32 %v3053, %v2925
  %v3055 = vadd.f32 %v3054, %v2926
  %v3056 = vadd.f32 %v3055, %v2927
  %v3057 = vsel %vm2703, %v2928, 0.0
  %v3058 = vadd.f32 %v3056, %v3057
  %3059 = vadd.xlane.f32.xlu0 %v3058
  %v3060 = vpop.xlane.xlu0 %3059
  %v3061 = vadd.f32 %v2929, %v2930
  %v3062 = vadd.f32 %v3061, %v2931
  %v3063 = vadd.f32 %v3062, %v2932
  %v3064 = vadd.f32 %v3063, %v2933
  %v3065 = vadd.f32 %v3064, %v2934
  %v3066 = vsel %vm2703, %v2935, 0.0
  %v3067 = vadd.f32 %v3065, %v3066
  %3068 = vadd.xlane.f32.xlu0 %v3067
  %v3069 = vpop.xlane.xlu0 %3068
  %v3070 = vadd.f32 %v2936, %v2937
  %v3071 = vadd.f32 %v3070, %v2938
  %v3072 = vadd.f32 %v3071, %v2939
  %v3073 = vadd.f32 %v3072, %v2940
  %v3074 = vadd.f32 %v3073, %v2941
  %v3075 = vsel %vm2703, %v2942, 0.0
  %v3076 = vadd.f32 %v3074, %v3075
  %3077 = vadd.xlane.f32.xlu0 %v3076
  %v3078 = vpop.xlane.xlu0 %3077
  %v3079 = vadd.f32 %v2943, %v2944
  %v3080 = vadd.f32 %v3079, %v2945
  %v3081 = vadd.f32 %v3080, %v2946
  %v3082 = vadd.f32 %v3081, %v2947
  %v3083 = vadd.f32 %v3082, %v2948
  %v3084 = vsel %vm2703, %v2949, 0.0
  %v3085 = vadd.f32 %v3083, %v3084
  %3086 = vadd.xlane.f32.xlu0 %v3085
  %v3087 = vpop.xlane.xlu0 %3086
  %v3088 = vadd.f32 %v2950, %v2951
  %v3089 = vadd.f32 %v3088, %v2952
  %v3090 = vadd.f32 %v3089, %v2953
  %v3091 = vadd.f32 %v3090, %v2954
  %v3092 = vadd.f32 %v3091, %v2955
  %v3093 = vsel %vm2703, %v2956, 0.0
  %v3094 = vadd.f32 %v3092, %v3093
  %3095 = vadd.xlane.f32.xlu0 %v3094
  %v3096 = vpop.xlane.xlu0 %3095
  %v3097 = vadd.f32 %v2957, %v2958
  %v3098 = vadd.f32 %v3097, %v2959
  %v3099 = vadd.f32 %v3098, %v2960
  %v3100 = vadd.f32 %v3099, %v2961
  %v3101 = vadd.f32 %v3100, %v2962
  %v3102 = vsel %vm2703, %v2963, 0.0
  %v3103 = vadd.f32 %v3101, %v3102
  %3104 = vadd.xlane.f32.xlu0 %v3103
  %v3105 = vpop.xlane.xlu0 %3104
  %v3106 = vadd.f32 %v2964, %v2965
  %v3107 = vadd.f32 %v3106, %v2966
  %v3108 = vadd.f32 %v3107, %v2967
  %v3109 = vadd.f32 %v3108, %v2968
  %v3110 = vadd.f32 %v3109, %v2969
  %v3111 = vsel %vm2703, %v2970, 0.0
  %v3112 = vadd.f32 %v3110, %v3111
  %3113 = vadd.xlane.f32.xlu0 %v3112
  %v3114 = vpop.xlane.xlu0 %3113
  %v3115 = vmul.f32 %v2979, 0.0012755102
  %v3116 = vmul.f32 %v2988, 0.0012755102
  %v3117 = vmul.f32 %v2997, 0.0012755102
  %v3118 = vmul.f32 %v3006, 0.0012755102
  %v3119 = vmul.f32 %v3015, 0.0012755102
  %v3120 = vmul.f32 %v3024, 0.0012755102
  %v3121 = vmul.f32 %v3033, 0.0012755102
  %v3122 = vmul.f32 %v3042, 0.0012755102
  %v3123 = vmul.f32 %v3051, 0.0012755102
  %v3124 = vmul.f32 %v3060, 0.0012755102
  %v3125 = vmul.f32 %v3069, 0.0012755102
  %v3126 = vmul.f32 %v3078, 0.0012755102
  %v3127 = vmul.f32 %v3087, 0.0012755102
  %v3128 = vmul.f32 %v3096, 0.0012755102
  %v3129 = vmul.f32 %v3105, 0.0012755102
  %v3130 = vmul.f32 %v3114, 0.0012755102
  %v3131 = vmul.f32 %v2843, %v2843
  %v3132 = vmul.f32 %v2844, %v2844
  %v3133 = vmul.f32 %v2845, %v2845
  %v3134 = vmul.f32 %v2846, %v2846
  %v3135 = vmul.f32 %v2847, %v2847
  %v3136 = vmul.f32 %v2848, %v2848
  %v3137 = vmul.f32 %v2849, %v2849
  %v3138 = vmul.f32 %v2850, %v2850
  %v3139 = vmul.f32 %v2851, %v2851
  %v3140 = vmul.f32 %v2852, %v2852
  %v3141 = vmul.f32 %v2853, %v2853
  %v3142 = vmul.f32 %v2854, %v2854
  %v3143 = vmul.f32 %v2855, %v2855
  %v3144 = vmul.f32 %v2856, %v2856
  %v3145 = vmul.f32 %v2857, %v2857
  %v3146 = vmul.f32 %v2858, %v2858
  %v3147 = vsub.f32 %v3115, %v3131
  %v3148 = vsub.f32 %v3116, %v3132
  %v3149 = vsub.f32 %v3117, %v3133
  %v3150 = vsub.f32 %v3118, %v3134
  %v3151 = vsub.f32 %v3119, %v3135
  %v3152 = vsub.f32 %v3120, %v3136
  %v3153 = vsub.f32 %v3121, %v3137
  %v3154 = vsub.f32 %v3122, %v3138
  %v3155 = vsub.f32 %v3123, %v3139
  %v3156 = vsub.f32 %v3124, %v3140
  %v3157 = vsub.f32 %v3125, %v3141
  %v3158 = vsub.f32 %v3126, %v3142
  %v3159 = vsub.f32 %v3127, %v3143
  %v3160 = vsub.f32 %v3128, %v3144
  %v3161 = vsub.f32 %v3129, %v3145
  %v3162 = vsub.f32 %v3130, %v3146
  %v3163 = vmax.f32 %v3147, 0.0
  %v3164 = vmax.f32 %v3148, 0.0
  %v3165 = vmax.f32 %v3149, 0.0
  %v3166 = vmax.f32 %v3150, 0.0
  %v3167 = vmax.f32 %v3151, 0.0
  %v3168 = vmax.f32 %v3152, 0.0
  %v3169 = vmax.f32 %v3153, 0.0
  %v3170 = vmax.f32 %v3154, 0.0
  %v3171 = vmax.f32 %v3155, 0.0
  %v3172 = vmax.f32 %v3156, 0.0
  %v3173 = vmax.f32 %v3157, 0.0
  %v3174 = vmax.f32 %v3158, 0.0
  %v3175 = vmax.f32 %v3159, 0.0
  %v3176 = vmax.f32 %v3160, 0.0
  %v3177 = vmax.f32 %v3161, 0.0
  %v3178 = vmax.f32 %v3162, 0.0
  %v3179 = vadd.f32 %v3163, 1e-05
  %v3180 = vadd.f32 %v3164, 1e-05
  %v3181 = vadd.f32 %v3165, 1e-05
  %v3182 = vadd.f32 %v3166, 1e-05
  %v3183 = vadd.f32 %v3167, 1e-05
  %v3184 = vadd.f32 %v3168, 1e-05
  %v3185 = vadd.f32 %v3169, 1e-05
  %v3186 = vadd.f32 %v3170, 1e-05
  %v3187 = vadd.f32 %v3171, 1e-05
  %v3188 = vadd.f32 %v3172, 1e-05
  %v3189 = vadd.f32 %v3173, 1e-05
  %v3190 = vadd.f32 %v3174, 1e-05
  %v3191 = vadd.f32 %v3175, 1e-05
  %v3192 = vadd.f32 %v3176, 1e-05
  %v3193 = vadd.f32 %v3177, 1e-05
  %v3194 = vadd.f32 %v3178, 1e-05
  %v3195 = vrsqrt.pop %v3179
  %v3196 = vmul.f32 %v3195, %v3179
  %v3197 = vmul.f32 %v3196, %v3195
  %v3198 = vmul.f32 0.5, %v3197
  %v3199 = vsub.f32 1.5, %v3198
  %v3200 = vmul.f32 %v3195, %v3199
  %vm3201 = vweird.f32 %v3179
  %vm3202 = vweird.f32 %v3195
  %vm3203 = vmor %vm3201, %vm3202
  %v3204 = vsel %vm3203, %v3195, %v3200
  %v3205 = vrsqrt.pop %v3180
  %v3206 = vmul.f32 %v3205, %v3180
  %v3207 = vmul.f32 %v3206, %v3205
  %v3208 = vmul.f32 0.5, %v3207
  %v3209 = vsub.f32 1.5, %v3208
  %v3210 = vmul.f32 %v3205, %v3209
  %vm3211 = vweird.f32 %v3180
  %vm3212 = vweird.f32 %v3205
  %vm3213 = vmor %vm3211, %vm3212
  %v3214 = vsel %vm3213, %v3205, %v3210
  %v3215 = vrsqrt.pop %v3181
  %v3216 = vmul.f32 %v3215, %v3181
  %v3217 = vmul.f32 %v3216, %v3215
  %v3218 = vmul.f32 0.5, %v3217
  %v3219 = vsub.f32 1.5, %v3218
  %v3220 = vmul.f32 %v3215, %v3219
  %vm3221 = vweird.f32 %v3181
  %vm3222 = vweird.f32 %v3215
  %vm3223 = vmor %vm3221, %vm3222
  %v3224 = vsel %vm3223, %v3215, %v3220
  %v3225 = vrsqrt.pop %v3182
  %v3226 = vmul.f32 %v3225, %v3182
  %v3227 = vmul.f32 %v3226, %v3225
  %v3228 = vmul.f32 0.5, %v3227
  %v3229 = vsub.f32 1.5, %v3228
  %v3230 = vmul.f32 %v3225, %v3229
  %vm3231 = vweird.f32 %v3182
  %vm3232 = vweird.f32 %v3225
  %vm3233 = vmor %vm3231, %vm3232
  %v3234 = vsel %vm3233, %v3225, %v3230
  %v3235 = vrsqrt.pop %v3183
  %v3236 = vmul.f32 %v3235, %v3183
  %v3237 = vmul.f32 %v3236, %v3235
  %v3238 = vmul.f32 0.5, %v3237
  %v3239 = vsub.f32 1.5, %v3238
  %v3240 = vmul.f32 %v3235, %v3239
  %vm3241 = vweird.f32 %v3183
  %vm3242 = vweird.f32 %v3235
  %vm3243 = vmor %vm3241, %vm3242
  %v3244 = vsel %vm3243, %v3235, %v3240
  %v3245 = vrsqrt.pop %v3184
  %v3246 = vmul.f32 %v3245, %v3184
  %v3247 = vmul.f32 %v3246, %v3245
  %v3248 = vmul.f32 0.5, %v3247
  %v3249 = vsub.f32 1.5, %v3248
  %v3250 = vmul.f32 %v3245, %v3249
  %vm3251 = vweird.f32 %v3184
  %vm3252 = vweird.f32 %v3245
  %vm3253 = vmor %vm3251, %vm3252
  %v3254 = vsel %vm3253, %v3245, %v3250
  %v3255 = vrsqrt.pop %v3185
  %v3256 = vmul.f32 %v3255, %v3185
  %v3257 = vmul.f32 %v3256, %v3255
  %v3258 = vmul.f32 0.5, %v3257
  %v3259 = vsub.f32 1.5, %v3258
  %v3260 = vmul.f32 %v3255, %v3259
  %vm3261 = vweird.f32 %v3185
  %vm3262 = vweird.f32 %v3255
  %vm3263 = vmor %vm3261, %vm3262
  %v3264 = vsel %vm3263, %v3255, %v3260
  %v3265 = vrsqrt.pop %v3186
  %v3266 = vmul.f32 %v3265, %v3186
  %v3267 = vmul.f32 %v3266, %v3265
  %v3268 = vmul.f32 0.5, %v3267
  %v3269 = vsub.f32 1.5, %v3268
  %v3270 = vmul.f32 %v3265, %v3269
  %vm3271 = vweird.f32 %v3186
  %vm3272 = vweird.f32 %v3265
  %vm3273 = vmor %vm3271, %vm3272
  %v3274 = vsel %vm3273, %v3265, %v3270
  %v3275 = vrsqrt.pop %v3187
  %v3276 = vmul.f32 %v3275, %v3187
  %v3277 = vmul.f32 %v3276, %v3275
  %v3278 = vmul.f32 0.5, %v3277
  %v3279 = vsub.f32 1.5, %v3278
  %v3280 = vmul.f32 %v3275, %v3279
  %vm3281 = vweird.f32 %v3187
  %vm3282 = vweird.f32 %v3275
  %vm3283 = vmor %vm3281, %vm3282
  %v3284 = vsel %vm3283, %v3275, %v3280
  %v3285 = vrsqrt.pop %v3188
  %v3286 = vmul.f32 %v3285, %v3188
  %v3287 = vmul.f32 %v3286, %v3285
  %v3288 = vmul.f32 0.5, %v3287
  %v3289 = vsub.f32 1.5, %v3288
  %v3290 = vmul.f32 %v3285, %v3289
  %vm3291 = vweird.f32 %v3188
  %vm3292 = vweird.f32 %v3285
  %vm3293 = vmor %vm3291, %vm3292
  %v3294 = vsel %vm3293, %v3285, %v3290
  %v3295 = vrsqrt.pop %v3189
  %v3296 = vmul.f32 %v3295, %v3189
  %v3297 = vmul.f32 %v3296, %v3295
  %v3298 = vmul.f32 0.5, %v3297
  %v3299 = vsub.f32 1.5, %v3298
  %v3300 = vmul.f32 %v3295, %v3299
  %vm3301 = vweird.f32 %v3189
  %vm3302 = vweird.f32 %v3295
  %vm3303 = vmor %vm3301, %vm3302
  %v3304 = vsel %vm3303, %v3295, %v3300
  %v3305 = vrsqrt.pop %v3190
  %v3306 = vmul.f32 %v3305, %v3190
  %v3307 = vmul.f32 %v3306, %v3305
  %v3308 = vmul.f32 0.5, %v3307
  %v3309 = vsub.f32 1.5, %v3308
  %v3310 = vmul.f32 %v3305, %v3309
  %vm3311 = vweird.f32 %v3190
  %vm3312 = vweird.f32 %v3305
  %vm3313 = vmor %vm3311, %vm3312
  %v3314 = vsel %vm3313, %v3305, %v3310
  %v3315 = vrsqrt.pop %v3191
  %v3316 = vmul.f32 %v3315, %v3191
  %v3317 = vmul.f32 %v3316, %v3315
  %v3318 = vmul.f32 0.5, %v3317
  %v3319 = vsub.f32 1.5, %v3318
  %v3320 = vmul.f32 %v3315, %v3319
  %vm3321 = vweird.f32 %v3191
  %vm3322 = vweird.f32 %v3315
  %vm3323 = vmor %vm3321, %vm3322
  %v3324 = vsel %vm3323, %v3315, %v3320
  %v3325 = vrsqrt.pop %v3192
  %v3326 = vmul.f32 %v3325, %v3192
  %v3327 = vmul.f32 %v3326, %v3325
  %v3328 = vmul.f32 0.5, %v3327
  %v3329 = vsub.f32 1.5, %v3328
  %v3330 = vmul.f32 %v3325, %v3329
  %vm3331 = vweird.f32 %v3192
  %vm3332 = vweird.f32 %v3325
  %vm3333 = vmor %vm3331, %vm3332
  %v3334 = vsel %vm3333, %v3325, %v3330
  %v3335 = vrsqrt.pop %v3193
  %v3336 = vmul.f32 %v3335, %v3193
  %v3337 = vmul.f32 %v3336, %v3335
  %v3338 = vmul.f32 0.5, %v3337
  %v3339 = vsub.f32 1.5, %v3338
  %v3340 = vmul.f32 %v3335, %v3339
  %vm3341 = vweird.f32 %v3193
  %vm3342 = vweird.f32 %v3335
  %vm3343 = vmor %vm3341, %vm3342
  %v3344 = vsel %vm3343, %v3335, %v3340
  %v3345 = vrsqrt.pop %v3194
  %v3346 = vmul.f32 %v3345, %v3194
  %v3347 = vmul.f32 %v3346, %v3345
  %v3348 = vmul.f32 0.5, %v3347
  %v3349 = vsub.f32 1.5, %v3348
  %v3350 = vmul.f32 %v3345, %v3349
  %vm3351 = vweird.f32 %v3194
  %vm3352 = vweird.f32 %v3345
  %vm3353 = vmor %vm3351, %vm3352
  %v3354 = vsel %vm3353, %v3345, %v3350
  %v3355 = vld [vmem:[%s2] sm:$0xff]
  %v3356 = vld [vmem:[%s2 + $0x8] sm:$0xff]
  %v3357 = vld [vmem:[%s2 + $0x10] sm:$0xff]
  %v3358 = vld [vmem:[%s2 + $0x18] sm:$0xff]
  %v3359 = vld [vmem:[%s2 + $0x20] sm:$0xff]
  %v3360 = vld [vmem:[%s2 + $0x28] sm:$0xff]
  %v3361 = vld [vmem:[%s2 + $0x30] sm:$0xff]
  %v3362 = vld [vmem:[%s2 + $0x38] sm:$0xff]
  %v3363 = vld [vmem:[%s2 + $0x40] sm:$0xff]
  %v3364 = vld [vmem:[%s2 + $0x48] sm:$0xff]
  %v3365 = vld [vmem:[%s2 + $0x50] sm:$0xff]
  %v3366 = vld [vmem:[%s2 + $0x58] sm:$0xff]
  %v3367 = vld [vmem:[%s2 + $0x60] sm:$0xff]
  %v3368 = vld [vmem:[%s2 + $0x68] sm:$0xff]
  %v3369 = vld [vmem:[%s2 + $0x70] sm:$0xff]
  %v3370 = vld [vmem:[%s2 + $0x78] sm:$0xff]
  %v3371 = vmul.f32 %v3355, %v3204
  %v3372 = vmul.f32 %v3356, %v3214
  %v3373 = vmul.f32 %v3357, %v3224
  %v3374 = vmul.f32 %v3358, %v3234
  %v3375 = vmul.f32 %v3359, %v3244
  %v3376 = vmul.f32 %v3360, %v3254
  %v3377 = vmul.f32 %v3361, %v3264
  %v3378 = vmul.f32 %v3362, %v3274
  %v3379 = vmul.f32 %v3363, %v3284
  %v3380 = vmul.f32 %v3364, %v3294
  %v3381 = vmul.f32 %v3365, %v3304
  %v3382 = vmul.f32 %v3366, %v3314
  %v3383 = vmul.f32 %v3367, %v3324
  %v3384 = vmul.f32 %v3368, %v3334
  %v3385 = vmul.f32 %v3369, %v3344
  %v3386 = vmul.f32 %v3370, %v3354
  %v3387 = vmul.f32 %v2843, %v3371
  %v3388 = vmul.f32 %v2844, %v3372
  %v3389 = vmul.f32 %v2845, %v3373
  %v3390 = vmul.f32 %v2846, %v3374
  %v3391 = vmul.f32 %v2847, %v3375
  %v3392 = vmul.f32 %v2848, %v3376
  %v3393 = vmul.f32 %v2849, %v3377
  %v3394 = vmul.f32 %v2850, %v3378
  %v3395 = vmul.f32 %v2851, %v3379
  %v3396 = vmul.f32 %v2852, %v3380
  %v3397 = vmul.f32 %v2853, %v3381
  %v3398 = vmul.f32 %v2854, %v3382
  %v3399 = vmul.f32 %v2855, %v3383
  %v3400 = vmul.f32 %v2856, %v3384
  %v3401 = vmul.f32 %v2857, %v3385
  %v3402 = vmul.f32 %v2858, %v3386
  %3419 = vrot.lane.b32.xlu0 %v3387, 1
  %v3420 = vpop.permute.xlu0 %3419
  %3421 = vrot.lane.b32.xlu0 %v3388, 1
  %v3422 = vpop.permute.xlu0 %3421
  %3423 = vrot.lane.b32.xlu0 %v3389, 1
  %v3424 = vpop.permute.xlu0 %3423
  %3425 = vrot.lane.b32.xlu0 %v3390, 1
  %v3426 = vpop.permute.xlu0 %3425
  %3427 = vrot.lane.b32.xlu0 %v3391, 1
  %v3428 = vpop.permute.xlu0 %3427
  %3429 = vrot.lane.b32.xlu0 %v3392, 1
  %v3430 = vpop.permute.xlu0 %3429
  %3431 = vrot.lane.b32.xlu0 %v3393, 1
  %v3432 = vpop.permute.xlu0 %3431
  %3433 = vrot.lane.b32.xlu0 %v3394, 1
  %v3434 = vpop.permute.xlu0 %3433
  %3435 = vrot.lane.b32.xlu0 %v3395, 1
  %v3436 = vpop.permute.xlu0 %3435
  %3437 = vrot.lane.b32.xlu0 %v3396, 1
  %v3438 = vpop.permute.xlu0 %3437
  %3439 = vrot.lane.b32.xlu0 %v3397, 1
  %v3440 = vpop.permute.xlu0 %3439
  %3441 = vrot.lane.b32.xlu0 %v3398, 1
  %v3442 = vpop.permute.xlu0 %3441
  %3443 = vrot.lane.b32.xlu0 %v3399, 1
  %v3444 = vpop.permute.xlu0 %3443
  %3445 = vrot.lane.b32.xlu0 %v3400, 1
  %v3446 = vpop.permute.xlu0 %3445
  %3447 = vrot.lane.b32.xlu0 %v3401, 1
  %v3448 = vpop.permute.xlu0 %3447
  %3449 = vrot.lane.b32.xlu0 %v3402, 1
  %v3450 = vpop.permute.xlu0 %3449
  %v3467 = vsub.f32 %v3355, %v3420
  %v3468 = vsub.f32 %v3356, %v3422
  %v3469 = vsub.f32 %v3357, %v3424
  %v3470 = vsub.f32 %v3358, %v3426
  %v3471 = vsub.f32 %v3359, %v3428
  %v3472 = vsub.f32 %v3360, %v3430
  %v3473 = vsub.f32 %v3361, %v3432
  %v3474 = vsub.f32 %v3362, %v3434
  %v3475 = vsub.f32 %v3363, %v3436
  %v3476 = vsub.f32 %v3364, %v3438
  %v3477 = vsub.f32 %v3365, %v3440
  %v3478 = vsub.f32 %v3366, %v3442
  %v3479 = vsub.f32 %v3367, %v3444
  %v3480 = vsub.f32 %v3368, %v3446
  %v3481 = vsub.f32 %v3369, %v3448
  %v3482 = vsub.f32 %v3370, %v3450
  %3484 = vset.pattern.permute.xlu0 0
  %3485 = vperm.xlu0 %3484, %v3371
  %v3486 = vpop.permute.xlu0 %3485
  %3489 = vset.pattern.permute.xlu0 0
  %3490 = vperm.xlu0 %3489, %v3372
  %v3491 = vpop.permute.xlu0 %3490
  %3494 = vset.pattern.permute.xlu0 0
  %3495 = vperm.xlu0 %3494, %v3373
  %v3496 = vpop.permute.xlu0 %3495
  %3499 = vset.pattern.permute.xlu0 0
  %3500 = vperm.xlu0 %3499, %v3374
  %v3501 = vpop.permute.xlu0 %3500
  %3504 = vset.pattern.permute.xlu0 0
  %3505 = vperm.xlu0 %3504, %v3375
  %v3506 = vpop.permute.xlu0 %3505
  %3509 = vset.pattern.permute.xlu0 0
  %3510 = vperm.xlu0 %3509, %v3376
  %v3511 = vpop.permute.xlu0 %3510
  %3514 = vset.pattern.permute.xlu0 0
  %3515 = vperm.xlu0 %3514, %v3377
  %v3516 = vpop.permute.xlu0 %3515
  %3519 = vset.pattern.permute.xlu0 0
  %3520 = vperm.xlu0 %3519, %v3378
  %v3521 = vpop.permute.xlu0 %3520
  %3524 = vset.pattern.permute.xlu0 0
  %3525 = vperm.xlu0 %3524, %v3379
  %v3526 = vpop.permute.xlu0 %3525
  %3529 = vset.pattern.permute.xlu0 0
  %3530 = vperm.xlu0 %3529, %v3380
  %v3531 = vpop.permute.xlu0 %3530
  %3534 = vset.pattern.permute.xlu0 0
  %3535 = vperm.xlu0 %3534, %v3381
  %v3536 = vpop.permute.xlu0 %3535
  %3539 = vset.pattern.permute.xlu0 0
  %3540 = vperm.xlu0 %3539, %v3382
  %v3541 = vpop.permute.xlu0 %3540
  %3544 = vset.pattern.permute.xlu0 0
  %3545 = vperm.xlu0 %3544, %v3383
  %v3546 = vpop.permute.xlu0 %3545
  %3549 = vset.pattern.permute.xlu0 0
  %3550 = vperm.xlu0 %3549, %v3384
  %v3551 = vpop.permute.xlu0 %3550
  %3554 = vset.pattern.permute.xlu0 0
  %3555 = vperm.xlu0 %3554, %v3385
  %v3556 = vpop.permute.xlu0 %3555
  %3559 = vset.pattern.permute.xlu0 0
  %3560 = vperm.xlu0 %3559, %v3386
  %v3561 = vpop.permute.xlu0 %3560
  %v3563 = vmul.f32 %v1483, %v3486
  %v3564 = vmul.f32 %v1679, %v3486
  %v3565 = vmul.f32 %v1875, %v3486
  %v3566 = vmul.f32 %v2071, %v3486
  %v3567 = vmul.f32 %v2267, %v3486
  %v3568 = vmul.f32 %v2463, %v3486
  %v3569 = vmul.f32 %v2659, %v3486
  %v3570 = vmul.f32 %v1485, %v3491
  %v3571 = vmul.f32 %v1681, %v3491
  %v3572 = vmul.f32 %v1877, %v3491
  %v3573 = vmul.f32 %v2073, %v3491
  %v3574 = vmul.f32 %v2269, %v3491
  %v3575 = vmul.f32 %v2465, %v3491
  %v3576 = vmul.f32 %v2661, %v3491
  %v3577 = vmul.f32 %v1488, %v3496
  %v3578 = vmul.f32 %v1684, %v3496
  %v3579 = vmul.f32 %v1880, %v3496
  %v3580 = vmul.f32 %v2076, %v3496
  %v3581 = vmul.f32 %v2272, %v3496
  %v3582 = vmul.f32 %v2468, %v3496
  %v3583 = vmul.f32 %v2664, %v3496
  %v3584 = vmul.f32 %v1490, %v3501
  %v3585 = vmul.f32 %v1686, %v3501
  %v3586 = vmul.f32 %v1882, %v3501
  %v3587 = vmul.f32 %v2078, %v3501
  %v3588 = vmul.f32 %v2274, %v3501
  %v3589 = vmul.f32 %v2470, %v3501
  %v3590 = vmul.f32 %v2666, %v3501
  %v3591 = vmul.f32 %v1493, %v3506
  %v3592 = vmul.f32 %v1689, %v3506
  %v3593 = vmul.f32 %v1885, %v3506
  %v3594 = vmul.f32 %v2081, %v3506
  %v3595 = vmul.f32 %v2277, %v3506
  %v3596 = vmul.f32 %v2473, %v3506
  %v3597 = vmul.f32 %v2669, %v3506
  %v3598 = vmul.f32 %v1495, %v3511
  %v3599 = vmul.f32 %v1691, %v3511
  %v3600 = vmul.f32 %v1887, %v3511
  %v3601 = vmul.f32 %v2083, %v3511
  %v3602 = vmul.f32 %v2279, %v3511
  %v3603 = vmul.f32 %v2475, %v3511
  %v3604 = vmul.f32 %v2671, %v3511
  %v3605 = vmul.f32 %v1498, %v3516
  %v3606 = vmul.f32 %v1694, %v3516
  %v3607 = vmul.f32 %v1890, %v3516
  %v3608 = vmul.f32 %v2086, %v3516
  %v3609 = vmul.f32 %v2282, %v3516
  %v3610 = vmul.f32 %v2478, %v3516
  %v3611 = vmul.f32 %v2674, %v3516
  %v3612 = vmul.f32 %v1500, %v3521
  %v3613 = vmul.f32 %v1696, %v3521
  %v3614 = vmul.f32 %v1892, %v3521
  %v3615 = vmul.f32 %v2088, %v3521
  %v3616 = vmul.f32 %v2284, %v3521
  %v3617 = vmul.f32 %v2480, %v3521
  %v3618 = vmul.f32 %v2676, %v3521
  %v3619 = vmul.f32 %v1503, %v3526
  %v3620 = vmul.f32 %v1699, %v3526
  %v3621 = vmul.f32 %v1895, %v3526
  %v3622 = vmul.f32 %v2091, %v3526
  %v3623 = vmul.f32 %v2287, %v3526
  %v3624 = vmul.f32 %v2483, %v3526
  %v3625 = vmul.f32 %v2679, %v3526
  %v3626 = vmul.f32 %v1505, %v3531
  %v3627 = vmul.f32 %v1701, %v3531
  %v3628 = vmul.f32 %v1897, %v3531
  %v3629 = vmul.f32 %v2093, %v3531
  %v3630 = vmul.f32 %v2289, %v3531
  %v3631 = vmul.f32 %v2485, %v3531
  %v3632 = vmul.f32 %v2681, %v3531
  %v3633 = vmul.f32 %v1508, %v3536
  %v3634 = vmul.f32 %v1704, %v3536
  %v3635 = vmul.f32 %v1900, %v3536
  %v3636 = vmul.f32 %v2096, %v3536
  %v3637 = vmul.f32 %v2292, %v3536
  %v3638 = vmul.f32 %v2488, %v3536
  %v3639 = vmul.f32 %v2684, %v3536
  %v3640 = vmul.f32 %v1510, %v3541
  %v3641 = vmul.f32 %v1706, %v3541
  %v3642 = vmul.f32 %v1902, %v3541
  %v3643 = vmul.f32 %v2098, %v3541
  %v3644 = vmul.f32 %v2294, %v3541
  %v3645 = vmul.f32 %v2490, %v3541
  %v3646 = vmul.f32 %v2686, %v3541
  %v3647 = vmul.f32 %v1513, %v3546
  %v3648 = vmul.f32 %v1709, %v3546
  %v3649 = vmul.f32 %v1905, %v3546
  %v3650 = vmul.f32 %v2101, %v3546
  %v3651 = vmul.f32 %v2297, %v3546
  %v3652 = vmul.f32 %v2493, %v3546
  %v3653 = vmul.f32 %v2689, %v3546
  %v3654 = vmul.f32 %v1515, %v3551
  %v3655 = vmul.f32 %v1711, %v3551
  %v3656 = vmul.f32 %v1907, %v3551
  %v3657 = vmul.f32 %v2103, %v3551
  %v3658 = vmul.f32 %v2299, %v3551
  %v3659 = vmul.f32 %v2495, %v3551
  %v3660 = vmul.f32 %v2691, %v3551
  %v3661 = vmul.f32 %v1518, %v3556
  %v3662 = vmul.f32 %v1714, %v3556
  %v3663 = vmul.f32 %v1910, %v3556
  %v3664 = vmul.f32 %v2106, %v3556
  %v3665 = vmul.f32 %v2302, %v3556
  %v3666 = vmul.f32 %v2498, %v3556
  %v3667 = vmul.f32 %v2694, %v3556
  %v3668 = vmul.f32 %v1520, %v3561
  %v3669 = vmul.f32 %v1716, %v3561
  %v3670 = vmul.f32 %v1912, %v3561
  %v3671 = vmul.f32 %v2108, %v3561
  %v3672 = vmul.f32 %v2304, %v3561
  %v3673 = vmul.f32 %v2500, %v3561
  %v3674 = vmul.f32 %v2696, %v3561
  %3676 = vset.pattern.permute.xlu0 1
  %3677 = vperm.xlu0 %3676, %v3467
  %v3678 = vpop.permute.xlu0 %3677
  %3681 = vset.pattern.permute.xlu0 1
  %3682 = vperm.xlu0 %3681, %v3468
  %v3683 = vpop.permute.xlu0 %3682
  %3686 = vset.pattern.permute.xlu0 1
  %3687 = vperm.xlu0 %3686, %v3469
  %v3688 = vpop.permute.xlu0 %3687
  %3691 = vset.pattern.permute.xlu0 1
  %3692 = vperm.xlu0 %3691, %v3470
  %v3693 = vpop.permute.xlu0 %3692
  %3696 = vset.pattern.permute.xlu0 1
  %3697 = vperm.xlu0 %3696, %v3471
  %v3698 = vpop.permute.xlu0 %3697
  %3701 = vset.pattern.permute.xlu0 1
  %3702 = vperm.xlu0 %3701, %v3472
  %v3703 = vpop.permute.xlu0 %3702
  %3706 = vset.pattern.permute.xlu0 1
  %3707 = vperm.xlu0 %3706, %v3473
  %v3708 = vpop.permute.xlu0 %3707
  %3711 = vset.pattern.permute.xlu0 1
  %3712 = vperm.xlu0 %3711, %v3474
  %v3713 = vpop.permute.xlu0 %3712
  %3716 = vset.pattern.permute.xlu0 1
  %3717 = vperm.xlu0 %3716, %v3475
  %v3718 = vpop.permute.xlu0 %3717
  %3721 = vset.pattern.permute.xlu0 1
  %3722 = vperm.xlu0 %3721, %v3476
  %v3723 = vpop.permute.xlu0 %3722
  %3726 = vset.pattern.permute.xlu0 1
  %3727 = vperm.xlu0 %3726, %v3477
  %v3728 = vpop.permute.xlu0 %3727
  %3731 = vset.pattern.permute.xlu0 1
  %3732 = vperm.xlu0 %3731, %v3478
  %v3733 = vpop.permute.xlu0 %3732
  %3736 = vset.pattern.permute.xlu0 1
  %3737 = vperm.xlu0 %3736, %v3479
  %v3738 = vpop.permute.xlu0 %3737
  %3741 = vset.pattern.permute.xlu0 1
  %3742 = vperm.xlu0 %3741, %v3480
  %v3743 = vpop.permute.xlu0 %3742
  %3746 = vset.pattern.permute.xlu0 1
  %3747 = vperm.xlu0 %3746, %v3481
  %v3748 = vpop.permute.xlu0 %3747
  %3751 = vset.pattern.permute.xlu0 1
  %3752 = vperm.xlu0 %3751, %v3482
  %v3753 = vpop.permute.xlu0 %3752
  %v3755 = vadd.f32 %v3563, %v3678
  %v3756 = vadd.f32 %v3564, %v3678
  %v3757 = vadd.f32 %v3565, %v3678
  %v3758 = vadd.f32 %v3566, %v3678
  %v3759 = vadd.f32 %v3567, %v3678
  %v3760 = vadd.f32 %v3568, %v3678
  %v3761 = vadd.f32 %v3569, %v3678
  %v3762 = vadd.f32 %v3570, %v3683
  %v3763 = vadd.f32 %v3571, %v3683
  %v3764 = vadd.f32 %v3572, %v3683
  %v3765 = vadd.f32 %v3573, %v3683
  %v3766 = vadd.f32 %v3574, %v3683
  %v3767 = vadd.f32 %v3575, %v3683
  %v3768 = vadd.f32 %v3576, %v3683
  %v3769 = vadd.f32 %v3577, %v3688
  %v3770 = vadd.f32 %v3578, %v3688
  %v3771 = vadd.f32 %v3579, %v3688
  %v3772 = vadd.f32 %v3580, %v3688
  %v3773 = vadd.f32 %v3581, %v3688
  %v3774 = vadd.f32 %v3582, %v3688
  %v3775 = vadd.f32 %v3583, %v3688
  %v3776 = vadd.f32 %v3584, %v3693
  %v3777 = vadd.f32 %v3585, %v3693
  %v3778 = vadd.f32 %v3586, %v3693
  %v3779 = vadd.f32 %v3587, %v3693
  %v3780 = vadd.f32 %v3588, %v3693
  %v3781 = vadd.f32 %v3589, %v3693
  %v3782 = vadd.f32 %v3590, %v3693
  %v3783 = vadd.f32 %v3591, %v3698
  %v3784 = vadd.f32 %v3592, %v3698
  %v3785 = vadd.f32 %v3593, %v3698
  %v3786 = vadd.f32 %v3594, %v3698
  %v3787 = vadd.f32 %v3595, %v3698
  %v3788 = vadd.f32 %v3596, %v3698
  %v3789 = vadd.f32 %v3597, %v3698
  %v3790 = vadd.f32 %v3598, %v3703
  %v3791 = vadd.f32 %v3599, %v3703
  %v3792 = vadd.f32 %v3600, %v3703
  %v3793 = vadd.f32 %v3601, %v3703
  %v3794 = vadd.f32 %v3602, %v3703
  %v3795 = vadd.f32 %v3603, %v3703
  %v3796 = vadd.f32 %v3604, %v3703
  %v3797 = vadd.f32 %v3605, %v3708
  %v3798 = vadd.f32 %v3606, %v3708
  %v3799 = vadd.f32 %v3607, %v3708
  %v3800 = vadd.f32 %v3608, %v3708
  %v3801 = vadd.f32 %v3609, %v3708
  %v3802 = vadd.f32 %v3610, %v3708
  %v3803 = vadd.f32 %v3611, %v3708
  %v3804 = vadd.f32 %v3612, %v3713
  %v3805 = vadd.f32 %v3613, %v3713
  %v3806 = vadd.f32 %v3614, %v3713
  %v3807 = vadd.f32 %v3615, %v3713
  %v3808 = vadd.f32 %v3616, %v3713
  %v3809 = vadd.f32 %v3617, %v3713
  %v3810 = vadd.f32 %v3618, %v3713
  %v3811 = vadd.f32 %v3619, %v3718
  %v3812 = vadd.f32 %v3620, %v3718
  %v3813 = vadd.f32 %v3621, %v3718
  %v3814 = vadd.f32 %v3622, %v3718
  %v3815 = vadd.f32 %v3623, %v3718
  %v3816 = vadd.f32 %v3624, %v3718
  %v3817 = vadd.f32 %v3625, %v3718
  %v3818 = vadd.f32 %v3626, %v3723
  %v3819 = vadd.f32 %v3627, %v3723
  %v3820 = vadd.f32 %v3628, %v3723
  %v3821 = vadd.f32 %v3629, %v3723
  %v3822 = vadd.f32 %v3630, %v3723
  %v3823 = vadd.f32 %v3631, %v3723
  %v3824 = vadd.f32 %v3632, %v3723
  %v3825 = vadd.f32 %v3633, %v3728
  %v3826 = vadd.f32 %v3634, %v3728
  %v3827 = vadd.f32 %v3635, %v3728
  %v3828 = vadd.f32 %v3636, %v3728
  %v3829 = vadd.f32 %v3637, %v3728
  %v3830 = vadd.f32 %v3638, %v3728
  %v3831 = vadd.f32 %v3639, %v3728
  %v3832 = vadd.f32 %v3640, %v3733
  %v3833 = vadd.f32 %v3641, %v3733
  %v3834 = vadd.f32 %v3642, %v3733
  %v3835 = vadd.f32 %v3643, %v3733
  %v3836 = vadd.f32 %v3644, %v3733
  %v3837 = vadd.f32 %v3645, %v3733
  %v3838 = vadd.f32 %v3646, %v3733
  %v3839 = vadd.f32 %v3647, %v3738
  %v3840 = vadd.f32 %v3648, %v3738
  %v3841 = vadd.f32 %v3649, %v3738
  %v3842 = vadd.f32 %v3650, %v3738
  %v3843 = vadd.f32 %v3651, %v3738
  %v3844 = vadd.f32 %v3652, %v3738
  %v3845 = vadd.f32 %v3653, %v3738
  %v3846 = vadd.f32 %v3654, %v3743
  %v3847 = vadd.f32 %v3655, %v3743
  %v3848 = vadd.f32 %v3656, %v3743
  %v3849 = vadd.f32 %v3657, %v3743
  %v3850 = vadd.f32 %v3658, %v3743
  %v3851 = vadd.f32 %v3659, %v3743
  %v3852 = vadd.f32 %v3660, %v3743
  %v3853 = vadd.f32 %v3661, %v3748
  %v3854 = vadd.f32 %v3662, %v3748
  %v3855 = vadd.f32 %v3663, %v3748
  %v3856 = vadd.f32 %v3664, %v3748
  %v3857 = vadd.f32 %v3665, %v3748
  %v3858 = vadd.f32 %v3666, %v3748
  %v3859 = vadd.f32 %v3667, %v3748
  %v3860 = vadd.f32 %v3668, %v3753
  %v3861 = vadd.f32 %v3669, %v3753
  %v3862 = vadd.f32 %v3670, %v3753
  %v3863 = vadd.f32 %v3671, %v3753
  %v3864 = vadd.f32 %v3672, %v3753
  %v3865 = vadd.f32 %v3673, %v3753
  %v3866 = vadd.f32 %v3674, %v3753
  %3867 = vst [vmem:[%s3] sm:$0xff] %v3755
  %3868 = vst [vmem:[%s3 + $0x8] sm:$0xff] %v3756
  %3869 = vst [vmem:[%s3 + $0x10] sm:$0xff] %v3757
  %3870 = vst [vmem:[%s3 + $0x18] sm:$0xff] %v3758
  %3871 = vst [vmem:[%s3 + $0x20] sm:$0xff] %v3759
  %3872 = vst [vmem:[%s3 + $0x28] sm:$0xff] %v3760
  %3873 = vst.msk [vmem:[%s3 + $0x30] sm:$0xff] %vm2703, %v3761
  %3874 = vst [vmem:[%s3 + $0x38] sm:$0xff] %v3762
  %3875 = vst [vmem:[%s3 + $0x40] sm:$0xff] %v3763
  %3876 = vst [vmem:[%s3 + $0x48] sm:$0xff] %v3764
  %3877 = vst [vmem:[%s3 + $0x50] sm:$0xff] %v3765
  %3878 = vst [vmem:[%s3 + $0x58] sm:$0xff] %v3766
  %3879 = vst [vmem:[%s3 + $0x60] sm:$0xff] %v3767
  %3880 = vst.msk [vmem:[%s3 + $0x68] sm:$0xff] %vm2703, %v3768
  %3881 = vst [vmem:[%s3 + $0x70] sm:$0xff] %v3769
  %3882 = vst [vmem:[%s3 + $0x78] sm:$0xff] %v3770
  %3883 = vst [vmem:[%s3 + $0x80] sm:$0xff] %v3771
  %3884 = vst [vmem:[%s3 + $0x88] sm:$0xff] %v3772
  %3885 = vst [vmem:[%s3 + $0x90] sm:$0xff] %v3773
  %3886 = vst [vmem:[%s3 + $0x98] sm:$0xff] %v3774
  %3887 = vst.msk [vmem:[%s3 + $0xa0] sm:$0xff] %vm2703, %v3775
  %3888 = vst [vmem:[%s3 + $0xa8] sm:$0xff] %v3776
  %3889 = vst [vmem:[%s3 + $0xb0] sm:$0xff] %v3777
  %3890 = vst [vmem:[%s3 + $0xb8] sm:$0xff] %v3778
  %3891 = vst [vmem:[%s3 + $0xc0] sm:$0xff] %v3779
  %3892 = vst [vmem:[%s3 + $0xc8] sm:$0xff] %v3780
  %3893 = vst [vmem:[%s3 + $0xd0] sm:$0xff] %v3781
  %3894 = vst.msk [vmem:[%s3 + $0xd8] sm:$0xff] %vm2703, %v3782
  %3895 = vst [vmem:[%s3 + $0xe0] sm:$0xff] %v3783
  %3896 = vst [vmem:[%s3 + $0xe8] sm:$0xff] %v3784
  %3897 = vst [vmem:[%s3 + $0xf0] sm:$0xff] %v3785
  %3898 = vst [vmem:[%s3 + $0xf8] sm:$0xff] %v3786
  %3899 = vst [vmem:[%s3 + $0x100] sm:$0xff] %v3787
  %3900 = vst [vmem:[%s3 + $0x108] sm:$0xff] %v3788
  %3901 = vst.msk [vmem:[%s3 + $0x110] sm:$0xff] %vm2703, %v3789
  %3902 = vst [vmem:[%s3 + $0x118] sm:$0xff] %v3790
  %3903 = vst [vmem:[%s3 + $0x120] sm:$0xff] %v3791
  %3904 = vst [vmem:[%s3 + $0x128] sm:$0xff] %v3792
  %3905 = vst [vmem:[%s3 + $0x130] sm:$0xff] %v3793
  %3906 = vst [vmem:[%s3 + $0x138] sm:$0xff] %v3794
  %3907 = vst [vmem:[%s3 + $0x140] sm:$0xff] %v3795
  %3908 = vst.msk [vmem:[%s3 + $0x148] sm:$0xff] %vm2703, %v3796
  %3909 = vst [vmem:[%s3 + $0x150] sm:$0xff] %v3797
  %3910 = vst [vmem:[%s3 + $0x158] sm:$0xff] %v3798
  %3911 = vst [vmem:[%s3 + $0x160] sm:$0xff] %v3799
  %3912 = vst [vmem:[%s3 + $0x168] sm:$0xff] %v3800
  %3913 = vst [vmem:[%s3 + $0x170] sm:$0xff] %v3801
  %3914 = vst [vmem:[%s3 + $0x178] sm:$0xff] %v3802
  %3915 = vst.msk [vmem:[%s3 + $0x180] sm:$0xff] %vm2703, %v3803
  %3916 = vst [vmem:[%s3 + $0x188] sm:$0xff] %v3804
  %3917 = vst [vmem:[%s3 + $0x190] sm:$0xff] %v3805
  %3918 = vst [vmem:[%s3 + $0x198] sm:$0xff] %v3806
  %3919 = vst [vmem:[%s3 + $0x1a0] sm:$0xff] %v3807
  %3920 = vst [vmem:[%s3 + $0x1a8] sm:$0xff] %v3808
  %3921 = vst [vmem:[%s3 + $0x1b0] sm:$0xff] %v3809
  %3922 = vst.msk [vmem:[%s3 + $0x1b8] sm:$0xff] %vm2703, %v3810
  %3923 = vst [vmem:[%s3 + $0x1c0] sm:$0xff] %v3811
  %3924 = vst [vmem:[%s3 + $0x1c8] sm:$0xff] %v3812
  %3925 = vst [vmem:[%s3 + $0x1d0] sm:$0xff] %v3813
  %3926 = vst [vmem:[%s3 + $0x1d8] sm:$0xff] %v3814
  %3927 = vst [vmem:[%s3 + $0x1e0] sm:$0xff] %v3815
  %3928 = vst [vmem:[%s3 + $0x1e8] sm:$0xff] %v3816
  %3929 = vst.msk [vmem:[%s3 + $0x1f0] sm:$0xff] %vm2703, %v3817
  %3930 = vst [vmem:[%s3 + $0x1f8] sm:$0xff] %v3818
  %3931 = vst [vmem:[%s3 + $0x200] sm:$0xff] %v3819
  %3932 = vst [vmem:[%s3 + $0x208] sm:$0xff] %v3820
  %3933 = vst [vmem:[%s3 + $0x210] sm:$0xff] %v3821
  %3934 = vst [vmem:[%s3 + $0x218] sm:$0xff] %v3822
  %3935 = vst [vmem:[%s3 + $0x220] sm:$0xff] %v3823
  %3936 = vst.msk [vmem:[%s3 + $0x228] sm:$0xff] %vm2703, %v3824
  %3937 = vst [vmem:[%s3 + $0x230] sm:$0xff] %v3825
  %3938 = vst [vmem:[%s3 + $0x238] sm:$0xff] %v3826
  %3939 = vst [vmem:[%s3 + $0x240] sm:$0xff] %v3827
  %3940 = vst [vmem:[%s3 + $0x248] sm:$0xff] %v3828
  %3941 = vst [vmem:[%s3 + $0x250] sm:$0xff] %v3829
  %3942 = vst [vmem:[%s3 + $0x258] sm:$0xff] %v3830
  %3943 = vst.msk [vmem:[%s3 + $0x260] sm:$0xff] %vm2703, %v3831
  %3944 = vst [vmem:[%s3 + $0x268] sm:$0xff] %v3832
  %3945 = vst [vmem:[%s3 + $0x270] sm:$0xff] %v3833
  %3946 = vst [vmem:[%s3 + $0x278] sm:$0xff] %v3834
  %3947 = vst [vmem:[%s3 + $0x280] sm:$0xff] %v3835
  %3948 = vst [vmem:[%s3 + $0x288] sm:$0xff] %v3836
  %3949 = vst [vmem:[%s3 + $0x290] sm:$0xff] %v3837
  %3950 = vst.msk [vmem:[%s3 + $0x298] sm:$0xff] %vm2703, %v3838
  %3951 = vst [vmem:[%s3 + $0x2a0] sm:$0xff] %v3839
  %3952 = vst [vmem:[%s3 + $0x2a8] sm:$0xff] %v3840
  %3953 = vst [vmem:[%s3 + $0x2b0] sm:$0xff] %v3841
  %3954 = vst [vmem:[%s3 + $0x2b8] sm:$0xff] %v3842
  %3955 = vst [vmem:[%s3 + $0x2c0] sm:$0xff] %v3843
  %3956 = vst [vmem:[%s3 + $0x2c8] sm:$0xff] %v3844
  %3957 = vst.msk [vmem:[%s3 + $0x2d0] sm:$0xff] %vm2703, %v3845
  %3958 = vst [vmem:[%s3 + $0x2d8] sm:$0xff] %v3846
  %3959 = vst [vmem:[%s3 + $0x2e0] sm:$0xff] %v3847
  %3960 = vst [vmem:[%s3 + $0x2e8] sm:$0xff] %v3848
  %3961 = vst [vmem:[%s3 + $0x2f0] sm:$0xff] %v3849
  %3962 = vst [vmem:[%s3 + $0x2f8] sm:$0xff] %v3850
  %3963 = vst [vmem:[%s3 + $0x300] sm:$0xff] %v3851
  %3964 = vst.msk [vmem:[%s3 + $0x308] sm:$0xff] %vm2703, %v3852
  %3965 = vst [vmem:[%s3 + $0x310] sm:$0xff] %v3853
  %3966 = vst [vmem:[%s3 + $0x318] sm:$0xff] %v3854
  %3967 = vst [vmem:[%s3 + $0x320] sm:$0xff] %v3855
  %3968 = vst [vmem:[%s3 + $0x328] sm:$0xff] %v3856
  %3969 = vst [vmem:[%s3 + $0x330] sm:$0xff] %v3857
  %3970 = vst [vmem:[%s3 + $0x338] sm:$0xff] %v3858
  %3971 = vst.msk [vmem:[%s3 + $0x340] sm:$0xff] %vm2703, %v3859
  %3972 = vst [vmem:[%s3 + $0x348] sm:$0xff] %v3860
  %3973 = vst [vmem:[%s3 + $0x350] sm:$0xff] %v3861
  %3974 = vst [vmem:[%s3 + $0x358] sm:$0xff] %v3862
  %3975 = vst [vmem:[%s3 + $0x360] sm:$0xff] %v3863
  %3976 = vst [vmem:[%s3 + $0x368] sm:$0xff] %v3864
  %3977 = vst [vmem:[%s3 + $0x370] sm:$0xff] %v3865
  %3978 = vst.msk [vmem:[%s3 + $0x378] sm:$0xff] %vm2703, %v3866
  // Predicated region
  $region14: #{fused_relu_conv1x1_bn.1} parent=0 // pred_check
    _
  $region15: #{fused_relu_conv1x1_bn.1} parent=0 // pred_check_branch
    %3980 = sbr.rel (0) target = $region17
  $region16: #{fused_relu_conv1x1_bn.1} parent=0 // pred_region
    _
  $region17: #{fused_relu_conv1x1_bn.1} parent=0 // pred_fallthru
    _
  // Predicated region
  $region18: #{fused_relu_conv1x1_bn.1} parent=0 // pred_check
    _
  $region19: #{fused_relu_conv1x1_bn.1} parent=0 // pred_check_branch
    %3982 = sbr.rel (0) target = $region21
  $region20: #{fused_relu_conv1x1_bn.1} parent=0 // pred_region
    _
  $region21: #{fused_relu_conv1x1_bn.1} parent=0 // pred_fallthru
    _

</llo_original>
